<compile_context>
chip_gen: v7x
topology: tpu7x:2x2x1
jax: 0.10.0
libtpu: 0.0.40
codegen_flags: <defaults>
</compile_context>

<pallas_src>
import jax
import jax.numpy as jnp
from jax.experimental import pallas as pl
from jax.experimental.pallas import tpu as pltpu


# ----------------------------- Pallas kernels -----------------------------

def _matmul_bias_relu_kernel(x_ref, w_ref, b_ref, o_ref):
    """One (TM, K) x (K, N) tile: MXU matmul (bf16 in, f32 acc) + bias + relu."""
    acc = jnp.dot(x_ref[...], w_ref[...], preferred_element_type=jnp.float32)
    o_ref[...] = jnp.maximum(acc + b_ref[...], 0.0).astype(o_ref.dtype)


def _conv2_relu_pool_kernel(y1_ref, w2_ref, b2_ref, o_ref, vrow_ref):
    """Fused conv2(3x3, 32->64) + bias + relu + 2x2 maxpool for one pooled row.

    y1_ref : (26, 26, 32) bf16  -- one image's conv1 activation (VMEM resident)
    w2_ref : (9, 32, 64)  bf16  -- conv2 weights, index kh*3+kw
    b2_ref : (1, 64)      f32
    o_ref  : (1, 12, 64)        -- pooled output row i of this image
    vrow_ref: (24, 64) f32 scratch (vertically pooled row, pre horizontal pool)
    """
    i = pl.program_id(1)                                   # pooled row index
    rows = [y1_ref[2 * i + j] for j in range(4)]           # 4 x (26, 32)

    acc0 = jnp.zeros((24, 64), jnp.float32)                # conv output row 2i
    acc1 = jnp.zeros((24, 64), jnp.float32)                # conv output row 2i+1
    for kh in range(3):
        for kw in range(3):
            w_kk = w2_ref[kh * 3 + kw]                     # (32, 64) bf16
            acc0 = acc0 + jnp.dot(rows[kh][kw:kw + 24, :], w_kk,
                                  preferred_element_type=jnp.float32)
            acc1 = acc1 + jnp.dot(rows[kh + 1][kw:kw + 24, :], w_kk,
                                  preferred_element_type=jnp.float32)

    # vertical 2x1 max, then bias + relu (max commutes with +bias and relu)
    v = jnp.maximum(jnp.maximum(acc0, acc1) + b2_ref[...], 0.0)   # (24, 64)

    # horizontal 1x2 max over adjacent w positions via strided sublane reads
    vrow_ref[...] = v
    left = vrow_ref[pl.ds(0, 12, stride=2), :]
    right = vrow_ref[pl.ds(1, 12, stride=2), :]
    o_ref[0] = jnp.maximum(left, right).astype(o_ref.dtype)       # (12, 64)


def _mlp_head_kernel(x_ref, w1_ref, b1_ref, w2_ref, b2_ref, o_ref, acc_ref):
    """fc1 (K-tiled, f32 accumulator) + relu + fc2 + log_softmax."""
    k = pl.program_id(0)

    @pl.when(k == 0)
    def _():
        acc_ref[...] = jnp.zeros_like(acc_ref)

    acc_ref[...] += jnp.dot(x_ref[...], w1_ref[...],
                            preferred_element_type=jnp.float32)

    @pl.when(k == pl.num_programs(0) - 1)
    def _():
        h = jnp.maximum(acc_ref[...] + b1_ref[...], 0.0)          # fc1 + relu
        # dropout2: eval mode -> identity
        logits = jnp.dot(h.astype(w2_ref.dtype), w2_ref[...],
                         preferred_element_type=jnp.float32) + b2_ref[...]
        m = jnp.max(logits, axis=-1, keepdims=True)
        s = logits - m
        lse = jnp.log(jnp.sum(jnp.exp(s), axis=-1, keepdims=True))
        o_ref[...] = (s - lse).astype(o_ref.dtype)


# ----------------------------- Pallas wrappers -----------------------------

_VMEM_LIMIT = 32 * 1024 * 1024
_TM_PIX = 512        # conv1 pixels per grid step (= 128 lane-packed rows)
_TK_FC1 = 2304       # fc1 reduction tile (9216 / 4)


def conv1_relu(x, w1, b1):
    """x: [B, 28, 28] f32 -> y1: [B, 26, 26, 32] bf16 (conv1 + relu)."""
    B, H, W = x.shape
    Ho, Wo = H - 2, W - 2
    npix = B * Ho * Wo

    # Tiny im2col (9x the 784-px input); columns ordered (kh, kw).
    cols = [x[:, kh:kh + Ho, kw:kw + Wo] for kh in range(3) for kw in range(3)]
    p = jnp.stack(cols, axis=-1).reshape(npix, 9).astype(jnp.bfloat16)

    # Pad K 9->16 (sublane friendly) and rows up to the tile; then pack 4
    # consecutive pixels per row so the kernel's output is 128 lanes wide.
    pad_pix = pl.cdiv(npix, _TM_PIX) * _TM_PIX - npix
    p = jnp.pad(p, ((0, pad_pix), (0, 7)))
    pq = p.reshape(-1, 64)                                  # [Mq, 64]
    mq = pq.shape[0]
    tm = _TM_PIX // 4

    yq = pl.pallas_call(
        _matmul_bias_relu_kernel,
        out_shape=jax.ShapeDtypeStruct((mq, 128), jnp.bfloat16),
        grid=(mq // tm,),
        in_specs=[pl.BlockSpec((tm, 64), lambda m: (m, 0)),
                  pl.BlockSpec((64, 128), lambda m: (0, 0)),
                  pl.BlockSpec((1, 128), lambda m: (0, 0))],
        out_specs=pl.BlockSpec((tm, 128), lambda m: (m, 0)),
        compiler_params=pltpu.CompilerParams(
            dimension_semantics=("parallel",),
            vmem_limit_bytes=_VMEM_LIMIT),
    )(pq, w1, b1)

    # Unpack: [Mq, 128] is bit-identical (row major) to [4*Mq, 32].
    return yq.reshape(-1, 32)[:npix].reshape(B, Ho, Wo, 32)


def conv2_relu_pool(y1, w2, b2):
    """y1: [B, 26, 26, 32] bf16 -> pooled: [B, 12, 12, 64] bf16 (conv2+relu+pool)."""
    B = y1.shape[0]
    return pl.pallas_call(
        _conv2_relu_pool_kernel,
        out_shape=jax.ShapeDtypeStruct((B, 12, 12, 64), jnp.bfloat16),
        grid=(B, 12),
        in_specs=[pl.BlockSpec((None, 26, 26, 32), lambda b, i: (b, 0, 0, 0)),
                  pl.BlockSpec((9, 32, 64), lambda b, i: (0, 0, 0)),
                  pl.BlockSpec((1, 64), lambda b, i: (0, 0))],
        out_specs=pl.BlockSpec((None, 1, 12, 64), lambda b, i: (b, i, 0, 0)),
        scratch_shapes=[pltpu.VMEM((24, 64), jnp.float32)],
        compiler_params=pltpu.CompilerParams(
            dimension_semantics=("parallel", "arbitrary"),
            vmem_limit_bytes=_VMEM_LIMIT),
    )(y1, w2, b2)


def mlp_head(x, wf1, bf1, wf2, bf2):
    """x: [B, 9216] bf16 -> log-probs [B, 10] f32 (fc1+relu+fc2+log_softmax)."""
    B, K = x.shape
    N1 = wf1.shape[1]
    N2 = wf2.shape[1]
    kt = K // _TK_FC1
    return pl.pallas_call(
        _mlp_head_kernel,
        out_shape=jax.ShapeDtypeStruct((B, N2), jnp.float32),
        grid=(kt,),
        in_specs=[pl.BlockSpec((B, _TK_FC1), lambda k: (0, k)),
                  pl.BlockSpec((_TK_FC1, N1), lambda k: (k, 0)),
                  pl.BlockSpec((1, N1), lambda k: (0, 0)),
                  pl.BlockSpec((N1, N2), lambda k: (0, 0)),
                  pl.BlockSpec((1, N2), lambda k: (0, 0))],
        out_specs=pl.BlockSpec((B, N2), lambda k: (0, 0)),
        scratch_shapes=[pltpu.VMEM((B, N1), jnp.float32)],
        compiler_params=pltpu.CompilerParams(
            dimension_semantics=("arbitrary",),
            vmem_limit_bytes=_VMEM_LIMIT),
    )(x.astype(jnp.bfloat16), wf1, bf1, wf2, bf2)


# ----------------------------- Params -----------------------------

def init_params(key):
    """PyTorch-layout params with uniform(-1/sqrt(fan_in), 1/sqrt(fan_in)) init."""
    ks = jax.random.split(key, 8)

    def u(k, shape, fan_in):
        bound = 1.0 / jnp.sqrt(jnp.float32(fan_in))
        return jax.random.uniform(k, shape, jnp.float32, -bound, bound)

    return {
        "conv1_w": u(ks[0], (32, 1, 3, 3), 9),    "conv1_b": u(ks[1], (32,), 9),
        "conv2_w": u(ks[2], (64, 32, 3, 3), 288), "conv2_b": u(ks[3], (64,), 288),
        "fc1_w": u(ks[4], (128, 9216), 9216),     "fc1_b": u(ks[5], (128,), 9216),
        "fc2_w": u(ks[6], (10, 128), 128),        "fc2_b": u(ks[7], (10,), 128),
    }


def prepare_params(p):
    """One-time conversion of PyTorch-layout weights to kernel-friendly layouts."""
    # conv1: im2col weight [9, 32] (row = kh*3+kw), K padded to 16, then block-
    # diagonally replicated 4x so the kernel emits 4 pixels (128 lanes) per row.
    w1 = jnp.transpose(p["conv1_w"][:, 0, :, :], (1, 2, 0)).reshape(9, 32)
    w1 = jnp.pad(w1, ((0, 7), (0, 0)))                       # [16, 32]
    w1 = jnp.kron(jnp.eye(4, dtype=w1.dtype), w1)            # [64, 128]
    b1 = jnp.tile(p["conv1_b"][None, :], (1, 4))             # [1, 128]

    # conv2: [kh*3+kw, cin, cout]
    w2 = jnp.transpose(p["conv2_w"], (2, 3, 1, 0)).reshape(9, 32, 64)
    b2 = p["conv2_b"][None, :]                                # [1, 64]

    # fc1: transpose to [in, out] and permute its 9216 input rows from PyTorch's
    # NCHW-flatten order to our NHWC-flatten order (removes the activation
    # transpose from the hot path).
    h, w, c = jnp.meshgrid(jnp.arange(12), jnp.arange(12), jnp.arange(64),
                           indexing="ij")
    perm = (c * 144 + h * 12 + w).reshape(-1)                 # nhwc row -> torch row
    wf1 = p["fc1_w"].T[perm]                                  # [9216, 128]
    bf1 = p["fc1_b"][None, :]                                 # [1, 128]

    wf2 = p["fc2_w"].T                                        # [128, 10]
    bf2 = p["fc2_b"][None, :]                                 # [1, 10]

    bf16 = jnp.bfloat16
    return {"w1": w1.astype(bf16), "b1": b1,
            "w2": w2.astype(bf16), "b2": b2,
            "wf1": wf1.astype(bf16), "bf1": bf1,
            "wf2": wf2.astype(bf16), "bf2": bf2}


# ----------------------------- Forward -----------------------------

def net_forward(x_nchw, params):
    B = x_nchw.shape[0]
    x = x_nchw[:, 0, :, :]                                   # [B, 28, 28] (Cin = 1)

    y1 = conv1_relu(x, params["w1"], params["b1"])           # [B, 26, 26, 32] bf16
    pooled = conv2_relu_pool(y1, params["w2"], params["b2"])  # [B, 12, 12, 64] bf16

    # dropout1: eval mode -> identity
    flat = pooled.reshape(B, 12 * 12 * 64)                   # NHWC flatten (wf1 pre-permuted)

    # fc1 + relu + [dropout2 identity] + fc2 + log_softmax (fused, K-tiled)
    return mlp_head(flat, params["wf1"], params["bf1"],
                    params["wf2"], params["bf2"])             # [B, 10] f32


# TODO(synk): training-mode dropout (stochastic masking via pltpu.prng_*) is not
# implemented; this forward pass matches the module in eval() mode.

if __name__ == "__main__":
    # fc1's input size (9216 = 64*12*12) fixes the spatial size to 1x28x28 (MNIST).
    x = jax.random.normal(jax.random.PRNGKey(0), (2, 1, 28, 28), dtype=jnp.float32)
    params = prepare_params(init_params(jax.random.PRNGKey(42)))

    fwd = jax.jit(net_forward)
    out = fwd(x, params)
    jax.block_until_ready(out)

    assert out.shape == (2, 10)
    # rows of log_softmax must exponentiate-and-sum to 1
    assert bool(jnp.all(jnp.abs(jnp.exp(out).sum(-1) - 1.0) < 1e-3))
    print("KERNEL_OK")
</pallas_src>

<mosaic_0001>
module attributes {stable_mosaic.version = 11 : i64} {
  func.func @_matmul_bias_relu_kernel(%arg0: i32, %arg1: memref<128x64xbf16, #tpu.memory_space<vmem>>, %arg2: memref<64x128xbf16, #tpu.memory_space<vmem>>, %arg3: memref<1x128xf32, #tpu.memory_space<vmem>>, %arg4: memref<128x128xbf16, #tpu.memory_space<vmem>>) attributes {dimension_semantics = [#tpu.dimension_semantics<parallel>], iteration_bounds = array<i64: 3>, scalar_prefetch = 0 : i64, scratch_operands = 0 : i64, tpu.core_type = #tpu.core_type<tc>, window_params = [{transform_indices = @transform_0, window_bounds = array<i64: 128, 64>}, {pipeline_mode = #tpu.pipeline_mode<synchronous>, transform_indices = @transform_1, window_bounds = array<i64: 64, 128>}, {pipeline_mode = #tpu.pipeline_mode<synchronous>, transform_indices = @transform_2, window_bounds = array<i64: 1, 128>}, {transform_indices = @transform_3, window_bounds = array<i64: 128, 128>}]} {
    %c0 = arith.constant 0 : index
    %c0_0 = arith.constant 0 : index
    %0 = vector.load %arg1[%c0, %c0_0] : memref<128x64xbf16, #tpu.memory_space<vmem>>, vector<128x64xbf16>
    %c0_1 = arith.constant 0 : index
    %c0_2 = arith.constant 0 : index
    %1 = vector.load %arg2[%c0_1, %c0_2] : memref<64x128xbf16, #tpu.memory_space<vmem>>, vector<64x128xbf16>
    %cst = arith.constant dense<0.000000e+00> : vector<128x128xf32>
    %2 = tpu.matmul %0, %1, %cst {dimension_numbers = #tpu.dot_dimension_numbers<[1], [0], [0], [1], [0, 0, 1, 1], [], []>} : vector<128x64xbf16>, vector<64x128xbf16>, vector<128x128xf32> -> vector<128x128xf32>
    %c0_3 = arith.constant 0 : index
    %c0_4 = arith.constant 0 : index
    %3 = vector.load %arg3[%c0_3, %c0_4] : memref<1x128xf32, #tpu.memory_space<vmem>>, vector<1x128xf32>
    %4 = vector.broadcast %3 : vector<1x128xf32> to vector<128x128xf32>
    %5 = arith.addf %2, %4 : vector<128x128xf32>
    %cst_5 = arith.constant 0.000000e+00 : f32
    %6 = vector.broadcast %cst_5 : f32 to vector<128x128xf32>
    %7 = arith.maximumf %5, %6 : vector<128x128xf32>
    %8 = arith.truncf %7 : vector<128x128xf32> to vector<128x128xbf16>
    %c0_6 = arith.constant 0 : index
    %c0_7 = arith.constant 0 : index
    %9 = vector.load %arg4[%c0_6, %c0_7] : memref<128x128xbf16, #tpu.memory_space<vmem>>, vector<128x128xbf16>
    tpu.vector_store %arg4[%c0_6, %c0_7], %8 {strides = array<i32>} : memref<128x128xbf16, #tpu.memory_space<vmem>>, vector<128x128xbf16>,
    return
  }
  func.func @transform_0(%arg0: i32) -> (i32, i32) {
    %c0_i32 = arith.constant 0 : i32
    %c0_i32_0 = arith.constant 0 : i32
    return %arg0, %c0_i32 : i32, i32
  }
  func.func @transform_1(%arg0: i32) -> (i32, i32) {
    %c0_i32 = arith.constant 0 : i32
    %c0_i32_0 = arith.constant 0 : i32
    %c0_i32_1 = arith.constant 0 : i32
    return %c0_i32, %c0_i32_0 : i32, i32
  }
  func.func @transform_2(%arg0: i32) -> (i32, i32) {
    %c0_i32 = arith.constant 0 : i32
    %c0_i32_0 = arith.constant 0 : i32
    %c0_i32_1 = arith.constant 0 : i32
    return %c0_i32, %c0_i32_0 : i32, i32
  }
  func.func @transform_3(%arg0: i32) -> (i32, i32) {
    %c0_i32 = arith.constant 0 : i32
    %c0_i32_0 = arith.constant 0 : i32
    return %arg0, %c0_i32 : i32, i32
  }
}

module attributes {stable_mosaic.version = 11 : i64} {
  func.func @_conv2_relu_pool_kernel(%arg0: i32, %arg1: i32, %arg2: memref<1x26x26x32xbf16, #tpu.memory_space<vmem>>, %arg3: memref<9x32x64xbf16, #tpu.memory_space<vmem>>, %arg4: memref<1x64xf32, #tpu.memory_space<vmem>>, %arg5: memref<1x1x12x64xbf16, #tpu.memory_space<vmem>>, %arg6: memref<24x64xf32, #tpu.memory_space<vmem>>) attributes {dimension_semantics = [#tpu.dimension_semantics<parallel>, #tpu.dimension_semantics<arbitrary>], iteration_bounds = array<i64: 2, 12>, scalar_prefetch = 0 : i64, scratch_operands = 1 : i64, tpu.core_type = #tpu.core_type<tc>, window_params = [{transform_indices = @transform_0, window_bounds = array<i64: 1, 26, 26, 32>}, {pipeline_mode = #tpu.pipeline_mode<synchronous>, transform_indices = @transform_1, window_bounds = array<i64: 9, 32, 64>}, {pipeline_mode = #tpu.pipeline_mode<synchronous>, transform_indices = @transform_2, window_bounds = array<i64: 1, 64>}, {transform_indices = @transform_3, window_bounds = array<i64: 1, 1, 12, 64>}]} {
    %c2_i32 = arith.constant 2 : i32
    %0 = arith.muli %c2_i32, %arg1 : i32
    %c0_i32 = arith.constant 0 : i32
    %1 = arith.addi %0, %c0_i32 : i32
    %c0 = arith.constant 0 : index
    %2 = arith.index_cast %1 : i32 to index
    %c0_0 = arith.constant 0 : index
    %c0_1 = arith.constant 0 : index
    %3 = vector.load %arg2[%c0, %2, %c0_0, %c0_1] : memref<1x26x26x32xbf16, #tpu.memory_space<vmem>>, vector<1x1x26x32xbf16>
    %4 = vector.shape_cast %3 : vector<1x1x26x32xbf16> to vector<26x32xbf16>
    %c2_i32_2 = arith.constant 2 : i32
    %5 = arith.muli %c2_i32_2, %arg1 : i32
    %c1_i32 = arith.constant 1 : i32
    %6 = arith.addi %5, %c1_i32 : i32
    %c0_3 = arith.constant 0 : index
    %7 = arith.index_cast %6 : i32 to index
    %c0_4 = arith.constant 0 : index
    %c0_5 = arith.constant 0 : index
    %8 = vector.load %arg2[%c0_3, %7, %c0_4, %c0_5] : memref<1x26x26x32xbf16, #tpu.memory_space<vmem>>, vector<1x1x26x32xbf16>
    %9 = vector.shape_cast %8 : vector<1x1x26x32xbf16> to vector<26x32xbf16>
    %c2_i32_6 = arith.constant 2 : i32
    %10 = arith.muli %c2_i32_6, %arg1 : i32
    %c2_i32_7 = arith.constant 2 : i32
    %11 = arith.addi %10, %c2_i32_7 : i32
    %c0_8 = arith.constant 0 : index
    %12 = arith.index_cast %11 : i32 to index
    %c0_9 = arith.constant 0 : index
    %c0_10 = arith.constant 0 : index
    %13 = vector.load %arg2[%c0_8, %12, %c0_9, %c0_10] : memref<1x26x26x32xbf16, #tpu.memory_space<vmem>>, vector<1x1x26x32xbf16>
    %14 = vector.shape_cast %13 : vector<1x1x26x32xbf16> to vector<26x32xbf16>
    %c2_i32_11 = arith.constant 2 : i32
    %15 = arith.muli %c2_i32_11, %arg1 : i32
    %c3_i32 = arith.constant 3 : i32
    %16 = arith.addi %15, %c3_i32 : i32
    %c0_12 = arith.constant 0 : index
    %17 = arith.index_cast %16 : i32 to index
    %c0_13 = arith.constant 0 : index
    %c0_14 = arith.constant 0 : index
    %18 = vector.load %arg2[%c0_12, %17, %c0_13, %c0_14] : memref<1x26x26x32xbf16, #tpu.memory_space<vmem>>, vector<1x1x26x32xbf16>
    %19 = vector.shape_cast %18 : vector<1x1x26x32xbf16> to vector<26x32xbf16>
    %cst = arith.constant 0.000000e+00 : f32
    %20 = vector.broadcast %cst : f32 to vector<24x64xf32>
    %cst_15 = arith.constant 0.000000e+00 : f32
    %21 = vector.broadcast %cst_15 : f32 to vector<24x64xf32>
    %c0_16 = arith.constant 0 : index
    %c0_17 = arith.constant 0 : index
    %c0_18 = arith.constant 0 : index
    %22 = vector.load %arg3[%c0_16, %c0_17, %c0_18] : memref<9x32x64xbf16, #tpu.memory_space<vmem>>, vector<1x32x64xbf16>
    %23 = vector.shape_cast %22 : vector<1x32x64xbf16> to vector<32x64xbf16>
    %24 = vector.extract_strided_slice %4 {offsets = [0, 0], sizes = [24, 32], strides = [1, 1]} : vector<26x32xbf16> to vector<24x32xbf16>
    %cst_19 = arith.constant dense<0.000000e+00> : vector<24x64xf32>
    %25 = tpu.matmul %24, %23, %cst_19 {dimension_numbers = #tpu.dot_dimension_numbers<[1], [0], [0], [1], [0, 0, 1, 1], [], []>} : vector<24x32xbf16>, vector<32x64xbf16>, vector<24x64xf32> -> vector<24x64xf32>
    %26 = arith.addf %20, %25 : vector<24x64xf32>
    %27 = vector.extract_strided_slice %9 {offsets = [0, 0], sizes = [24, 32], strides = [1, 1]} : vector<26x32xbf16> to vector<24x32xbf16>
    %cst_20 = arith.constant dense<0.000000e+00> : vector<24x64xf32>
    %28 = tpu.matmul %27, %23, %cst_20 {dimension_numbers = #tpu.dot_dimension_numbers<[1], [0], [0], [1], [0, 0, 1, 1], [], []>} : vector<24x32xbf16>, vector<32x64xbf16>, vector<24x64xf32> -> vector<24x64xf32>
    %29 = arith.addf %21, %28 : vector<24x64xf32>
    %c1 = arith.constant 1 : index
    %c0_21 = arith.constant 0 : index
    %c0_22 = arith.constant 0 : index
    %30 = vector.load %arg3[%c1, %c0_21, %c0_22] : memref<9x32x64xbf16, #tpu.memory_space<vmem>>, vector<1x32x64xbf16>
    %31 = vector.shape_cast %30 : vector<1x32x64xbf16> to vector<32x64xbf16>
    %32 = vector.extract_strided_slice %4 {offsets = [1, 0], sizes = [24, 32], strides = [1, 1]} : vector<26x32xbf16> to vector<24x32xbf16>
    %cst_23 = arith.constant dense<0.000000e+00> : vector<24x64xf32>
    %33 = tpu.matmul %32, %31, %cst_23 {dimension_numbers = #tpu.dot_dimension_numbers<[1], [0], [0], [1], [0, 0, 1, 1], [], []>} : vector<24x32xbf16>, vector<32x64xbf16>, vector<24x64xf32> -> vector<24x64xf32>
    %34 = arith.addf %26, %33 : vector<24x64xf32>
    %35 = vector.extract_strided_slice %9 {offsets = [1, 0], sizes = [24, 32], strides = [1, 1]} : vector<26x32xbf16> to vector<24x32xbf16>
    %cst_24 = arith.constant dense<0.000000e+00> : vector<24x64xf32>
    %36 = tpu.matmul %35, %31, %cst_24 {dimension_numbers = #tpu.dot_dimension_numbers<[1], [0], [0], [1], [0, 0, 1, 1], [], []>} : vector<24x32xbf16>, vector<32x64xbf16>, vector<24x64xf32> -> vector<24x64xf32>
    %37 = arith.addf %29, %36 : vector<24x64xf32>
    %c2 = arith.constant 2 : index
    %c0_25 = arith.constant 0 : index
    %c0_26 = arith.constant 0 : index
    %38 = vector.load %arg3[%c2, %c0_25, %c0_26] : memref<9x32x64xbf16, #tpu.memory_space<vmem>>, vector<1x32x64xbf16>
    %39 = vector.shape_cast %38 : vector<1x32x64xbf16> to vector<32x64xbf16>
    %40 = vector.extract_strided_slice %4 {offsets = [2, 0], sizes = [24, 32], strides = [1, 1]} : vector<26x32xbf16> to vector<24x32xbf16>
    %cst_27 = arith.constant dense<0.000000e+00> : vector<24x64xf32>
    %41 = tpu.matmul %40, %39, %cst_27 {dimension_numbers = #tpu.dot_dimension_numbers<[1], [0], [0], [1], [0, 0, 1, 1], [], []>} : vector<24x32xbf16>, vector<32x64xbf16>, vector<24x64xf32> -> vector<24x64xf32>
    %42 = arith.addf %34, %41 : vector<24x64xf32>
    %43 = vector.extract_strided_slice %9 {offsets = [2, 0], sizes = [24, 32], strides = [1, 1]} : vector<26x32xbf16> to vector<24x32xbf16>
    %cst_28 = arith.constant dense<0.000000e+00> : vector<24x64xf32>
    %44 = tpu.matmul %43, %39, %cst_28 {dimension_numbers = #tpu.dot_dimension_numbers<[1], [0], [0], [1], [0, 0, 1, 1], [], []>} : vector<24x32xbf16>, vector<32x64xbf16>, vector<24x64xf32> -> vector<24x64xf32>
    %45 = arith.addf %37, %44 : vector<24x64xf32>
    %c3 = arith.constant 3 : index
    %c0_29 = arith.constant 0 : index
    %c0_30 = arith.constant 0 : index
    %46 = vector.load %arg3[%c3, %c0_29, %c0_30] : memref<9x32x64xbf16, #tpu.memory_space<vmem>>, vector<1x32x64xbf16>
    %47 = vector.shape_cast %46 : vector<1x32x64xbf16> to vector<32x64xbf16>
    %48 = vector.extract_strided_slice %9 {offsets = [0, 0], sizes = [24, 32], strides = [1, 1]} : vector<26x32xbf16> to vector<24x32xbf16>
    %cst_31 = arith.constant dense<0.000000e+00> : vector<24x64xf32>
    %49 = tpu.matmul %48, %47, %cst_31 {dimension_numbers = #tpu.dot_dimension_numbers<[1], [0], [0], [1], [0, 0, 1, 1], [], []>} : vector<24x32xbf16>, vector<32x64xbf16>, vector<24x64xf32> -> vector<24x64xf32>
    %50 = arith.addf %42, %49 : vector<24x64xf32>
    %51 = vector.extract_strided_slice %14 {offsets = [0, 0], sizes = [24, 32], strides = [1, 1]} : vector<26x32xbf16> to vector<24x32xbf16>
    %cst_32 = arith.constant dense<0.000000e+00> : vector<24x64xf32>
    %52 = tpu.matmul %51, %47, %cst_32 {dimension_numbers = #tpu.dot_dimension_numbers<[1], [0], [0], [1], [0, 0, 1, 1], [], []>} : vector<24x32xbf16>, vector<32x64xbf16>, vector<24x64xf32> -> vector<24x64xf32>
    %53 = arith.addf %45, %52 : vector<24x64xf32>
    %c4 = arith.constant 4 : index
    %c0_33 = arith.constant 0 : index
    %c0_34 = arith.constant 0 : index
    %54 = vector.load %arg3[%c4, %c0_33, %c0_34] : memref<9x32x64xbf16, #tpu.memory_space<vmem>>, vector<1x32x64xbf16>
    %55 = vector.shape_cast %54 : vector<1x32x64xbf16> to vector<32x64xbf16>
    %56 = vector.extract_strided_slice %9 {offsets = [1, 0], sizes = [24, 32], strides = [1, 1]} : vector<26x32xbf16> to vector<24x32xbf16>
    %cst_35 = arith.constant dense<0.000000e+00> : vector<24x64xf32>
    %57 = tpu.matmul %56, %55, %cst_35 {dimension_numbers = #tpu.dot_dimension_numbers<[1], [0], [0], [1], [0, 0, 1, 1], [], []>} : vector<24x32xbf16>, vector<32x64xbf16>, vector<24x64xf32> -> vector<24x64xf32>
    %58 = arith.addf %50, %57 : vector<24x64xf32>
    %59 = vector.extract_strided_slice %14 {offsets = [1, 0], sizes = [24, 32], strides = [1, 1]} : vector<26x32xbf16> to vector<24x32xbf16>
    %cst_36 = arith.constant dense<0.000000e+00> : vector<24x64xf32>
    %60 = tpu.matmul %59, %55, %cst_36 {dimension_numbers = #tpu.dot_dimension_numbers<[1], [0], [0], [1], [0, 0, 1, 1], [], []>} : vector<24x32xbf16>, vector<32x64xbf16>, vector<24x64xf32> -> vector<24x64xf32>
    %61 = arith.addf %53, %60 : vector<24x64xf32>
    %c5 = arith.constant 5 : index
    %c0_37 = arith.constant 0 : index
    %c0_38 = arith.constant 0 : index
    %62 = vector.load %arg3[%c5, %c0_37, %c0_38] : memref<9x32x64xbf16, #tpu.memory_space<vmem>>, vector<1x32x64xbf16>
    %63 = vector.shape_cast %62 : vector<1x32x64xbf16> to vector<32x64xbf16>
    %64 = vector.extract_strided_slice %9 {offsets = [2, 0], sizes = [24, 32], strides = [1, 1]} : vector<26x32xbf16> to vector<24x32xbf16>
    %cst_39 = arith.constant dense<0.000000e+00> : vector<24x64xf32>
    %65 = tpu.matmul %64, %63, %cst_39 {dimension_numbers = #tpu.dot_dimension_numbers<[1], [0], [0], [1], [0, 0, 1, 1], [], []>} : vector<24x32xbf16>, vector<32x64xbf16>, vector<24x64xf32> -> vector<24x64xf32>
    %66 = arith.addf %58, %65 : vector<24x64xf32>
    %67 = vector.extract_strided_slice %14 {offsets = [2, 0], sizes = [24, 32], strides = [1, 1]} : vector<26x32xbf16> to vector<24x32xbf16>
    %cst_40 = arith.constant dense<0.000000e+00> : vector<24x64xf32>
    %68 = tpu.matmul %67, %63, %cst_40 {dimension_numbers = #tpu.dot_dimension_numbers<[1], [0], [0], [1], [0, 0, 1, 1], [], []>} : vector<24x32xbf16>, vector<32x64xbf16>, vector<24x64xf32> -> vector<24x64xf32>
    %69 = arith.addf %61, %68 : vector<24x64xf32>
    %c6 = arith.constant 6 : index
    %c0_41 = arith.constant 0 : index
    %c0_42 = arith.constant 0 : index
    %70 = vector.load %arg3[%c6, %c0_41, %c0_42] : memref<9x32x64xbf16, #tpu.memory_space<vmem>>, vector<1x32x64xbf16>
    %71 = vector.shape_cast %70 : vector<1x32x64xbf16> to vector<32x64xbf16>
    %72 = vector.extract_strided_slice %14 {offsets = [0, 0], sizes = [24, 32], strides = [1, 1]} : vector<26x32xbf16> to vector<24x32xbf16>
    %cst_43 = arith.constant dense<0.000000e+00> : vector<24x64xf32>
    %73 = tpu.matmul %72, %71, %cst_43 {dimension_numbers = #tpu.dot_dimension_numbers<[1], [0], [0], [1], [0, 0, 1, 1], [], []>} : vector<24x32xbf16>, vector<32x64xbf16>, vector<24x64xf32> -> vector<24x64xf32>
    %74 = arith.addf %66, %73 : vector<24x64xf32>
    %75 = vector.extract_strided_slice %19 {offsets = [0, 0], sizes = [24, 32], strides = [1, 1]} : vector<26x32xbf16> to vector<24x32xbf16>
    %cst_44 = arith.constant dense<0.000000e+00> : vector<24x64xf32>
    %76 = tpu.matmul %75, %71, %cst_44 {dimension_numbers = #tpu.dot_dimension_numbers<[1], [0], [0], [1], [0, 0, 1, 1], [], []>} : vector<24x32xbf16>, vector<32x64xbf16>, vector<24x64xf32> -> vector<24x64xf32>
    %77 = arith.addf %69, %76 : vector<24x64xf32>
    %c7 = arith.constant 7 : index
    %c0_45 = arith.constant 0 : index
    %c0_46 = arith.constant 0 : index
    %78 = vector.load %arg3[%c7, %c0_45, %c0_46] : memref<9x32x64xbf16, #tpu.memory_space<vmem>>, vector<1x32x64xbf16>
    %79 = vector.shape_cast %78 : vector<1x32x64xbf16> to vector<32x64xbf16>
    %80 = vector.extract_strided_slice %14 {offsets = [1, 0], sizes = [24, 32], strides = [1, 1]} : vector<26x32xbf16> to vector<24x32xbf16>
    %cst_47 = arith.constant dense<0.000000e+00> : vector<24x64xf32>
    %81 = tpu.matmul %80, %79, %cst_47 {dimension_numbers = #tpu.dot_dimension_numbers<[1], [0], [0], [1], [0, 0, 1, 1], [], []>} : vector<24x32xbf16>, vector<32x64xbf16>, vector<24x64xf32> -> vector<24x64xf32>
    %82 = arith.addf %74, %81 : vector<24x64xf32>
    %83 = vector.extract_strided_slice %19 {offsets = [1, 0], sizes = [24, 32], strides = [1, 1]} : vector<26x32xbf16> to vector<24x32xbf16>
    %cst_48 = arith.constant dense<0.000000e+00> : vector<24x64xf32>
    %84 = tpu.matmul %83, %79, %cst_48 {dimension_numbers = #tpu.dot_dimension_numbers<[1], [0], [0], [1], [0, 0, 1, 1], [], []>} : vector<24x32xbf16>, vector<32x64xbf16>, vector<24x64xf32> -> vector<24x64xf32>
    %85 = arith.addf %77, %84 : vector<24x64xf32>
    %c8 = arith.constant 8 : index
    %c0_49 = arith.constant 0 : index
    %c0_50 = arith.constant 0 : index
    %86 = vector.load %arg3[%c8, %c0_49, %c0_50] : memref<9x32x64xbf16, #tpu.memory_space<vmem>>, vector<1x32x64xbf16>
    %87 = vector.shape_cast %86 : vector<1x32x64xbf16> to vector<32x64xbf16>
    %88 = vector.extract_strided_slice %14 {offsets = [2, 0], sizes = [24, 32], strides = [1, 1]} : vector<26x32xbf16> to vector<24x32xbf16>
    %cst_51 = arith.constant dense<0.000000e+00> : vector<24x64xf32>
    %89 = tpu.matmul %88, %87, %cst_51 {dimension_numbers = #tpu.dot_dimension_numbers<[1], [0], [0], [1], [0, 0, 1, 1], [], []>} : vector<24x32xbf16>, vector<32x64xbf16>, vector<24x64xf32> -> vector<24x64xf32>
    %90 = arith.addf %82, %89 : vector<24x64xf32>
    %91 = vector.extract_strided_slice %19 {offsets = [2, 0], sizes = [24, 32], strides = [1, 1]} : vector<26x32xbf16> to vector<24x32xbf16>
    %cst_52 = arith.constant dense<0.000000e+00> : vector<24x64xf32>
    %92 = tpu.matmul %91, %87, %cst_52 {dimension_numbers = #tpu.dot_dimension_numbers<[1], [0], [0], [1], [0, 0, 1, 1], [], []>} : vector<24x32xbf16>, vector<32x64xbf16>, vector<24x64xf32> -> vector<24x64xf32>
    %93 = arith.addf %85, %92 : vector<24x64xf32>
    %94 = arith.maximumf %90, %93 : vector<24x64xf32>
    %c0_53 = arith.constant 0 : index
    %c0_54 = arith.constant 0 : index
    %95 = vector.load %arg4[%c0_53, %c0_54] : memref<1x64xf32, #tpu.memory_space<vmem>>, vector<1x64xf32>
    %96 = vector.broadcast %95 : vector<1x64xf32> to vector<24x64xf32>
    %97 = arith.addf %94, %96 : vector<24x64xf32>
    %cst_55 = arith.constant 0.000000e+00 : f32
    %98 = vector.broadcast %cst_55 : f32 to vector<24x64xf32>
    %99 = arith.maximumf %97, %98 : vector<24x64xf32>
    %c0_56 = arith.constant 0 : index
    %c0_57 = arith.constant 0 : index
    %100 = vector.load %arg6[%c0_56, %c0_57] : memref<24x64xf32, #tpu.memory_space<vmem>>, vector<24x64xf32>
    tpu.vector_store %arg6[%c0_56, %c0_57], %99 {strides = array<i32>} : memref<24x64xf32, #tpu.memory_space<vmem>>, vector<24x64xf32>,
    %c0_58 = arith.constant 0 : index
    %c0_59 = arith.constant 0 : index
    %101 = tpu.strided_load %arg6[%c0_58, %c0_59] {strides = array<i32: 2, 1>} : memref<24x64xf32, #tpu.memory_space<vmem>>, vector<12x64xf32>
    %c1_60 = arith.constant 1 : index
    %c0_61 = arith.constant 0 : index
    %102 = tpu.strided_load %arg6[%c1_60, %c0_61] {strides = array<i32: 2, 1>} : memref<24x64xf32, #tpu.memory_space<vmem>>, vector<12x64xf32>
    %103 = arith.maximumf %101, %102 : vector<12x64xf32>
    %104 = arith.truncf %103 : vector<12x64xf32> to vector<12x64xbf16>
    %c0_62 = arith.constant 0 : index
    %c0_63 = arith.constant 0 : index
    %c0_64 = arith.constant 0 : index
    %c0_65 = arith.constant 0 : index
    %105 = vector.load %arg5[%c0_62, %c0_63, %c0_64, %c0_65] : memref<1x1x12x64xbf16, #tpu.memory_space<vmem>>, vector<1x1x12x64xbf16>
    %106 = vector.shape_cast %105 : vector<1x1x12x64xbf16> to vector<12x64xbf16>
    %107 = vector.shape_cast %104 : vector<12x64xbf16> to vector<1x1x12x64xbf16>
    tpu.vector_store %arg5[%c0_62, %c0_63, %c0_64, %c0_65], %107 {strides = array<i32>} : memref<1x1x12x64xbf16, #tpu.memory_space<vmem>>, vector<1x1x12x64xbf16>,
    return
  }
  func.func @transform_0(%arg0: i32, %arg1: i32) -> (i32, i32, i32, i32) {
    %c0_i32 = arith.constant 0 : i32
    %c0_i32_0 = arith.constant 0 : i32
    %c0_i32_1 = arith.constant 0 : i32
    %c0_i32_2 = arith.constant 0 : i32
    return %arg0, %c0_i32, %c0_i32_0, %c0_i32_1 : i32, i32, i32, i32
  }
  func.func @transform_1(%arg0: i32, %arg1: i32) -> (i32, i32, i32) {
    %c0_i32 = arith.constant 0 : i32
    %c0_i32_0 = arith.constant 0 : i32
    %c0_i32_1 = arith.constant 0 : i32
    %c0_i32_2 = arith.constant 0 : i32
    return %c0_i32, %c0_i32_0, %c0_i32_1 : i32, i32, i32
  }
  func.func @transform_2(%arg0: i32, %arg1: i32) -> (i32, i32) {
    %c0_i32 = arith.constant 0 : i32
    %c0_i32_0 = arith.constant 0 : i32
    %c0_i32_1 = arith.constant 0 : i32
    return %c0_i32, %c0_i32_0 : i32, i32
  }
  func.func @transform_3(%arg0: i32, %arg1: i32) -> (i32, i32, i32, i32) {
    %c0_i32 = arith.constant 0 : i32
    %c0_i32_0 = arith.constant 0 : i32
    %c0_i32_1 = arith.constant 0 : i32
    return %arg0, %arg1, %c0_i32, %c0_i32_0 : i32, i32, i32, i32
  }
}

module attributes {stable_mosaic.version = 11 : i64} {
  func.func @_mlp_head_kernel(%arg0: i32, %arg1: memref<2x2304xbf16, #tpu.memory_space<vmem>>, %arg2: memref<2304x128xbf16, #tpu.memory_space<vmem>>, %arg3: memref<1x128xf32, #tpu.memory_space<vmem>>, %arg4: memref<128x10xbf16, #tpu.memory_space<vmem>>, %arg5: memref<1x10xf32, #tpu.memory_space<vmem>>, %arg6: memref<2x10xf32, #tpu.memory_space<vmem>>, %arg7: memref<2x128xf32, #tpu.memory_space<vmem>>) attributes {dimension_semantics = [#tpu.dimension_semantics<arbitrary>], iteration_bounds = array<i64: 4>, scalar_prefetch = 0 : i64, scratch_operands = 1 : i64, tpu.core_type = #tpu.core_type<tc>, window_params = [{transform_indices = @transform_0, window_bounds = array<i64: 2, 2304>}, {transform_indices = @transform_1, window_bounds = array<i64: 2304, 128>}, {pipeline_mode = #tpu.pipeline_mode<synchronous>, transform_indices = @transform_2, window_bounds = array<i64: 1, 128>}, {pipeline_mode = #tpu.pipeline_mode<synchronous>, transform_indices = @transform_3, window_bounds = array<i64: 128, 10>}, {pipeline_mode = #tpu.pipeline_mode<synchronous>, transform_indices = @transform_4, window_bounds = array<i64: 1, 10>}, {pipeline_mode = #tpu.pipeline_mode<synchronous>, transform_indices = @transform_5, window_bounds = array<i64: 2, 10>}]} {
    %c0_i32 = arith.constant 0 : i32
    %0 = arith.cmpi eq, %arg0, %c0_i32 : i32
    %1 = arith.extui %0 : i1 to i32
    %c0_i32_0 = arith.constant 0 : i32
    %2 = arith.cmpi ne, %1, %c0_i32_0 : i32
    scf.if %2 {
      %cst_9 = arith.constant 0.000000e+00 : f32
      %12 = vector.broadcast %cst_9 : f32 to vector<2x128xf32>
      %c0_10 = arith.constant 0 : index
      %c0_11 = arith.constant 0 : index
      %13 = vector.load %arg7[%c0_10, %c0_11] : memref<2x128xf32, #tpu.memory_space<vmem>>, vector<2x128xf32>
      tpu.vector_store %arg7[%c0_10, %c0_11], %12 {strides = array<i32>} : memref<2x128xf32, #tpu.memory_space<vmem>>, vector<2x128xf32>,
    } else {
    }
    %c0 = arith.constant 0 : index
    %c0_1 = arith.constant 0 : index
    %3 = vector.load %arg7[%c0, %c0_1] : memref<2x128xf32, #tpu.memory_space<vmem>>, vector<2x128xf32>
    %c0_2 = arith.constant 0 : index
    %c0_3 = arith.constant 0 : index
    %4 = vector.load %arg1[%c0_2, %c0_3] : memref<2x2304xbf16, #tpu.memory_space<vmem>>, vector<2x2304xbf16>
    %c0_4 = arith.constant 0 : index
    %c0_5 = arith.constant 0 : index
    %5 = vector.load %arg2[%c0_4, %c0_5] : memref<2304x128xbf16, #tpu.memory_space<vmem>>, vector<2304x128xbf16>
    %cst = arith.constant dense<0.000000e+00> : vector<2x128xf32>
    %6 = tpu.matmul %4, %5, %cst {dimension_numbers = #tpu.dot_dimension_numbers<[1], [0], [0], [1], [0, 0, 1, 1], [], []>} : vector<2x2304xbf16>, vector<2304x128xbf16>, vector<2x128xf32> -> vector<2x128xf32>
    %7 = arith.addf %3, %6 : vector<2x128xf32>
    %c0_6 = arith.constant 0 : index
    %c0_7 = arith.constant 0 : index
    %8 = vector.load %arg7[%c0_6, %c0_7] : memref<2x128xf32, #tpu.memory_space<vmem>>, vector<2x128xf32>
    tpu.vector_store %arg7[%c0_6, %c0_7], %7 {strides = array<i32>} : memref<2x128xf32, #tpu.memory_space<vmem>>, vector<2x128xf32>,
    %c3_i32 = arith.constant 3 : i32
    %9 = arith.cmpi eq, %arg0, %c3_i32 : i32
    %10 = arith.extui %9 : i1 to i32
    %c0_i32_8 = arith.constant 0 : i32
    %11 = arith.cmpi ne, %10, %c0_i32_8 : i32
    scf.if %11 {
      %c0_9 = arith.constant 0 : index
      %c0_10 = arith.constant 0 : index
      %12 = vector.load %arg7[%c0_9, %c0_10] : memref<2x128xf32, #tpu.memory_space<vmem>>, vector<2x128xf32>
      %c0_11 = arith.constant 0 : index
      %c0_12 = arith.constant 0 : index
      %13 = vector.load %arg3[%c0_11, %c0_12] : memref<1x128xf32, #tpu.memory_space<vmem>>, vector<1x128xf32>
      %14 = vector.broadcast %13 : vector<1x128xf32> to vector<2x128xf32>
      %15 = arith.addf %12, %14 : vector<2x128xf32>
      %cst_13 = arith.constant 0.000000e+00 : f32
      %16 = vector.broadcast %cst_13 : f32 to vector<2x128xf32>
      %17 = arith.maximumf %15, %16 : vector<2x128xf32>
      %18 = arith.truncf %17 : vector<2x128xf32> to vector<2x128xbf16>
      %c0_14 = arith.constant 0 : index
      %c0_15 = arith.constant 0 : index
      %19 = vector.load %arg4[%c0_14, %c0_15] : memref<128x10xbf16, #tpu.memory_space<vmem>>, vector<128x10xbf16>
      %cst_16 = arith.constant dense<0.000000e+00> : vector<2x10xf32>
      %20 = tpu.matmul %18, %19, %cst_16 {dimension_numbers = #tpu.dot_dimension_numbers<[1], [0], [0], [1], [0, 0, 1, 1], [], []>} : vector<2x128xbf16>, vector<128x10xbf16>, vector<2x10xf32> -> vector<2x10xf32>
      %c0_17 = arith.constant 0 : index
      %c0_18 = arith.constant 0 : index
      %21 = vector.load %arg5[%c0_17, %c0_18] : memref<1x10xf32, #tpu.memory_space<vmem>>, vector<1x10xf32>
      %22 = vector.broadcast %21 : vector<1x10xf32> to vector<2x10xf32>
      %23 = arith.addf %20, %22 : vector<2x10xf32>
      %cst_19 = arith.constant dense<0xFF800000> : vector<2xf32>
      %24 = vector.multi_reduction <maximumf>, %23, %cst_19 [1] : vector<2x10xf32> to vector<2xf32>
      %25 = vector.shape_cast %24 : vector<2xf32> to vector<2x1xf32>
      %26 = vector.broadcast %25 : vector<2x1xf32> to vector<2x10xf32>
      %27 = arith.subf %23, %26 : vector<2x10xf32>
      %28 = math.exp %27 : vector<2x10xf32>
      %cst_20 = arith.constant dense<0.000000e+00> : vector<2xf32>
      %29 = vector.multi_reduction <add>, %28, %cst_20 [1] : vector<2x10xf32> to vector<2xf32>
      %30 = vector.shape_cast %29 : vector<2xf32> to vector<2x1xf32>
      %31 = math.log %30 : vector<2x1xf32>
      %32 = vector.broadcast %31 : vector<2x1xf32> to vector<2x10xf32>
      %33 = arith.subf %27, %32 : vector<2x10xf32>
      %c0_21 = arith.constant 0 : index
      %c0_22 = arith.constant 0 : index
      %34 = vector.load %arg6[%c0_21, %c0_22] : memref<2x10xf32, #tpu.memory_space<vmem>>, vector<2x10xf32>
      tpu.vector_store %arg6[%c0_21, %c0_22], %33 {strides = array<i32>} : memref<2x10xf32, #tpu.memory_space<vmem>>, vector<2x10xf32>,
    } else {
    }
    return
  }
  func.func @transform_0(%arg0: i32) -> (i32, i32) {
    %c0_i32 = arith.constant 0 : i32
    %c0_i32_0 = arith.constant 0 : i32
    return %c0_i32, %arg0 : i32, i32
  }
  func.func @transform_1(%arg0: i32) -> (i32, i32) {
    %c0_i32 = arith.constant 0 : i32
    %c0_i32_0 = arith.constant 0 : i32
    return %arg0, %c0_i32 : i32, i32
  }
  func.func @transform_2(%arg0: i32) -> (i32, i32) {
    %c0_i32 = arith.constant 0 : i32
    %c0_i32_0 = arith.constant 0 : i32
    %c0_i32_1 = arith.constant 0 : i32
    return %c0_i32, %c0_i32_0 : i32, i32
  }
  func.func @transform_3(%arg0: i32) -> (i32, i32) {
    %c0_i32 = arith.constant 0 : i32
    %c0_i32_0 = arith.constant 0 : i32
    %c0_i32_1 = arith.constant 0 : i32
    return %c0_i32, %c0_i32_0 : i32, i32
  }
  func.func @transform_4(%arg0: i32) -> (i32, i32) {
    %c0_i32 = arith.constant 0 : i32
    %c0_i32_0 = arith.constant 0 : i32
    %c0_i32_1 = arith.constant 0 : i32
    return %c0_i32, %c0_i32_0 : i32, i32
  }
  func.func @transform_5(%arg0: i32) -> (i32, i32) {
    %c0_i32 = arith.constant 0 : i32
    %c0_i32_0 = arith.constant 0 : i32
    %c0_i32_1 = arith.constant 0 : i32
    return %c0_i32, %c0_i32_0 : i32, i32
  }
}

</mosaic_0001>

<llo_original>
// kernel: net_forward.3
$region0: #{net_forward.3}
  #allocation0 [shape = 'u32[]', space=smem, size = 0x4, offset = 0x4, fixed_abs, tag = 'smem constant byte address 0x4 - core index']
  #allocation1 [shape = 'u32[144,128]{1,0:T(1,128)}', space=vmem, size = 0x12000, scoped, tag = 'internal scratch']
  %s0 = inlined_call_operand.vmem [shape: bf16[384,64], index: 0, kind: input, shape index: {}]
  %s1 = inlined_call_operand.vmem [shape: bf16[64,128], index: 1, kind: input, shape index: {}]
  %s2 = inlined_call_operand.vmem [shape: f32[1,128], index: 2, kind: input, shape index: {}]
  %s3 = inlined_call_operand.vmem [shape: bf16[384,128], index: 3, kind: output, shape index: {}]
  %s4 = sld [smem:[#allocation0]]
  $region45: #{net_forward.3} parent=0
    _
  %s6 = ssub.s32 1, %s4
  %s7 = scalar_select 0, %s6, %s4
  loop: start=0, step=1, limit=5
  $region2: #{net_forward.3} parent=0 // loop_pre_header
    _
  $region3: #{net_forward.3} parent=0 // loop_header
    %s9 = sphi 0, %s13
    %p10 = scmp.ge.s32.totalorder %s9, 5
    %s19 = sphi 0, %s21
    %s22 = sphi 0, %s19
    %s23 = sphi 0, %s22
    %s39 = sphi 0, %s23
    %s43 = sphi 0, %s43
    %s45 = sphi 0, %s43
    %s46 = sphi 0, %s45
    %s60 = sphi 0, %s46
    %s64 = sphi 0, %s64
    %s66 = sphi 0, %s64
    %s67 = sphi 0, %s66
    %s81 = sphi 0, %s67
    %s87 = sphi 0, %s89
    %s90 = sphi 0, %s87
    %s91 = sphi 0, %s90
    %s107 = sphi 0, %s91
  $region4: #{net_forward.3} parent=0 // loop_header_branch
    %12 = sbr.rel (%p10) target = $region8
  $region5: #{net_forward.3} parent=0 // loop_body
    %s14 = ssub.s32 %s9, 1
    %s15 = ssub.s32 %s9, 2
    %s16 = sadd.s32 %s9, 1
    %s17 = ssub.s32 %s9, %s16
    %p18 = scmp.eq.s32.totalorder %s17, 0
    %s20 = sadd.s32 %s19, 1
    %s21 = scalar_select %p18, %s19, %s20
    %p24 = pneg %p18
    %p25 = scmp.eq.s32.totalorder %s9, 2
    %p26 = por %p24, %p25
    %p27 = scmp.ne.s32.totalorder %s19, %s22
    %p28 = scmp.eq.s32.totalorder %s9, 0
    %p29 = por %p27, %p28
    %p30 = scmp.ne.s32.totalorder %s19, %s22
    %p31 = scmp.eq.s32.totalorder %s14, 2
    %p32 = por %p30, %p31
    %p33 = scmp.ne.s32.totalorder %s22, %s23
    %p34 = scmp.eq.s32.totalorder %s14, 0
    %p35 = por %p33, %p34
    %p36 = scmp.ne.s32.totalorder %s22, %s23
    %p37 = scmp.eq.s32.totalorder %s15, 2
    %p38 = por %p36, %p37
    %p40 = scmp.ne.s32.totalorder %s23, %s39
    %p41 = scmp.eq.s32.totalorder %s15, 0
    %p42 = por %p40, %p41
    %s44 = sadd.s32 %s43, 1
    %p47 = scmp.eq.s32.totalorder %s9, 2
    %p48 = scmp.ne.s32.totalorder %s43, %s45
    %p49 = scmp.eq.s32.totalorder %s9, 0
    %p50 = por %p48, %p49
    %p51 = scmp.ne.s32.totalorder %s43, %s45
    %p52 = scmp.eq.s32.totalorder %s14, 2
    %p53 = por %p51, %p52
    %p54 = scmp.ne.s32.totalorder %s45, %s46
    %p55 = scmp.eq.s32.totalorder %s14, 0
    %p56 = por %p54, %p55
    %p57 = scmp.ne.s32.totalorder %s45, %s46
    %p58 = scmp.eq.s32.totalorder %s15, 2
    %p59 = por %p57, %p58
    %p61 = scmp.ne.s32.totalorder %s46, %s60
    %p62 = scmp.eq.s32.totalorder %s15, 0
    %p63 = por %p61, %p62
    %s65 = sadd.s32 %s64, 1
    %p68 = scmp.eq.s32.totalorder %s9, 2
    %p69 = scmp.ne.s32.totalorder %s64, %s66
    %p70 = scmp.eq.s32.totalorder %s9, 0
    %p71 = por %p69, %p70
    %p72 = scmp.ne.s32.totalorder %s64, %s66
    %p73 = scmp.eq.s32.totalorder %s14, 2
    %p74 = por %p72, %p73
    %p75 = scmp.ne.s32.totalorder %s66, %s67
    %p76 = scmp.eq.s32.totalorder %s14, 0
    %p77 = por %p75, %p76
    %p78 = scmp.ne.s32.totalorder %s66, %s67
    %p79 = scmp.eq.s32.totalorder %s15, 2
    %p80 = por %p78, %p79
    %p82 = scmp.ne.s32.totalorder %s67, %s81
    %p83 = scmp.eq.s32.totalorder %s15, 0
    %p84 = por %p82, %p83
    %s85 = ssub.s32 %s9, %s16
    %p86 = scmp.eq.s32.totalorder %s85, 0
    %s88 = sadd.s32 %s87, 1
    %s89 = scalar_select %p86, %s87, %s88
    %p92 = pneg %p86
    %p93 = scmp.eq.s32.totalorder %s9, 2
    %p94 = por %p92, %p93
    %p95 = scmp.ne.s32.totalorder %s87, %s90
    %p96 = scmp.eq.s32.totalorder %s9, 0
    %p97 = por %p95, %p96
    %p98 = scmp.ne.s32.totalorder %s87, %s90
    %p99 = scmp.eq.s32.totalorder %s14, 2
    %p100 = por %p98, %p99
    %p101 = scmp.ne.s32.totalorder %s90, %s91
    %p102 = scmp.eq.s32.totalorder %s14, 0
    %p103 = por %p101, %p102
    %p104 = scmp.ne.s32.totalorder %s90, %s91
    %p105 = scmp.eq.s32.totalorder %s15, 2
    %p106 = por %p104, %p105
    %p108 = scmp.ne.s32.totalorder %s91, %s107
    %p109 = scmp.eq.s32.totalorder %s15, 0
    %p110 = por %p108, %p109
    %p111 = scmp.le.s32.totalorder 1, %s9
    %p112 = scmp.lt.s32.totalorder %s9, 4
    %p113 = pnand %p111, %p112
    %p114 = pneg %p113
    // Predicated region
    $region9: #{net_forward.3} parent=5 // pred_check
      _
    $region10: #{net_forward.3} parent=5 // pred_check_branch
      %116 = sbr.rel (%p113) target = $region12
    $region11: #{net_forward.3} parent=5 // pred_region
      %s117 = ssub.s32 %s9, 1
      // Predicated region
      $region13: #{net_forward.3} parent=11 // pred_check
        %p118 = pneg %p56
      $region14: #{net_forward.3} parent=11 // pred_check_branch
        %120 = sbr.rel (%p118) target = $region16
      $region15: #{net_forward.3} parent=11 // pred_region
        _
      $region16: #{net_forward.3} parent=11 // pred_fallthru
        _
      // Predicated region
      $region17: #{net_forward.3} parent=11 // pred_check
        %p121 = pneg %p77
      $region18: #{net_forward.3} parent=11 // pred_check_branch
        %123 = sbr.rel (%p121) target = $region20
      $region19: #{net_forward.3} parent=11 // pred_region
        _
      $region20: #{net_forward.3} parent=11 // pred_fallthru
        _
    $region12: #{net_forward.3} parent=5 // pred_fallthru
      _
    %p124 = scmp.lt.s32.totalorder %s9, 3
    // Predicated region
    $region21: #{net_forward.3} parent=5 // pred_check
      %p125 = pneg %p124
    $region22: #{net_forward.3} parent=5 // pred_check_branch
      %127 = sbr.rel (%p125) target = $region24
    $region23: #{net_forward.3} parent=5 // pred_region
      // Predicated region
      $region25: #{net_forward.3} parent=23 // pred_check
        %p128 = pneg %p29
      $region26: #{net_forward.3} parent=23 // pred_check_branch
        %130 = sbr.rel (%p128) target = $region28
      $region27: #{net_forward.3} parent=23 // pred_region
        %s131 = smul.u32 16, %s9
        %p132 = scmp.lt.s32.totalorder %s131, 47
        %s133 = scalar_select %p132, %s131, 47
        %s134 = smul.addr %s133, 4
        %s135 = scalar_lea.vmem %s0, %s134
        %s136 = smul.u32 16, %s9
      $region28: #{net_forward.3} parent=23 // pred_fallthru
        _
    $region24: #{net_forward.3} parent=5 // pred_fallthru
      _
    %p137 = scmp.le.s32.totalorder 1, %s9
    %p138 = scmp.lt.s32.totalorder %s9, 4
    %p139 = pnand %p137, %p138
    %p140 = pneg %p139
    // Predicated region
    $region29: #{net_forward.3} parent=5 // pred_check
      _
    $region30: #{net_forward.3} parent=5 // pred_check_branch
      %142 = sbr.rel (%p139) target = $region32
    $region31: #{net_forward.3} parent=5 // pred_region
      %s143 = ssub.s32 %s9, 1
      %s144 = smul.u32 16, %s14
      %p145 = scmp.lt.s32.totalorder %s144, 47
      %s146 = scalar_select %p145, %s144, 47
      %s147 = smul.addr %s146, 4
      %s148 = scalar_lea.vmem %s0, %s147
      %p149 = pneg %p35
      %p150 = pneg %p32
      %p151 = pneg %p56
      %p152 = pneg %p53
      %p153 = pneg %p77
      %p154 = pneg %p74
      %p155 = pneg %p103
      %p156 = pneg %p100
      %s157 = smul.u32 16, %s14
      %p158 = scmp.lt.s32.totalorder %s157, 47
      %s159 = scalar_select %p158, %s157, 47
      %s160 = smul.addr %s159, 4
      %s161 = scalar_lea.vmem %s3, %s160
      %s162 = smul.u32 16, %s14
      %p163 = scmp.lt.s32.totalorder %s162, 47
      %s164 = scalar_select %p163, %s162, 47
      %s165 = smul.addr %s164, 4
      %s166 = scalar_lea.vmem %s0, %s165
      %s167 = smul.u32 16, %s14
      %s168 = smul.u32 16, %s14
      %p169 = scmp.lt.s32.totalorder %s168, 47
      %s170 = scalar_select %p169, %s168, 47
      %s171 = smul.addr %s170, 4
      %s172 = scalar_lea.vmem %s3, %s171
      %s173 = smul.u32 16, %s14
      %v175 = vld [vmem:[%s166] sm:$0xf]
      %v176 = vld [vmem:[%s166 + $0x4] sm:$0xf]
      %v177 = vld [vmem:[%s166 + $0x8] sm:$0xf]
      %v178 = vld [vmem:[%s166 + $0xc] sm:$0xf]
      %v179 = vld [vmem:[%s166 + $0x10] sm:$0xf]
      %v180 = vld [vmem:[%s166 + $0x14] sm:$0xf]
      %v181 = vld [vmem:[%s166 + $0x18] sm:$0xf]
      %v182 = vld [vmem:[%s166 + $0x1c] sm:$0xf]
      %v183 = vld [vmem:[%s166 + $0x20] sm:$0xf]
      %v184 = vld [vmem:[%s166 + $0x24] sm:$0xf]
      %v185 = vld [vmem:[%s166 + $0x28] sm:$0xf]
      %v186 = vld [vmem:[%s166 + $0x2c] sm:$0xf]
      %v187 = vld [vmem:[%s166 + $0x30] sm:$0xf]
      %v188 = vld [vmem:[%s166 + $0x34] sm:$0xf]
      %v189 = vld [vmem:[%s166 + $0x38] sm:$0xf]
      %v190 = vld [vmem:[%s166 + $0x3c] sm:$0xf]
      %v191 = vld [vmem:[%s1] sm:$0xf]
      %v192 = vld [vmem:[%s1 + $0x4] sm:$0xf]
      %v193 = vld [vmem:[%s1 + $0x8] sm:$0xf]
      %v194 = vld [vmem:[%s1 + $0xc] sm:$0xf]
      %v195 = vld [vmem:[%s1 + $0x10] sm:$0xf]
      %v196 = vld [vmem:[%s1 + $0x14] sm:$0xf]
      %v197 = vld [vmem:[%s1 + $0x18] sm:$0xf]
      %v198 = vld [vmem:[%s1 + $0x1c] sm:$0xf]
      %v199 = vld [vmem:[%s2] sm:$0x1]
      %v201 = vlaneseq
      %v202 = vshrl.u32 %v201, 7
      %v203 = vsub.s32 0, %v202
      %v204 = vrot.slane %v199, %v203
      %v222 = vunpack.c.l.b16 %v175
      %v223 = vunpack.c.l.b16 %v176
      %v224 = vunpack.c.l.b16 %v177
      %v225 = vunpack.c.l.b16 %v178
      %v226 = vunpack.c.l.b16 %v179
      %v227 = vunpack.c.l.b16 %v180
      %v228 = vunpack.c.l.b16 %v181
      %v229 = vunpack.c.l.b16 %v182
      %v230 = vunpack.c.l.b16 %v183
      %v231 = vunpack.c.l.b16 %v184
      %v232 = vunpack.c.l.b16 %v185
      %v233 = vunpack.c.l.b16 %v186
      %v234 = vunpack.c.l.b16 %v187
      %v235 = vunpack.c.l.b16 %v188
      %v236 = vunpack.c.l.b16 %v189
      %v237 = vunpack.c.l.b16 %v190
      %v238 = vpack.c.b16 %v223, %v222
      %v239 = vpack.c.b16 %v225, %v224
      %v240 = vpack.c.b16 %v227, %v226
      %v241 = vpack.c.b16 %v229, %v228
      %v242 = vpack.c.b16 %v231, %v230
      %v243 = vpack.c.b16 %v233, %v232
      %v244 = vpack.c.b16 %v235, %v234
      %v245 = vpack.c.b16 %v237, %v236
      %v254 = vunpack.c.l.b16 %v191
      %v255 = vunpack.c.l.b16 %v192
      %v256 = vunpack.c.l.b16 %v193
      %v257 = vunpack.c.l.b16 %v194
      %v258 = vunpack.c.l.b16 %v195
      %v259 = vunpack.c.l.b16 %v196
      %v260 = vunpack.c.l.b16 %v197
      %v261 = vunpack.c.l.b16 %v198
      %v262 = vpack.c.b16 %v255, %v254
      %v263 = vpack.c.b16 %v257, %v256
      %v264 = vpack.c.b16 %v259, %v258
      %v265 = vpack.c.b16 %v261, %v260
      %vm270 = vcmask 523264
      %v272 = vsel %vm270, %v238, 0
      %v275 = vsel %vm270, %v239, 0
      %v278 = vsel %vm270, %v240, 0
      %v281 = vsel %vm270, %v241, 0
      %v284 = vsel %vm270, %v242, 0
      %v287 = vsel %vm270, %v243, 0
      %v290 = vsel %vm270, %v244, 0
      %v293 = vsel %vm270, %v245, 0
      %295 = vmatprep.subr.bf16.mxu0 0
      %296 = vmatpush1.bf16.msra.mxu0 %v262
      %297 = vmatprep.subr.bf16.mxu0 0
      %298 = vmatpush1.bf16.msra.mxu0 %v263
      %299 = vmatprep.subr.bf16.mxu0 0
      %300 = vmatpush1.bf16.msra.mxu0 %v264
      %301 = vmatprep.subr.bf16.mxu0 0
      %302 = vmatpush1.bf16.msra.mxu0 %v265
      %303 = vmatprep.subr.bf16.mxu0 0
      %304 = vmatpush1.bf16.msra.mxu0 0
      %305 = vmatprep.subr.bf16.mxu0 0
      %306 = vmatpush1.bf16.msra.mxu0 0
      %307 = vmatprep.subr.bf16.mxu0 0
      %308 = vmatpush1.bf16.msra.mxu0 0
      %309 = vmatprep.subr.bf16.mxu0 0
      %310 = vmatpush1.bf16.msra.mxu0 0
      %311 = vmatprep.subr.bf16.mxu0 0
      %312 = vmatpush1.bf16.msra.mxu0 0
      %313 = vmatprep.subr.bf16.mxu0 0
      %314 = vmatpush1.bf16.msra.mxu0 0
      %315 = vmatprep.subr.bf16.mxu0 0
      %316 = vmatpush1.bf16.msra.mxu0 0
      %317 = vmatprep.subr.bf16.mxu0 0
      %318 = vmatpush1.bf16.msra.mxu0 0
      %319 = vmatprep.subr.bf16.mxu0 0
      %320 = vmatpush1.bf16.msra.mxu0 0
      %321 = vmatprep.subr.bf16.mxu0 0
      %322 = vmatpush1.bf16.msra.mxu0 0
      %323 = vmatprep.subr.bf16.mxu0 0
      %324 = vmatpush1.bf16.msra.mxu0 0
      %325 = vmatprep.subr.bf16.mxu0 0
      %326 = vmatpush1.bf16.msra.mxu0 0
      %327 = vmatprep.mubr.bf16.mxu0 0
      %328 = vmatmul.mubr.bf16.gmra.mrb[0].mxu0 %v272
      %v329 = vpop.f32.mrb[0].mxu0
      %v330 = vadd.f32 %v204, %v329
      %v331 = vpop.f32.mrb[0].mxu0
      %v332 = vpop.f32.mrb[0].mxu0
      %v333 = vadd.f32 %v204, %v332
      %v334 = vpop.f32.mrb[0].mxu0
      %335 = vmatprep.mubr.bf16.mxu0 0
      %336 = vmatmul.mubr.bf16.gmra.mrb[0].mxu0 %v275
      %v337 = vpop.f32.mrb[0].mxu0
      %v338 = vadd.f32 %v204, %v337
      %v339 = vpop.f32.mrb[0].mxu0
      %v340 = vpop.f32.mrb[0].mxu0
      %v341 = vadd.f32 %v204, %v340
      %v342 = vpop.f32.mrb[0].mxu0
      %343 = vmatprep.mubr.bf16.mxu0 0
      %344 = vmatmul.mubr.bf16.gmra.mrb[0].mxu0 %v278
      %v345 = vpop.f32.mrb[0].mxu0
      %v346 = vadd.f32 %v204, %v345
      %v347 = vpop.f32.mrb[0].mxu0
      %v348 = vpop.f32.mrb[0].mxu0
      %v349 = vadd.f32 %v204, %v348
      %v350 = vpop.f32.mrb[0].mxu0
      %351 = vmatprep.mubr.bf16.mxu0 0
      %352 = vmatmul.mubr.bf16.gmra.mrb[0].mxu0 %v281
      %v353 = vpop.f32.mrb[0].mxu0
      %v354 = vadd.f32 %v204, %v353
      %v355 = vpop.f32.mrb[0].mxu0
      %v356 = vpop.f32.mrb[0].mxu0
      %v357 = vadd.f32 %v204, %v356
      %v358 = vpop.f32.mrb[0].mxu0
      %359 = vmatprep.mubr.bf16.mxu0 0
      %360 = vmatmul.mubr.bf16.gmra.mrb[0].mxu0 %v284
      %v361 = vpop.f32.mrb[0].mxu0
      %v362 = vadd.f32 %v204, %v361
      %v363 = vpop.f32.mrb[0].mxu0
      %v364 = vpop.f32.mrb[0].mxu0
      %v365 = vadd.f32 %v204, %v364
      %v366 = vpop.f32.mrb[0].mxu0
      %367 = vmatprep.mubr.bf16.mxu0 0
      %368 = vmatmul.mubr.bf16.gmra.mrb[0].mxu0 %v287
      %v369 = vpop.f32.mrb[0].mxu0
      %v370 = vadd.f32 %v204, %v369
      %v371 = vpop.f32.mrb[0].mxu0
      %v372 = vpop.f32.mrb[0].mxu0
      %v373 = vadd.f32 %v204, %v372
      %v374 = vpop.f32.mrb[0].mxu0
      %375 = vmatprep.mubr.bf16.mxu0 0
      %376 = vmatmul.mubr.bf16.gmra.mrb[0].mxu0 %v290
      %v377 = vpop.f32.mrb[0].mxu0
      %v378 = vadd.f32 %v204, %v377
      %v379 = vpop.f32.mrb[0].mxu0
      %v380 = vpop.f32.mrb[0].mxu0
      %v381 = vadd.f32 %v204, %v380
      %v382 = vpop.f32.mrb[0].mxu0
      %383 = vmatprep.mubr.bf16.mxu0 0
      %384 = vmatmul.mubr.bf16.gmra.mrb[0].mxu0 %v293
      %v385 = vpop.f32.mrb[0].mxu0
      %v386 = vadd.f32 %v204, %v385
      %v387 = vpop.f32.mrb[0].mxu0
      %v388 = vpop.f32.mrb[0].mxu0
      %v389 = vadd.f32 %v204, %v388
      %v390 = vpop.f32.mrb[0].mxu0
      %391 = vdwg.mxu0
      %v392 = vmax.f32 %v330, 0.0
      %v393 = vmax.f32 %v333, 0.0
      %v394 = vmax.f32 %v338, 0.0
      %v395 = vmax.f32 %v341, 0.0
      %v396 = vmax.f32 %v346, 0.0
      %v397 = vmax.f32 %v349, 0.0
      %v398 = vmax.f32 %v354, 0.0
      %v399 = vmax.f32 %v357, 0.0
      %v400 = vmax.f32 %v362, 0.0
      %v401 = vmax.f32 %v365, 0.0
      %v402 = vmax.f32 %v370, 0.0
      %v403 = vmax.f32 %v373, 0.0
      %v404 = vmax.f32 %v378, 0.0
      %v405 = vmax.f32 %v381, 0.0
      %v406 = vmax.f32 %v386, 0.0
      %v407 = vmax.f32 %v389, 0.0
      %v408 = vpack.c.bf16 %v393, %v392
      %v409 = vpack.c.bf16 %v395, %v394
      %v410 = vpack.c.bf16 %v397, %v396
      %v411 = vpack.c.bf16 %v399, %v398
      %v412 = vpack.c.bf16 %v401, %v400
      %v413 = vpack.c.bf16 %v403, %v402
      %v414 = vpack.c.bf16 %v405, %v404
      %v415 = vpack.c.bf16 %v407, %v406
      %v424 = vunpack.c.l.b16 %v408
      %v425 = vunpack.c.h.b16 %v408
      %v426 = vunpack.c.l.b16 %v409
      %v427 = vunpack.c.h.b16 %v409
      %v428 = vunpack.c.l.b16 %v410
      %v429 = vunpack.c.h.b16 %v410
      %v430 = vunpack.c.l.b16 %v411
      %v431 = vunpack.c.h.b16 %v411
      %v432 = vunpack.c.l.b16 %v412
      %v433 = vunpack.c.h.b16 %v412
      %v434 = vunpack.c.l.b16 %v413
      %v435 = vunpack.c.h.b16 %v413
      %v436 = vunpack.c.l.b16 %v414
      %v437 = vunpack.c.h.b16 %v414
      %v438 = vunpack.c.l.b16 %v415
      %v439 = vunpack.c.h.b16 %v415
      %v440 = vpack.c.b16 %v424, %v424
      %v441 = vpack.c.b16 %v425, %v425
      %v442 = vpack.c.b16 %v426, %v426
      %v443 = vpack.c.b16 %v427, %v427
      %v444 = vpack.c.b16 %v428, %v428
      %v445 = vpack.c.b16 %v429, %v429
      %v446 = vpack.c.b16 %v430, %v430
      %v447 = vpack.c.b16 %v431, %v431
      %v448 = vpack.c.b16 %v432, %v432
      %v449 = vpack.c.b16 %v433, %v433
      %v450 = vpack.c.b16 %v434, %v434
      %v451 = vpack.c.b16 %v435, %v435
      %v452 = vpack.c.b16 %v436, %v436
      %v453 = vpack.c.b16 %v437, %v437
      %v454 = vpack.c.b16 %v438, %v438
      %v455 = vpack.c.b16 %v439, %v439
      %472 = vst [vmem:[%s172] sm:$0xf] %v440
      %473 = vst [vmem:[%s172 + $0x4] sm:$0xf] %v441
      %474 = vst [vmem:[%s172 + $0x8] sm:$0xf] %v442
      %475 = vst [vmem:[%s172 + $0xc] sm:$0xf] %v443
      %476 = vst [vmem:[%s172 + $0x10] sm:$0xf] %v444
      %477 = vst [vmem:[%s172 + $0x14] sm:$0xf] %v445
      %478 = vst [vmem:[%s172 + $0x18] sm:$0xf] %v446
      %479 = vst [vmem:[%s172 + $0x1c] sm:$0xf] %v447
      %480 = vst [vmem:[%s172 + $0x20] sm:$0xf] %v448
      %481 = vst [vmem:[%s172 + $0x24] sm:$0xf] %v449
      %482 = vst [vmem:[%s172 + $0x28] sm:$0xf] %v450
      %483 = vst [vmem:[%s172 + $0x2c] sm:$0xf] %v451
      %484 = vst [vmem:[%s172 + $0x30] sm:$0xf] %v452
      %485 = vst [vmem:[%s172 + $0x34] sm:$0xf] %v453
      %486 = vst [vmem:[%s172 + $0x38] sm:$0xf] %v454
      %487 = vst [vmem:[%s172 + $0x3c] sm:$0xf] %v455
      %s488 = smul.u32 16, %s14
      %p489 = scmp.lt.s32.totalorder %s488, 47
      %s490 = scalar_select %p489, %s488, 47
      %s491 = smul.addr %s490, 4
      %s492 = scalar_lea.vmem %s3, %s491
      // Predicated region
      $region33: #{net_forward.3} parent=31 // pred_check
        %p493 = pneg %p100
      $region34: #{net_forward.3} parent=31 // pred_check_branch
        %495 = sbr.rel (%p493) target = $region36
      $region35: #{net_forward.3} parent=31 // pred_region
        %s496 = smul.u32 16, %s14
      $region36: #{net_forward.3} parent=31 // pred_fallthru
        _
    $region32: #{net_forward.3} parent=5 // pred_fallthru
      _
    %p497 = scmp.le.s32.totalorder 2, %s9
    // Predicated region
    $region37: #{net_forward.3} parent=5 // pred_check
      %p498 = pneg %p497
    $region38: #{net_forward.3} parent=5 // pred_check_branch
      %500 = sbr.rel (%p498) target = $region40
    $region39: #{net_forward.3} parent=5 // pred_region
      %s501 = ssub.s32 %s9, 2
      // Predicated region
      $region41: #{net_forward.3} parent=39 // pred_check
        %p502 = pneg %p106
      $region42: #{net_forward.3} parent=39 // pred_check_branch
        %504 = sbr.rel (%p502) target = $region44
      $region43: #{net_forward.3} parent=39 // pred_region
        %s505 = smul.u32 16, %s15
        %p506 = scmp.lt.s32.totalorder %s505, 47
        %s507 = scalar_select %p506, %s505, 47
        %s508 = smul.addr %s507, 4
        %s509 = scalar_lea.vmem %s3, %s508
      $region44: #{net_forward.3} parent=39 // pred_fallthru
        _
    $region40: #{net_forward.3} parent=5 // pred_fallthru
      _
  $region6: #{net_forward.3} parent=0 // loop_footer
    %s13 = sadd.s32 1, %s9
  $region7: #{net_forward.3} parent=0 // loop_footer_branch
    %8 = sbr.rel target = $region3
  $region8: #{net_forward.3} parent=0 // loop_exit
    _

// kernel: net_forward.4
$region0: #{net_forward.4}
  #allocation0 [shape = 'u32[]', space=smem, size = 0x4, offset = 0x4, fixed_abs, tag = 'smem constant byte address 0x4 - core index']
  #allocation1 [shape = 'u32[144,128]{1,0:T(1,128)}', space=vmem, size = 0x12000, scoped, tag = 'internal scratch']
  #allocation2 [shape = 'f32[24,64]{1,0:T(8,128)}', space=vmem, size = 0x3000, scoped, tag = 'scratch operand']
  %s0 = inlined_call_operand.vmem [shape: bf16[2,26,26,32], index: 0, kind: input, shape index: {}]
  %s1 = inlined_call_operand.vmem [shape: bf16[9,32,64], index: 1, kind: input, shape index: {}]
  %s2 = inlined_call_operand.vmem [shape: f32[1,64], index: 2, kind: input, shape index: {}]
  %s3 = inlined_call_operand.vmem [shape: bf16[2,12,12,64], index: 3, kind: output, shape index: {}]
  %s4 = sld [smem:[#allocation0]]
  $region45: #{net_forward.4} parent=0
    _
  %s6 = ssub.s32 1, %s4
  %s7 = scalar_select 0, %s6, %s4
  loop: start=0, step=1, limit=26
  $region2: #{net_forward.4} parent=0 // loop_pre_header
    _
  $region3: #{net_forward.4} parent=0 // loop_header
    %s9 = sphi 0, %s13
    %p10 = scmp.ge.s32.totalorder %s9, 26
    %s16 = sphi 0, %s28
    %s17 = sphi 0, %s24
    %s18 = sphi 0, %s16
    %s19 = sphi 0, %s17
    %s20 = sphi 0, %s18
    %s21 = sphi 0, %s19
    %s31 = sphi 0, %s33
    %s34 = sphi 0, %s31
    %s35 = sphi 0, %s34
    %s51 = sphi 0, %s35
    %s55 = sphi 0, %s55
    %s57 = sphi 0, %s55
    %s58 = sphi 0, %s57
    %s72 = sphi 0, %s58
    %s76 = sphi 0, %s76
    %s78 = sphi 0, %s76
    %s79 = sphi 0, %s78
    %s93 = sphi 0, %s79
    %s101 = sphi 0, %s103
    %s104 = sphi 0, %s101
    %s105 = sphi 0, %s104
    %s121 = sphi 0, %s105
  $region4: #{net_forward.4} parent=0 // loop_header_branch
    %12 = sbr.rel (%p10) target = $region8
  $region5: #{net_forward.4} parent=0 // loop_body
    %s14 = ssub.s32 %s9, 1
    %s15 = ssub.s32 %s9, 2
    %s22 = sadd.s32 1, %s17
    %p23 = scmp.ge.s32.totalorder %s22, 12
    %s24 = scalar_select %p23, 0, %s22
    %s25 = sadd.s32 1, %s16
    %s26 = scalar_select %p23, %s25, %s16
    %p27 = scmp.ge.s32.totalorder %s26, 2
    %s28 = scalar_select %p27, 0, %s26
    %s29 = ssub.s32 %s16, %s28
    %p30 = scmp.eq.s32.totalorder %s29, 0
    %s32 = sadd.s32 %s31, 1
    %s33 = scalar_select %p30, %s31, %s32
    %p36 = pneg %p30
    %p37 = scmp.eq.s32.totalorder %s9, 23
    %p38 = por %p36, %p37
    %p39 = scmp.ne.s32.totalorder %s31, %s34
    %p40 = scmp.eq.s32.totalorder %s9, 0
    %p41 = por %p39, %p40
    %p42 = scmp.ne.s32.totalorder %s31, %s34
    %p43 = scmp.eq.s32.totalorder %s14, 23
    %p44 = por %p42, %p43
    %p45 = scmp.ne.s32.totalorder %s34, %s35
    %p46 = scmp.eq.s32.totalorder %s14, 0
    %p47 = por %p45, %p46
    %p48 = scmp.ne.s32.totalorder %s34, %s35
    %p49 = scmp.eq.s32.totalorder %s15, 23
    %p50 = por %p48, %p49
    %p52 = scmp.ne.s32.totalorder %s35, %s51
    %p53 = scmp.eq.s32.totalorder %s15, 0
    %p54 = por %p52, %p53
    %s56 = sadd.s32 %s55, 1
    %p59 = scmp.eq.s32.totalorder %s9, 23
    %p60 = scmp.ne.s32.totalorder %s55, %s57
    %p61 = scmp.eq.s32.totalorder %s9, 0
    %p62 = por %p60, %p61
    %p63 = scmp.ne.s32.totalorder %s55, %s57
    %p64 = scmp.eq.s32.totalorder %s14, 23
    %p65 = por %p63, %p64
    %p66 = scmp.ne.s32.totalorder %s57, %s58
    %p67 = scmp.eq.s32.totalorder %s14, 0
    %p68 = por %p66, %p67
    %p69 = scmp.ne.s32.totalorder %s57, %s58
    %p70 = scmp.eq.s32.totalorder %s15, 23
    %p71 = por %p69, %p70
    %p73 = scmp.ne.s32.totalorder %s58, %s72
    %p74 = scmp.eq.s32.totalorder %s15, 0
    %p75 = por %p73, %p74
    %s77 = sadd.s32 %s76, 1
    %p80 = scmp.eq.s32.totalorder %s9, 23
    %p81 = scmp.ne.s32.totalorder %s76, %s78
    %p82 = scmp.eq.s32.totalorder %s9, 0
    %p83 = por %p81, %p82
    %p84 = scmp.ne.s32.totalorder %s76, %s78
    %p85 = scmp.eq.s32.totalorder %s14, 23
    %p86 = por %p84, %p85
    %p87 = scmp.ne.s32.totalorder %s78, %s79
    %p88 = scmp.eq.s32.totalorder %s14, 0
    %p89 = por %p87, %p88
    %p90 = scmp.ne.s32.totalorder %s78, %s79
    %p91 = scmp.eq.s32.totalorder %s15, 23
    %p92 = por %p90, %p91
    %p94 = scmp.ne.s32.totalorder %s79, %s93
    %p95 = scmp.eq.s32.totalorder %s15, 0
    %p96 = por %p94, %p95
    %s97 = ssub.s32 %s16, %s28
    %s98 = ssub.s32 %s17, %s24
    %s99 = sor.u32 %s97, %s98
    %p100 = scmp.eq.s32.totalorder %s99, 0
    %s102 = sadd.s32 %s101, 1
    %s103 = scalar_select %p100, %s101, %s102
    %p106 = pneg %p100
    %p107 = scmp.eq.s32.totalorder %s9, 23
    %p108 = por %p106, %p107
    %p109 = scmp.ne.s32.totalorder %s101, %s104
    %p110 = scmp.eq.s32.totalorder %s9, 0
    %p111 = por %p109, %p110
    %p112 = scmp.ne.s32.totalorder %s101, %s104
    %p113 = scmp.eq.s32.totalorder %s14, 23
    %p114 = por %p112, %p113
    %p115 = scmp.ne.s32.totalorder %s104, %s105
    %p116 = scmp.eq.s32.totalorder %s14, 0
    %p117 = por %p115, %p116
    %p118 = scmp.ne.s32.totalorder %s104, %s105
    %p119 = scmp.eq.s32.totalorder %s15, 23
    %p120 = por %p118, %p119
    %p122 = scmp.ne.s32.totalorder %s105, %s121
    %p123 = scmp.eq.s32.totalorder %s15, 0
    %p124 = por %p122, %p123
    %p125 = scmp.le.s32.totalorder 1, %s9
    %p126 = scmp.lt.s32.totalorder %s9, 25
    %p127 = pnand %p125, %p126
    %p128 = pneg %p127
    // Predicated region
    $region9: #{net_forward.4} parent=5 // pred_check
      _
    $region10: #{net_forward.4} parent=5 // pred_check_branch
      %130 = sbr.rel (%p127) target = $region12
    $region11: #{net_forward.4} parent=5 // pred_region
      %s131 = ssub.s32 %s9, 1
      // Predicated region
      $region13: #{net_forward.4} parent=11 // pred_check
        %p132 = pneg %p68
      $region14: #{net_forward.4} parent=11 // pred_check_branch
        %134 = sbr.rel (%p132) target = $region16
      $region15: #{net_forward.4} parent=11 // pred_region
        _
      $region16: #{net_forward.4} parent=11 // pred_fallthru
        _
      // Predicated region
      $region17: #{net_forward.4} parent=11 // pred_check
        %p135 = pneg %p89
      $region18: #{net_forward.4} parent=11 // pred_check_branch
        %137 = sbr.rel (%p135) target = $region20
      $region19: #{net_forward.4} parent=11 // pred_region
        _
      $region20: #{net_forward.4} parent=11 // pred_fallthru
        _
    $region12: #{net_forward.4} parent=5 // pred_fallthru
      _
    %p138 = scmp.lt.s32.totalorder %s9, 24
    // Predicated region
    $region21: #{net_forward.4} parent=5 // pred_check
      %p139 = pneg %p138
    $region22: #{net_forward.4} parent=5 // pred_check_branch
      %141 = sbr.rel (%p139) target = $region24
    $region23: #{net_forward.4} parent=5 // pred_region
      // Predicated region
      $region25: #{net_forward.4} parent=23 // pred_check
        %p142 = pneg %p41
      $region26: #{net_forward.4} parent=23 // pred_check_branch
        %144 = sbr.rel (%p142) target = $region28
      $region27: #{net_forward.4} parent=23 // pred_region
        %p145 = scmp.lt.s32.totalorder %s16, 1
        %s146 = scalar_select %p145, %s16, 1
        %s147 = smul.addr %s146, 104
        %s148 = smul.addr %s147, 4
        %s149 = scalar_lea.vmem %s0, %s148
      $region28: #{net_forward.4} parent=23 // pred_fallthru
        _
    $region24: #{net_forward.4} parent=5 // pred_fallthru
      _
    %p150 = scmp.le.s32.totalorder 1, %s9
    %p151 = scmp.lt.s32.totalorder %s9, 25
    %p152 = pnand %p150, %p151
    %p153 = pneg %p152
    // Predicated region
    $region29: #{net_forward.4} parent=5 // pred_check
      _
    $region30: #{net_forward.4} parent=5 // pred_check_branch
      %155 = sbr.rel (%p152) target = $region32
    $region31: #{net_forward.4} parent=5 // pred_region
      %s156 = ssub.s32 %s9, 1
      %p157 = scmp.lt.s32.totalorder %s18, 1
      %s158 = scalar_select %p157, %s18, 1
      %s159 = smul.addr %s158, 104
      %s160 = smul.addr %s159, 4
      %s161 = scalar_lea.vmem %s0, %s160
      %p162 = pneg %p47
      %p163 = pneg %p44
      %p164 = pneg %p68
      %p165 = pneg %p65
      %p166 = pneg %p89
      %p167 = pneg %p86
      %p168 = pneg %p117
      %p169 = pneg %p114
      %p170 = scmp.lt.s32.totalorder %s18, 1
      %s171 = scalar_select %p170, %s18, 1
      %p172 = scmp.lt.s32.totalorder %s19, 11
      %s173 = scalar_select %p172, %s19, 11
      %s174 = smul.addr %s173, 2
      %s175 = smul.addr %s171, 24
      %s176 = sadd.s32 %s174, %s175
      %s177 = smul.addr %s176, 4
      %s178 = scalar_lea.vmem %s3, %s177
      %p179 = scmp.lt.s32.totalorder %s18, 1
      %s180 = scalar_select %p179, %s18, 1
      %s181 = smul.addr %s180, 104
      %s182 = smul.addr %s181, 4
      %s183 = scalar_lea.vmem %s0, %s182
      %p184 = scmp.lt.s32.totalorder %s18, 1
      %s185 = scalar_select %p184, %s18, 1
      %p186 = scmp.lt.s32.totalorder %s19, 11
      %s187 = scalar_select %p186, %s19, 11
      %s188 = smul.addr %s187, 2
      %s189 = smul.addr %s185, 24
      %s190 = sadd.s32 %s188, %s189
      %s191 = smul.addr %s190, 4
      %s192 = scalar_lea.vmem %s3, %s191
      %s194 = smul.u32 %s19, 2
      %s195 = smul.u32 %s194, 4
      %s196 = smul.addr %s195, 4
      %s197 = scalar_lea.vmem %s183, %s196
      %v198 = vld [vmem:[%s197] sm:$0xf]
      %v199 = vld [vmem:[%s197 + $0x4] sm:$0xf]
      %v200 = vld [vmem:[%s197 + $0x8] sm:$0xf]
      %v201 = vld [vmem:[%s197 + $0xc] sm:$0x1]
      %s202 = sadd.s32 %s194, 1
      %s203 = smul.u32 %s202, 4
      %s204 = smul.addr %s203, 4
      %s205 = scalar_lea.vmem %s183, %s204
      %v206 = vld [vmem:[%s205] sm:$0xf]
      %v207 = vld [vmem:[%s205 + $0x4] sm:$0xf]
      %v208 = vld [vmem:[%s205 + $0x8] sm:$0xf]
      %v209 = vld [vmem:[%s205 + $0xc] sm:$0x1]
      %s210 = sadd.s32 %s194, 2
      %s211 = smul.u32 %s210, 4
      %s212 = smul.addr %s211, 4
      %s213 = scalar_lea.vmem %s183, %s212
      %v214 = vld [vmem:[%s213] sm:$0xf]
      %v215 = vld [vmem:[%s213 + $0x4] sm:$0xf]
      %v216 = vld [vmem:[%s213 + $0x8] sm:$0xf]
      %v217 = vld [vmem:[%s213 + $0xc] sm:$0x1]
      %s218 = sadd.s32 %s194, 3
      %s219 = smul.u32 %s218, 4
      %s220 = smul.addr %s219, 4
      %s221 = scalar_lea.vmem %s183, %s220
      %v222 = vld [vmem:[%s221] sm:$0xf]
      %v223 = vld [vmem:[%s221 + $0x4] sm:$0xf]
      %v224 = vld [vmem:[%s221 + $0x8] sm:$0xf]
      %v225 = vld [vmem:[%s221 + $0xc] sm:$0x1]
      %v226 = vld [vmem:[%s1] sm:$0xf]
      %v227 = vld [vmem:[%s1 + $0x4] sm:$0xf]
      %v228 = vld [vmem:[%s1 + $0x8] sm:$0xf]
      %v229 = vld [vmem:[%s1 + $0xc] sm:$0xf]
      %s230 = scalar_lea.vmem %s1, 16
      %v231 = vld [vmem:[%s230] sm:$0xf]
      %v232 = vld [vmem:[%s230 + $0x4] sm:$0xf]
      %v233 = vld [vmem:[%s230 + $0x8] sm:$0xf]
      %v234 = vld [vmem:[%s230 + $0xc] sm:$0xf]
      %v239 = vunpack.c.l.b16 %v198
      %v240 = vunpack.c.l.b16 %v199
      %v241 = vunpack.c.l.b16 %v200
      %v242 = vunpack.c.l.b16 %v201
      %v243 = vpack.c.b16 %v240, %v239
      %v244 = vpack.c.b16 %v242, %v241
      %vm245 = vsmask.f32 7424
      %v247 = vshrl.u32 %v243, 16
      %v249 = vshll.u32 %v243, 16
      %v251 = vrot.slane %v249, 1
      %v252 = vor.u32 %v247, %v251
      %v254 = vshll.u32 %v244, 16
      %v256 = vrot.slane %v254, 1
      %v257 = vsel %vm245, %v252, %v256
      %v258 = vshrl.u32 %v244, 16
      %v260 = vor.u32 %v258, %v256
      %v265 = vunpack.c.l.b16 %v231
      %v266 = vunpack.c.l.b16 %v232
      %v267 = vunpack.c.l.b16 %v233
      %v268 = vunpack.c.l.b16 %v234
      %v269 = vpack.c.b16 %v266, %v265
      %v270 = vpack.c.b16 %v268, %v267
      %vm273 = vcmask 261120
      %v275 = vsel %vm273, %v257, 0
      %v278 = vsel %vm273, %v260, 0
      %280 = vmatprep.subr.bf16.mxu0 0
      %281 = vmatpush1.bf16.msra.mxu0 %v269
      %282 = vmatprep.subr.bf16.mxu0 0
      %283 = vmatpush1.bf16.msra.mxu0 %v270
      %284 = vmatprep.subr.bf16.mxu0 0
      %285 = vmatpush1.bf16.msra.mxu0 0
      %286 = vmatprep.subr.bf16.mxu0 0
      %287 = vmatpush1.bf16.msra.mxu0 0
      %288 = vmatprep.subr.bf16.mxu0 0
      %289 = vmatpush1.bf16.msra.mxu0 0
      %290 = vmatprep.subr.bf16.mxu0 0
      %291 = vmatpush1.bf16.msra.mxu0 0
      %292 = vmatprep.subr.bf16.mxu0 0
      %293 = vmatpush1.bf16.msra.mxu0 0
      %294 = vmatprep.subr.bf16.mxu0 0
      %295 = vmatpush1.bf16.msra.mxu0 0
      %296 = vmatprep.subr.bf16.mxu0 0
      %297 = vmatpush1.bf16.msra.mxu0 0
      %298 = vmatprep.subr.bf16.mxu0 0
      %299 = vmatpush1.bf16.msra.mxu0 0
      %300 = vmatprep.subr.bf16.mxu0 0
      %301 = vmatpush1.bf16.msra.mxu0 0
      %302 = vmatprep.subr.bf16.mxu0 0
      %303 = vmatpush1.bf16.msra.mxu0 0
      %304 = vmatprep.subr.bf16.mxu0 0
      %305 = vmatpush1.bf16.msra.mxu0 0
      %306 = vmatprep.subr.bf16.mxu0 0
      %307 = vmatpush1.bf16.msra.mxu0 0
      %308 = vmatprep.subr.bf16.mxu0 0
      %309 = vmatpush1.bf16.msra.mxu0 0
      %310 = vmatprep.subr.bf16.mxu0 0
      %311 = vmatpush1.bf16.msra.mxu0 0
      %312 = vmatprep.mubr.bf16.mxu0 0
      %313 = vmatmul.mubr.bf16.gmra.mrb[0].mxu0 %v275
      %v314 = vpop.f32.mrb[0].mxu0
      %v315 = vadd.f32 0.0, %v314
      %v316 = vpop.f32.mrb[0].mxu0
      %v317 = vpop.f32.mrb[0].mxu0
      %v318 = vadd.f32 0.0, %v317
      %v319 = vpop.f32.mrb[0].mxu0
      %320 = vmatprep.mubr.bf16.mxu0 0
      %321 = vmatmul.mubr.bf16.gmra.mrb[0].mxu0 %v278
      %v322 = vpop.f32.mrb[0].mxu0
      %v323 = vadd.f32 0.0, %v322
      %v324 = vpop.f32.mrb[0].mxu0
      %v325 = vpop.f32.mrb[0].mxu0
      %v326 = vpop.f32.mrb[0].mxu0
      %327 = vdwg.mxu0
      %v328 = vpack.c.b16 %v241, %v241
      %v333 = vunpack.c.l.b16 %v226
      %v334 = vunpack.c.l.b16 %v227
      %v335 = vunpack.c.l.b16 %v228
      %v336 = vunpack.c.l.b16 %v229
      %v337 = vpack.c.b16 %v334, %v333
      %v338 = vpack.c.b16 %v336, %v335
      %v341 = vsel %vm273, %v243, 0
      %v344 = vsel %vm273, %v328, 0
      %346 = vmatprep.subr.bf16.mxu0 0
      %347 = vmatpush1.bf16.msra.mxu0 %v337
      %348 = vmatprep.subr.bf16.mxu0 0
      %349 = vmatpush1.bf16.msra.mxu0 %v338
      %350 = vmatprep.subr.bf16.mxu0 0
      %351 = vmatpush1.bf16.msra.mxu0 0
      %352 = vmatprep.subr.bf16.mxu0 0
      %353 = vmatpush1.bf16.msra.mxu0 0
      %354 = vmatprep.subr.bf16.mxu0 0
      %355 = vmatpush1.bf16.msra.mxu0 0
      %356 = vmatprep.subr.bf16.mxu0 0
      %357 = vmatpush1.bf16.msra.mxu0 0
      %358 = vmatprep.subr.bf16.mxu0 0
      %359 = vmatpush1.bf16.msra.mxu0 0
      %360 = vmatprep.subr.bf16.mxu0 0
      %361 = vmatpush1.bf16.msra.mxu0 0
      %362 = vmatprep.subr.bf16.mxu0 0
      %363 = vmatpush1.bf16.msra.mxu0 0
      %364 = vmatprep.subr.bf16.mxu0 0
      %365 = vmatpush1.bf16.msra.mxu0 0
      %366 = vmatprep.subr.bf16.mxu0 0
      %367 = vmatpush1.bf16.msra.mxu0 0
      %368 = vmatprep.subr.bf16.mxu0 0
      %369 = vmatpush1.bf16.msra.mxu0 0
      %370 = vmatprep.subr.bf16.mxu0 0
      %371 = vmatpush1.bf16.msra.mxu0 0
      %372 = vmatprep.subr.bf16.mxu0 0
      %373 = vmatpush1.bf16.msra.mxu0 0
      %374 = vmatprep.subr.bf16.mxu0 0
      %375 = vmatpush1.bf16.msra.mxu0 0
      %376 = vmatprep.subr.bf16.mxu0 0
      %377 = vmatpush1.bf16.msra.mxu0 0
      %378 = vmatprep.mubr.bf16.mxu0 0
      %379 = vmatmul.mubr.bf16.gmra.mrb[0].mxu0 %v341
      %v380 = vpop.f32.mrb[0].mxu0
      %v381 = vadd.f32 %v315, %v380
      %v382 = vpop.f32.mrb[0].mxu0
      %v383 = vpop.f32.mrb[0].mxu0
      %v384 = vadd.f32 %v318, %v383
      %v385 = vpop.f32.mrb[0].mxu0
      %386 = vmatprep.mubr.bf16.mxu0 0
      %387 = vmatmul.mubr.bf16.gmra.mrb[0].mxu0 %v344
      %v388 = vpop.f32.mrb[0].mxu0
      %v389 = vadd.f32 %v323, %v388
      %v390 = vpop.f32.mrb[0].mxu0
      %v391 = vpop.f32.mrb[0].mxu0
      %v392 = vpop.f32.mrb[0].mxu0
      %393 = vdwg.mxu0
      %v398 = vunpack.c.l.b16 %v206
      %v399 = vunpack.c.l.b16 %v207
      %v400 = vunpack.c.l.b16 %v208
      %v401 = vunpack.c.l.b16 %v209
      %v402 = vpack.c.b16 %v399, %v398
      %v403 = vpack.c.b16 %v401, %v400
      %v405 = vshrl.u32 %v402, 16
      %v407 = vshll.u32 %v402, 16
      %v409 = vrot.slane %v407, 1
      %v410 = vor.u32 %v405, %v409
      %v412 = vshll.u32 %v403, 16
      %v414 = vrot.slane %v412, 1
      %v415 = vsel %vm245, %v410, %v414
      %v416 = vshrl.u32 %v403, 16
      %v418 = vor.u32 %v416, %v414
      %v420 = vsel %vm273, %v415, 0
      %v423 = vsel %vm273, %v418, 0
      %425 = vmatprep.subr.bf16.mxu0 0
      %426 = vmatpush1.bf16.msra.mxu0 %v269
      %427 = vmatprep.subr.bf16.mxu0 0
      %428 = vmatpush1.bf16.msra.mxu0 %v270
      %429 = vmatprep.subr.bf16.mxu0 0
      %430 = vmatpush1.bf16.msra.mxu0 0
      %431 = vmatprep.subr.bf16.mxu0 0
      %432 = vmatpush1.bf16.msra.mxu0 0
      %433 = vmatprep.subr.bf16.mxu0 0
      %434 = vmatpush1.bf16.msra.mxu0 0
      %435 = vmatprep.subr.bf16.mxu0 0
      %436 = vmatpush1.bf16.msra.mxu0 0
      %437 = vmatprep.subr.bf16.mxu0 0
      %438 = vmatpush1.bf16.msra.mxu0 0
      %439 = vmatprep.subr.bf16.mxu0 0
      %440 = vmatpush1.bf16.msra.mxu0 0
      %441 = vmatprep.subr.bf16.mxu0 0
      %442 = vmatpush1.bf16.msra.mxu0 0
      %443 = vmatprep.subr.bf16.mxu0 0
      %444 = vmatpush1.bf16.msra.mxu0 0
      %445 = vmatprep.subr.bf16.mxu0 0
      %446 = vmatpush1.bf16.msra.mxu0 0
      %447 = vmatprep.subr.bf16.mxu0 0
      %448 = vmatpush1.bf16.msra.mxu0 0
      %449 = vmatprep.subr.bf16.mxu0 0
      %450 = vmatpush1.bf16.msra.mxu0 0
      %451 = vmatprep.subr.bf16.mxu0 0
      %452 = vmatpush1.bf16.msra.mxu0 0
      %453 = vmatprep.subr.bf16.mxu0 0
      %454 = vmatpush1.bf16.msra.mxu0 0
      %455 = vmatprep.subr.bf16.mxu0 0
      %456 = vmatpush1.bf16.msra.mxu0 0
      %457 = vmatprep.mubr.bf16.mxu0 0
      %458 = vmatmul.mubr.bf16.gmra.mrb[0].mxu0 %v420
      %v459 = vpop.f32.mrb[0].mxu0
      %v460 = vadd.f32 0.0, %v459
      %v461 = vpop.f32.mrb[0].mxu0
      %v462 = vpop.f32.mrb[0].mxu0
      %v463 = vadd.f32 0.0, %v462
      %v464 = vpop.f32.mrb[0].mxu0
      %465 = vmatprep.mubr.bf16.mxu0 0
      %466 = vmatmul.mubr.bf16.gmra.mrb[0].mxu0 %v423
      %v467 = vpop.f32.mrb[0].mxu0
      %v468 = vadd.f32 0.0, %v467
      %v469 = vpop.f32.mrb[0].mxu0
      %v470 = vpop.f32.mrb[0].mxu0
      %v471 = vpop.f32.mrb[0].mxu0
      %472 = vdwg.mxu0
      %v473 = vpack.c.b16 %v400, %v400
      %v474 = vsel %vm273, %v402, 0
      %v477 = vsel %vm273, %v473, 0
      %479 = vmatprep.subr.bf16.mxu0 0
      %480 = vmatpush1.bf16.msra.mxu0 %v337
      %481 = vmatprep.subr.bf16.mxu0 0
      %482 = vmatpush1.bf16.msra.mxu0 %v338
      %483 = vmatprep.subr.bf16.mxu0 0
      %484 = vmatpush1.bf16.msra.mxu0 0
      %485 = vmatprep.subr.bf16.mxu0 0
      %486 = vmatpush1.bf16.msra.mxu0 0
      %487 = vmatprep.subr.bf16.mxu0 0
      %488 = vmatpush1.bf16.msra.mxu0 0
      %489 = vmatprep.subr.bf16.mxu0 0
      %490 = vmatpush1.bf16.msra.mxu0 0
      %491 = vmatprep.subr.bf16.mxu0 0
      %492 = vmatpush1.bf16.msra.mxu0 0
      %493 = vmatprep.subr.bf16.mxu0 0
      %494 = vmatpush1.bf16.msra.mxu0 0
      %495 = vmatprep.subr.bf16.mxu0 0
      %496 = vmatpush1.bf16.msra.mxu0 0
      %497 = vmatprep.subr.bf16.mxu0 0
      %498 = vmatpush1.bf16.msra.mxu0 0
      %499 = vmatprep.subr.bf16.mxu0 0
      %500 = vmatpush1.bf16.msra.mxu0 0
      %501 = vmatprep.subr.bf16.mxu0 0
      %502 = vmatpush1.bf16.msra.mxu0 0
      %503 = vmatprep.subr.bf16.mxu0 0
      %504 = vmatpush1.bf16.msra.mxu0 0
      %505 = vmatprep.subr.bf16.mxu0 0
      %506 = vmatpush1.bf16.msra.mxu0 0
      %507 = vmatprep.subr.bf16.mxu0 0
      %508 = vmatpush1.bf16.msra.mxu0 0
      %509 = vmatprep.subr.bf16.mxu0 0
      %510 = vmatpush1.bf16.msra.mxu0 0
      %511 = vmatprep.mubr.bf16.mxu0 0
      %512 = vmatmul.mubr.bf16.gmra.mrb[0].mxu0 %v474
      %v513 = vpop.f32.mrb[0].mxu0
      %v514 = vadd.f32 %v460, %v513
      %v515 = vpop.f32.mrb[0].mxu0
      %v516 = vpop.f32.mrb[0].mxu0
      %v517 = vadd.f32 %v463, %v516
      %v518 = vpop.f32.mrb[0].mxu0
      %519 = vmatprep.mubr.bf16.mxu0 0
      %520 = vmatmul.mubr.bf16.gmra.mrb[0].mxu0 %v477
      %v521 = vpop.f32.mrb[0].mxu0
      %v522 = vadd.f32 %v468, %v521
      %v523 = vpop.f32.mrb[0].mxu0
      %v524 = vpop.f32.mrb[0].mxu0
      %v525 = vpop.f32.mrb[0].mxu0
      %526 = vdwg.mxu0
      %s527 = scalar_lea.vmem %s1, 32
      %v528 = vld [vmem:[%s527] sm:$0xf]
      %v529 = vld [vmem:[%s527 + $0x4] sm:$0xf]
      %v530 = vld [vmem:[%s527 + $0x8] sm:$0xf]
      %v531 = vld [vmem:[%s527 + $0xc] sm:$0xf]
      %vm532 = vcmask 1046528
      %v533 = vrot.slane %v243, 1
      %v534 = vrot.slane %v244, 1
      %v535 = vsel %vm532, %v533, %v534
      %v540 = vunpack.c.l.b16 %v528
      %v541 = vunpack.c.l.b16 %v529
      %v542 = vunpack.c.l.b16 %v530
      %v543 = vunpack.c.l.b16 %v531
      %v544 = vpack.c.b16 %v541, %v540
      %v545 = vpack.c.b16 %v543, %v542
      %v549 = vsel %vm273, %v535, 0
      %v552 = vsel %vm273, %v534, 0
      %554 = vmatprep.subr.bf16.mxu0 0
      %555 = vmatpush1.bf16.msra.mxu0 %v544
      %556 = vmatprep.subr.bf16.mxu0 0
      %557 = vmatpush1.bf16.msra.mxu0 %v545
      %558 = vmatprep.subr.bf16.mxu0 0
      %559 = vmatpush1.bf16.msra.mxu0 0
      %560 = vmatprep.subr.bf16.mxu0 0
      %561 = vmatpush1.bf16.msra.mxu0 0
      %562 = vmatprep.subr.bf16.mxu0 0
      %563 = vmatpush1.bf16.msra.mxu0 0
      %564 = vmatprep.subr.bf16.mxu0 0
      %565 = vmatpush1.bf16.msra.mxu0 0
      %566 = vmatprep.subr.bf16.mxu0 0
      %567 = vmatpush1.bf16.msra.mxu0 0
      %568 = vmatprep.subr.bf16.mxu0 0
      %569 = vmatpush1.bf16.msra.mxu0 0
      %570 = vmatprep.subr.bf16.mxu0 0
      %571 = vmatpush1.bf16.msra.mxu0 0
      %572 = vmatprep.subr.bf16.mxu0 0
      %573 = vmatpush1.bf16.msra.mxu0 0
      %574 = vmatprep.subr.bf16.mxu0 0
      %575 = vmatpush1.bf16.msra.mxu0 0
      %576 = vmatprep.subr.bf16.mxu0 0
      %577 = vmatpush1.bf16.msra.mxu0 0
      %578 = vmatprep.subr.bf16.mxu0 0
      %579 = vmatpush1.bf16.msra.mxu0 0
      %580 = vmatprep.subr.bf16.mxu0 0
      %581 = vmatpush1.bf16.msra.mxu0 0
      %582 = vmatprep.subr.bf16.mxu0 0
      %583 = vmatpush1.bf16.msra.mxu0 0
      %584 = vmatprep.subr.bf16.mxu0 0
      %585 = vmatpush1.bf16.msra.mxu0 0
      %586 = vmatprep.mubr.bf16.mxu0 0
      %587 = vmatmul.mubr.bf16.gmra.mrb[0].mxu0 %v549
      %v588 = vpop.f32.mrb[0].mxu0
      %v589 = vadd.f32 0.0, %v588
      %v590 = vpop.f32.mrb[0].mxu0
      %v591 = vpop.f32.mrb[0].mxu0
      %v592 = vadd.f32 0.0, %v591
      %v593 = vpop.f32.mrb[0].mxu0
      %594 = vmatprep.mubr.bf16.mxu0 0
      %595 = vmatmul.mubr.bf16.gmra.mrb[0].mxu0 %v552
      %v596 = vpop.f32.mrb[0].mxu0
      %v597 = vadd.f32 0.0, %v596
      %v598 = vpop.f32.mrb[0].mxu0
      %v599 = vpop.f32.mrb[0].mxu0
      %v600 = vpop.f32.mrb[0].mxu0
      %601 = vdwg.mxu0
      %v602 = vadd.f32 %v381, %v589
      %v603 = vadd.f32 %v384, %v592
      %v604 = vadd.f32 %v389, %v597
      %v605 = vrot.slane %v402, 1
      %v606 = vrot.slane %v403, 1
      %v607 = vsel %vm532, %v605, %v606
      %v609 = vsel %vm273, %v607, 0
      %v612 = vsel %vm273, %v606, 0
      %614 = vmatprep.subr.bf16.mxu0 0
      %615 = vmatpush1.bf16.msra.mxu0 %v544
      %616 = vmatprep.subr.bf16.mxu0 0
      %617 = vmatpush1.bf16.msra.mxu0 %v545
      %618 = vmatprep.subr.bf16.mxu0 0
      %619 = vmatpush1.bf16.msra.mxu0 0
      %620 = vmatprep.subr.bf16.mxu0 0
      %621 = vmatpush1.bf16.msra.mxu0 0
      %622 = vmatprep.subr.bf16.mxu0 0
      %623 = vmatpush1.bf16.msra.mxu0 0
      %624 = vmatprep.subr.bf16.mxu0 0
      %625 = vmatpush1.bf16.msra.mxu0 0
      %626 = vmatprep.subr.bf16.mxu0 0
      %627 = vmatpush1.bf16.msra.mxu0 0
      %628 = vmatprep.subr.bf16.mxu0 0
      %629 = vmatpush1.bf16.msra.mxu0 0
      %630 = vmatprep.subr.bf16.mxu0 0
      %631 = vmatpush1.bf16.msra.mxu0 0
      %632 = vmatprep.subr.bf16.mxu0 0
      %633 = vmatpush1.bf16.msra.mxu0 0
      %634 = vmatprep.subr.bf16.mxu0 0
      %635 = vmatpush1.bf16.msra.mxu0 0
      %636 = vmatprep.subr.bf16.mxu0 0
      %637 = vmatpush1.bf16.msra.mxu0 0
      %638 = vmatprep.subr.bf16.mxu0 0
      %639 = vmatpush1.bf16.msra.mxu0 0
      %640 = vmatprep.subr.bf16.mxu0 0
      %641 = vmatpush1.bf16.msra.mxu0 0
      %642 = vmatprep.subr.bf16.mxu0 0
      %643 = vmatpush1.bf16.msra.mxu0 0
      %644 = vmatprep.subr.bf16.mxu0 0
      %645 = vmatpush1.bf16.msra.mxu0 0
      %646 = vmatprep.mubr.bf16.mxu0 0
      %647 = vmatmul.mubr.bf16.gmra.mrb[0].mxu0 %v609
      %v648 = vpop.f32.mrb[0].mxu0
      %v649 = vadd.f32 0.0, %v648
      %v650 = vpop.f32.mrb[0].mxu0
      %v651 = vpop.f32.mrb[0].mxu0
      %v652 = vadd.f32 0.0, %v651
      %v653 = vpop.f32.mrb[0].mxu0
      %654 = vmatprep.mubr.bf16.mxu0 0
      %655 = vmatmul.mubr.bf16.gmra.mrb[0].mxu0 %v612
      %v656 = vpop.f32.mrb[0].mxu0
      %v657 = vadd.f32 0.0, %v656
      %v658 = vpop.f32.mrb[0].mxu0
      %v659 = vpop.f32.mrb[0].mxu0
      %v660 = vpop.f32.mrb[0].mxu0
      %661 = vdwg.mxu0
      %v662 = vadd.f32 %v514, %v649
      %v663 = vadd.f32 %v517, %v652
      %v664 = vadd.f32 %v522, %v657
      %s665 = scalar_lea.vmem %s1, 48
      %v666 = vld [vmem:[%s665] sm:$0xf]
      %v667 = vld [vmem:[%s665 + $0x4] sm:$0xf]
      %v668 = vld [vmem:[%s665 + $0x8] sm:$0xf]
      %v669 = vld [vmem:[%s665 + $0xc] sm:$0xf]
      %v674 = vunpack.c.l.b16 %v666
      %v675 = vunpack.c.l.b16 %v667
      %v676 = vunpack.c.l.b16 %v668
      %v677 = vunpack.c.l.b16 %v669
      %v678 = vpack.c.b16 %v675, %v674
      %v679 = vpack.c.b16 %v677, %v676
      %682 = vmatprep.subr.bf16.mxu0 0
      %683 = vmatpush1.bf16.msra.mxu0 %v678
      %684 = vmatprep.subr.bf16.mxu0 0
      %685 = vmatpush1.bf16.msra.mxu0 %v679
      %686 = vmatprep.subr.bf16.mxu0 0
      %687 = vmatpush1.bf16.msra.mxu0 0
      %688 = vmatprep.subr.bf16.mxu0 0
      %689 = vmatpush1.bf16.msra.mxu0 0
      %690 = vmatprep.subr.bf16.mxu0 0
      %691 = vmatpush1.bf16.msra.mxu0 0
      %692 = vmatprep.subr.bf16.mxu0 0
      %693 = vmatpush1.bf16.msra.mxu0 0
      %694 = vmatprep.subr.bf16.mxu0 0
      %695 = vmatpush1.bf16.msra.mxu0 0
      %696 = vmatprep.subr.bf16.mxu0 0
      %697 = vmatpush1.bf16.msra.mxu0 0
      %698 = vmatprep.subr.bf16.mxu0 0
      %699 = vmatpush1.bf16.msra.mxu0 0
      %700 = vmatprep.subr.bf16.mxu0 0
      %701 = vmatpush1.bf16.msra.mxu0 0
      %702 = vmatprep.subr.bf16.mxu0 0
      %703 = vmatpush1.bf16.msra.mxu0 0
      %704 = vmatprep.subr.bf16.mxu0 0
      %705 = vmatpush1.bf16.msra.mxu0 0
      %706 = vmatprep.subr.bf16.mxu0 0
      %707 = vmatpush1.bf16.msra.mxu0 0
      %708 = vmatprep.subr.bf16.mxu0 0
      %709 = vmatpush1.bf16.msra.mxu0 0
      %710 = vmatprep.subr.bf16.mxu0 0
      %711 = vmatpush1.bf16.msra.mxu0 0
      %712 = vmatprep.subr.bf16.mxu0 0
      %713 = vmatpush1.bf16.msra.mxu0 0
      %714 = vmatprep.mubr.bf16.mxu0 0
      %715 = vmatmul.mubr.bf16.gmra.mrb[0].mxu0 %v474
      %v716 = vpop.f32.mrb[0].mxu0
      %v717 = vadd.f32 0.0, %v716
      %v718 = vpop.f32.mrb[0].mxu0
      %v719 = vpop.f32.mrb[0].mxu0
      %v720 = vadd.f32 0.0, %v719
      %v721 = vpop.f32.mrb[0].mxu0
      %722 = vmatprep.mubr.bf16.mxu0 0
      %723 = vmatmul.mubr.bf16.gmra.mrb[0].mxu0 %v477
      %v724 = vpop.f32.mrb[0].mxu0
      %v725 = vadd.f32 0.0, %v724
      %v726 = vpop.f32.mrb[0].mxu0
      %v727 = vpop.f32.mrb[0].mxu0
      %v728 = vpop.f32.mrb[0].mxu0
      %729 = vdwg.mxu0
      %v730 = vadd.f32 %v602, %v717
      %v731 = vadd.f32 %v603, %v720
      %v732 = vadd.f32 %v604, %v725
      %v736 = vunpack.c.l.b16 %v214
      %v737 = vunpack.c.l.b16 %v215
      %v738 = vunpack.c.l.b16 %v216
      %v739 = vpack.c.b16 %v737, %v736
      %v740 = vpack.c.b16 %v738, %v738
      %v742 = vsel %vm273, %v739, 0
      %v745 = vsel %vm273, %v740, 0
      %747 = vmatprep.subr.bf16.mxu0 0
      %748 = vmatpush1.bf16.msra.mxu0 %v678
      %749 = vmatprep.subr.bf16.mxu0 0
      %750 = vmatpush1.bf16.msra.mxu0 %v679
      %751 = vmatprep.subr.bf16.mxu0 0
      %752 = vmatpush1.bf16.msra.mxu0 0
      %753 = vmatprep.subr.bf16.mxu0 0
      %754 = vmatpush1.bf16.msra.mxu0 0
      %755 = vmatprep.subr.bf16.mxu0 0
      %756 = vmatpush1.bf16.msra.mxu0 0
      %757 = vmatprep.subr.bf16.mxu0 0
      %758 = vmatpush1.bf16.msra.mxu0 0
      %759 = vmatprep.subr.bf16.mxu0 0
      %760 = vmatpush1.bf16.msra.mxu0 0
      %761 = vmatprep.subr.bf16.mxu0 0
      %762 = vmatpush1.bf16.msra.mxu0 0
      %763 = vmatprep.subr.bf16.mxu0 0
      %764 = vmatpush1.bf16.msra.mxu0 0
      %765 = vmatprep.subr.bf16.mxu0 0
      %766 = vmatpush1.bf16.msra.mxu0 0
      %767 = vmatprep.subr.bf16.mxu0 0
      %768 = vmatpush1.bf16.msra.mxu0 0
      %769 = vmatprep.subr.bf16.mxu0 0
      %770 = vmatpush1.bf16.msra.mxu0 0
      %771 = vmatprep.subr.bf16.mxu0 0
      %772 = vmatpush1.bf16.msra.mxu0 0
      %773 = vmatprep.subr.bf16.mxu0 0
      %774 = vmatpush1.bf16.msra.mxu0 0
      %775 = vmatprep.subr.bf16.mxu0 0
      %776 = vmatpush1.bf16.msra.mxu0 0
      %777 = vmatprep.subr.bf16.mxu0 0
      %778 = vmatpush1.bf16.msra.mxu0 0
      %779 = vmatprep.mubr.bf16.mxu0 0
      %780 = vmatmul.mubr.bf16.gmra.mrb[0].mxu0 %v742
      %v781 = vpop.f32.mrb[0].mxu0
      %v782 = vadd.f32 0.0, %v781
      %v783 = vpop.f32.mrb[0].mxu0
      %v784 = vpop.f32.mrb[0].mxu0
      %v785 = vadd.f32 0.0, %v784
      %v786 = vpop.f32.mrb[0].mxu0
      %787 = vmatprep.mubr.bf16.mxu0 0
      %788 = vmatmul.mubr.bf16.gmra.mrb[0].mxu0 %v745
      %v789 = vpop.f32.mrb[0].mxu0
      %v790 = vadd.f32 0.0, %v789
      %v791 = vpop.f32.mrb[0].mxu0
      %v792 = vpop.f32.mrb[0].mxu0
      %v793 = vpop.f32.mrb[0].mxu0
      %794 = vdwg.mxu0
      %v795 = vadd.f32 %v662, %v782
      %v796 = vadd.f32 %v663, %v785
      %v797 = vadd.f32 %v664, %v790
      %s798 = scalar_lea.vmem %s1, 64
      %v799 = vld [vmem:[%s798] sm:$0xf]
      %v800 = vld [vmem:[%s798 + $0x4] sm:$0xf]
      %v801 = vld [vmem:[%s798 + $0x8] sm:$0xf]
      %v802 = vld [vmem:[%s798 + $0xc] sm:$0xf]
      %v807 = vunpack.c.l.b16 %v799
      %v808 = vunpack.c.l.b16 %v800
      %v809 = vunpack.c.l.b16 %v801
      %v810 = vunpack.c.l.b16 %v802
      %v811 = vpack.c.b16 %v808, %v807
      %v812 = vpack.c.b16 %v810, %v809
      %815 = vmatprep.subr.bf16.mxu0 0
      %816 = vmatpush1.bf16.msra.mxu0 %v811
      %817 = vmatprep.subr.bf16.mxu0 0
      %818 = vmatpush1.bf16.msra.mxu0 %v812
      %819 = vmatprep.subr.bf16.mxu0 0
      %820 = vmatpush1.bf16.msra.mxu0 0
      %821 = vmatprep.subr.bf16.mxu0 0
      %822 = vmatpush1.bf16.msra.mxu0 0
      %823 = vmatprep.subr.bf16.mxu0 0
      %824 = vmatpush1.bf16.msra.mxu0 0
      %825 = vmatprep.subr.bf16.mxu0 0
      %826 = vmatpush1.bf16.msra.mxu0 0
      %827 = vmatprep.subr.bf16.mxu0 0
      %828 = vmatpush1.bf16.msra.mxu0 0
      %829 = vmatprep.subr.bf16.mxu0 0
      %830 = vmatpush1.bf16.msra.mxu0 0
      %831 = vmatprep.subr.bf16.mxu0 0
      %832 = vmatpush1.bf16.msra.mxu0 0
      %833 = vmatprep.subr.bf16.mxu0 0
      %834 = vmatpush1.bf16.msra.mxu0 0
      %835 = vmatprep.subr.bf16.mxu0 0
      %836 = vmatpush1.bf16.msra.mxu0 0
      %837 = vmatprep.subr.bf16.mxu0 0
      %838 = vmatpush1.bf16.msra.mxu0 0
      %839 = vmatprep.subr.bf16.mxu0 0
      %840 = vmatpush1.bf16.msra.mxu0 0
      %841 = vmatprep.subr.bf16.mxu0 0
      %842 = vmatpush1.bf16.msra.mxu0 0
      %843 = vmatprep.subr.bf16.mxu0 0
      %844 = vmatpush1.bf16.msra.mxu0 0
      %845 = vmatprep.subr.bf16.mxu0 0
      %846 = vmatpush1.bf16.msra.mxu0 0
      %847 = vmatprep.mubr.bf16.mxu0 0
      %848 = vmatmul.mubr.bf16.gmra.mrb[0].mxu0 %v420
      %v849 = vpop.f32.mrb[0].mxu0
      %v850 = vadd.f32 0.0, %v849
      %v851 = vpop.f32.mrb[0].mxu0
      %v852 = vpop.f32.mrb[0].mxu0
      %v853 = vadd.f32 0.0, %v852
      %v854 = vpop.f32.mrb[0].mxu0
      %855 = vmatprep.mubr.bf16.mxu0 0
      %856 = vmatmul.mubr.bf16.gmra.mrb[0].mxu0 %v423
      %v857 = vpop.f32.mrb[0].mxu0
      %v858 = vadd.f32 0.0, %v857
      %v859 = vpop.f32.mrb[0].mxu0
      %v860 = vpop.f32.mrb[0].mxu0
      %v861 = vpop.f32.mrb[0].mxu0
      %862 = vdwg.mxu0
      %v863 = vadd.f32 %v730, %v850
      %v864 = vadd.f32 %v731, %v853
      %v865 = vadd.f32 %v732, %v858
      %v867 = vunpack.c.l.b16 %v217
      %v868 = vpack.c.b16 %v867, %v738
      %v869 = vshrl.u32 %v739, 16
      %v871 = vshll.u32 %v739, 16
      %v873 = vrot.slane %v871, 1
      %v874 = vor.u32 %v869, %v873
      %v876 = vshll.u32 %v868, 16
      %v878 = vrot.slane %v876, 1
      %v879 = vsel %vm245, %v874, %v878
      %v880 = vshrl.u32 %v868, 16
      %v882 = vor.u32 %v880, %v878
      %v884 = vsel %vm273, %v879, 0
      %v887 = vsel %vm273, %v882, 0
      %889 = vmatprep.subr.bf16.mxu0 0
      %890 = vmatpush1.bf16.msra.mxu0 %v811
      %891 = vmatprep.subr.bf16.mxu0 0
      %892 = vmatpush1.bf16.msra.mxu0 %v812
      %893 = vmatprep.subr.bf16.mxu0 0
      %894 = vmatpush1.bf16.msra.mxu0 0
      %895 = vmatprep.subr.bf16.mxu0 0
      %896 = vmatpush1.bf16.msra.mxu0 0
      %897 = vmatprep.subr.bf16.mxu0 0
      %898 = vmatpush1.bf16.msra.mxu0 0
      %899 = vmatprep.subr.bf16.mxu0 0
      %900 = vmatpush1.bf16.msra.mxu0 0
      %901 = vmatprep.subr.bf16.mxu0 0
      %902 = vmatpush1.bf16.msra.mxu0 0
      %903 = vmatprep.subr.bf16.mxu0 0
      %904 = vmatpush1.bf16.msra.mxu0 0
      %905 = vmatprep.subr.bf16.mxu0 0
      %906 = vmatpush1.bf16.msra.mxu0 0
      %907 = vmatprep.subr.bf16.mxu0 0
      %908 = vmatpush1.bf16.msra.mxu0 0
      %909 = vmatprep.subr.bf16.mxu0 0
      %910 = vmatpush1.bf16.msra.mxu0 0
      %911 = vmatprep.subr.bf16.mxu0 0
      %912 = vmatpush1.bf16.msra.mxu0 0
      %913 = vmatprep.subr.bf16.mxu0 0
      %914 = vmatpush1.bf16.msra.mxu0 0
      %915 = vmatprep.subr.bf16.mxu0 0
      %916 = vmatpush1.bf16.msra.mxu0 0
      %917 = vmatprep.subr.bf16.mxu0 0
      %918 = vmatpush1.bf16.msra.mxu0 0
      %919 = vmatprep.subr.bf16.mxu0 0
      %920 = vmatpush1.bf16.msra.mxu0 0
      %921 = vmatprep.mubr.bf16.mxu0 0
      %922 = vmatmul.mubr.bf16.gmra.mrb[0].mxu0 %v884
      %v923 = vpop.f32.mrb[0].mxu0
      %v924 = vadd.f32 0.0, %v923
      %v925 = vpop.f32.mrb[0].mxu0
      %v926 = vpop.f32.mrb[0].mxu0
      %v927 = vadd.f32 0.0, %v926
      %v928 = vpop.f32.mrb[0].mxu0
      %929 = vmatprep.mubr.bf16.mxu0 0
      %930 = vmatmul.mubr.bf16.gmra.mrb[0].mxu0 %v887
      %v931 = vpop.f32.mrb[0].mxu0
      %v932 = vadd.f32 0.0, %v931
      %v933 = vpop.f32.mrb[0].mxu0
      %v934 = vpop.f32.mrb[0].mxu0
      %v935 = vpop.f32.mrb[0].mxu0
      %936 = vdwg.mxu0
      %v937 = vadd.f32 %v795, %v924
      %v938 = vadd.f32 %v796, %v927
      %v939 = vadd.f32 %v797, %v932
      %s940 = scalar_lea.vmem %s1, 80
      %v941 = vld [vmem:[%s940] sm:$0xf]
      %v942 = vld [vmem:[%s940 + $0x4] sm:$0xf]
      %v943 = vld [vmem:[%s940 + $0x8] sm:$0xf]
      %v944 = vld [vmem:[%s940 + $0xc] sm:$0xf]
      %v949 = vunpack.c.l.b16 %v941
      %v950 = vunpack.c.l.b16 %v942
      %v951 = vunpack.c.l.b16 %v943
      %v952 = vunpack.c.l.b16 %v944
      %v953 = vpack.c.b16 %v950, %v949
      %v954 = vpack.c.b16 %v952, %v951
      %957 = vmatprep.subr.bf16.mxu0 0
      %958 = vmatpush1.bf16.msra.mxu0 %v953
      %959 = vmatprep.subr.bf16.mxu0 0
      %960 = vmatpush1.bf16.msra.mxu0 %v954
      %961 = vmatprep.subr.bf16.mxu0 0
      %962 = vmatpush1.bf16.msra.mxu0 0
      %963 = vmatprep.subr.bf16.mxu0 0
      %964 = vmatpush1.bf16.msra.mxu0 0
      %965 = vmatprep.subr.bf16.mxu0 0
      %966 = vmatpush1.bf16.msra.mxu0 0
      %967 = vmatprep.subr.bf16.mxu0 0
      %968 = vmatpush1.bf16.msra.mxu0 0
      %969 = vmatprep.subr.bf16.mxu0 0
      %970 = vmatpush1.bf16.msra.mxu0 0
      %971 = vmatprep.subr.bf16.mxu0 0
      %972 = vmatpush1.bf16.msra.mxu0 0
      %973 = vmatprep.subr.bf16.mxu0 0
      %974 = vmatpush1.bf16.msra.mxu0 0
      %975 = vmatprep.subr.bf16.mxu0 0
      %976 = vmatpush1.bf16.msra.mxu0 0
      %977 = vmatprep.subr.bf16.mxu0 0
      %978 = vmatpush1.bf16.msra.mxu0 0
      %979 = vmatprep.subr.bf16.mxu0 0
      %980 = vmatpush1.bf16.msra.mxu0 0
      %981 = vmatprep.subr.bf16.mxu0 0
      %982 = vmatpush1.bf16.msra.mxu0 0
      %983 = vmatprep.subr.bf16.mxu0 0
      %984 = vmatpush1.bf16.msra.mxu0 0
      %985 = vmatprep.subr.bf16.mxu0 0
      %986 = vmatpush1.bf16.msra.mxu0 0
      %987 = vmatprep.subr.bf16.mxu0 0
      %988 = vmatpush1.bf16.msra.mxu0 0
      %989 = vmatprep.mubr.bf16.mxu0 0
      %990 = vmatmul.mubr.bf16.gmra.mrb[0].mxu0 %v609
      %v991 = vpop.f32.mrb[0].mxu0
      %v992 = vadd.f32 0.0, %v991
      %v993 = vpop.f32.mrb[0].mxu0
      %v994 = vpop.f32.mrb[0].mxu0
      %v995 = vadd.f32 0.0, %v994
      %v996 = vpop.f32.mrb[0].mxu0
      %997 = vmatprep.mubr.bf16.mxu0 0
      %998 = vmatmul.mubr.bf16.gmra.mrb[0].mxu0 %v612
      %v999 = vpop.f32.mrb[0].mxu0
      %v1000 = vadd.f32 0.0, %v999
      %v1001 = vpop.f32.mrb[0].mxu0
      %v1002 = vpop.f32.mrb[0].mxu0
      %v1003 = vpop.f32.mrb[0].mxu0
      %1004 = vdwg.mxu0
      %v1005 = vadd.f32 %v863, %v992
      %v1006 = vadd.f32 %v864, %v995
      %v1007 = vadd.f32 %v865, %v1000
      %v1008 = vrot.slane %v739, 1
      %v1009 = vrot.slane %v868, 1
      %v1010 = vsel %vm532, %v1008, %v1009
      %v1012 = vsel %vm273, %v1010, 0
      %v1015 = vsel %vm273, %v1009, 0
      %1017 = vmatprep.subr.bf16.mxu0 0
      %1018 = vmatpush1.bf16.msra.mxu0 %v953
      %1019 = vmatprep.subr.bf16.mxu0 0
      %1020 = vmatpush1.bf16.msra.mxu0 %v954
      %1021 = vmatprep.subr.bf16.mxu0 0
      %1022 = vmatpush1.bf16.msra.mxu0 0
      %1023 = vmatprep.subr.bf16.mxu0 0
      %1024 = vmatpush1.bf16.msra.mxu0 0
      %1025 = vmatprep.subr.bf16.mxu0 0
      %1026 = vmatpush1.bf16.msra.mxu0 0
      %1027 = vmatprep.subr.bf16.mxu0 0
      %1028 = vmatpush1.bf16.msra.mxu0 0
      %1029 = vmatprep.subr.bf16.mxu0 0
      %1030 = vmatpush1.bf16.msra.mxu0 0
      %1031 = vmatprep.subr.bf16.mxu0 0
      %1032 = vmatpush1.bf16.msra.mxu0 0
      %1033 = vmatprep.subr.bf16.mxu0 0
      %1034 = vmatpush1.bf16.msra.mxu0 0
      %1035 = vmatprep.subr.bf16.mxu0 0
      %1036 = vmatpush1.bf16.msra.mxu0 0
      %1037 = vmatprep.subr.bf16.mxu0 0
      %1038 = vmatpush1.bf16.msra.mxu0 0
      %1039 = vmatprep.subr.bf16.mxu0 0
      %1040 = vmatpush1.bf16.msra.mxu0 0
      %1041 = vmatprep.subr.bf16.mxu0 0
      %1042 = vmatpush1.bf16.msra.mxu0 0
      %1043 = vmatprep.subr.bf16.mxu0 0
      %1044 = vmatpush1.bf16.msra.mxu0 0
      %1045 = vmatprep.subr.bf16.mxu0 0
      %1046 = vmatpush1.bf16.msra.mxu0 0
      %1047 = vmatprep.subr.bf16.mxu0 0
      %1048 = vmatpush1.bf16.msra.mxu0 0
      %1049 = vmatprep.mubr.bf16.mxu0 0
      %1050 = vmatmul.mubr.bf16.gmra.mrb[0].mxu0 %v1012
      %v1051 = vpop.f32.mrb[0].mxu0
      %v1052 = vadd.f32 0.0, %v1051
      %v1053 = vpop.f32.mrb[0].mxu0
      %v1054 = vpop.f32.mrb[0].mxu0
      %v1055 = vadd.f32 0.0, %v1054
      %v1056 = vpop.f32.mrb[0].mxu0
      %1057 = vmatprep.mubr.bf16.mxu0 0
      %1058 = vmatmul.mubr.bf16.gmra.mrb[0].mxu0 %v1015
      %v1059 = vpop.f32.mrb[0].mxu0
      %v1060 = vadd.f32 0.0, %v1059
      %v1061 = vpop.f32.mrb[0].mxu0
      %v1062 = vpop.f32.mrb[0].mxu0
      %v1063 = vpop.f32.mrb[0].mxu0
      %1064 = vdwg.mxu0
      %v1065 = vadd.f32 %v937, %v1052
      %v1066 = vadd.f32 %v938, %v1055
      %v1067 = vadd.f32 %v939, %v1060
      %s1068 = scalar_lea.vmem %s1, 96
      %v1069 = vld [vmem:[%s1068] sm:$0xf]
      %v1070 = vld [vmem:[%s1068 + $0x4] sm:$0xf]
      %v1071 = vld [vmem:[%s1068 + $0x8] sm:$0xf]
      %v1072 = vld [vmem:[%s1068 + $0xc] sm:$0xf]
      %v1077 = vunpack.c.l.b16 %v1069
      %v1078 = vunpack.c.l.b16 %v1070
      %v1079 = vunpack.c.l.b16 %v1071
      %v1080 = vunpack.c.l.b16 %v1072
      %v1081 = vpack.c.b16 %v1078, %v1077
      %v1082 = vpack.c.b16 %v1080, %v1079
      %1085 = vmatprep.subr.bf16.mxu0 0
      %1086 = vmatpush1.bf16.msra.mxu0 %v1081
      %1087 = vmatprep.subr.bf16.mxu0 0
      %1088 = vmatpush1.bf16.msra.mxu0 %v1082
      %1089 = vmatprep.subr.bf16.mxu0 0
      %1090 = vmatpush1.bf16.msra.mxu0 0
      %1091 = vmatprep.subr.bf16.mxu0 0
      %1092 = vmatpush1.bf16.msra.mxu0 0
      %1093 = vmatprep.subr.bf16.mxu0 0
      %1094 = vmatpush1.bf16.msra.mxu0 0
      %1095 = vmatprep.subr.bf16.mxu0 0
      %1096 = vmatpush1.bf16.msra.mxu0 0
      %1097 = vmatprep.subr.bf16.mxu0 0
      %1098 = vmatpush1.bf16.msra.mxu0 0
      %1099 = vmatprep.subr.bf16.mxu0 0
      %1100 = vmatpush1.bf16.msra.mxu0 0
      %1101 = vmatprep.subr.bf16.mxu0 0
      %1102 = vmatpush1.bf16.msra.mxu0 0
      %1103 = vmatprep.subr.bf16.mxu0 0
      %1104 = vmatpush1.bf16.msra.mxu0 0
      %1105 = vmatprep.subr.bf16.mxu0 0
      %1106 = vmatpush1.bf16.msra.mxu0 0
      %1107 = vmatprep.subr.bf16.mxu0 0
      %1108 = vmatpush1.bf16.msra.mxu0 0
      %1109 = vmatprep.subr.bf16.mxu0 0
      %1110 = vmatpush1.bf16.msra.mxu0 0
      %1111 = vmatprep.subr.bf16.mxu0 0
      %1112 = vmatpush1.bf16.msra.mxu0 0
      %1113 = vmatprep.subr.bf16.mxu0 0
      %1114 = vmatpush1.bf16.msra.mxu0 0
      %1115 = vmatprep.subr.bf16.mxu0 0
      %1116 = vmatpush1.bf16.msra.mxu0 0
      %1117 = vmatprep.mubr.bf16.mxu0 0
      %1118 = vmatmul.mubr.bf16.gmra.mrb[0].mxu0 %v742
      %v1119 = vpop.f32.mrb[0].mxu0
      %v1120 = vadd.f32 0.0, %v1119
      %v1121 = vpop.f32.mrb[0].mxu0
      %v1122 = vpop.f32.mrb[0].mxu0
      %v1123 = vadd.f32 0.0, %v1122
      %v1124 = vpop.f32.mrb[0].mxu0
      %1125 = vmatprep.mubr.bf16.mxu0 0
      %1126 = vmatmul.mubr.bf16.gmra.mrb[0].mxu0 %v745
      %v1127 = vpop.f32.mrb[0].mxu0
      %v1128 = vadd.f32 0.0, %v1127
      %v1129 = vpop.f32.mrb[0].mxu0
      %v1130 = vpop.f32.mrb[0].mxu0
      %v1131 = vpop.f32.mrb[0].mxu0
      %1132 = vdwg.mxu0
      %v1133 = vadd.f32 %v1005, %v1120
      %v1134 = vadd.f32 %v1006, %v1123
      %v1135 = vadd.f32 %v1007, %v1128
      %v1139 = vunpack.c.l.b16 %v222
      %v1140 = vunpack.c.l.b16 %v223
      %v1141 = vunpack.c.l.b16 %v224
      %v1142 = vpack.c.b16 %v1140, %v1139
      %v1143 = vpack.c.b16 %v1141, %v1141
      %v1145 = vsel %vm273, %v1142, 0
      %v1148 = vsel %vm273, %v1143, 0
      %1150 = vmatprep.subr.bf16.mxu0 0
      %1151 = vmatpush1.bf16.msra.mxu0 %v1081
      %1152 = vmatprep.subr.bf16.mxu0 0
      %1153 = vmatpush1.bf16.msra.mxu0 %v1082
      %1154 = vmatprep.subr.bf16.mxu0 0
      %1155 = vmatpush1.bf16.msra.mxu0 0
      %1156 = vmatprep.subr.bf16.mxu0 0
      %1157 = vmatpush1.bf16.msra.mxu0 0
      %1158 = vmatprep.subr.bf16.mxu0 0
      %1159 = vmatpush1.bf16.msra.mxu0 0
      %1160 = vmatprep.subr.bf16.mxu0 0
      %1161 = vmatpush1.bf16.msra.mxu0 0
      %1162 = vmatprep.subr.bf16.mxu0 0
      %1163 = vmatpush1.bf16.msra.mxu0 0
      %1164 = vmatprep.subr.bf16.mxu0 0
      %1165 = vmatpush1.bf16.msra.mxu0 0
      %1166 = vmatprep.subr.bf16.mxu0 0
      %1167 = vmatpush1.bf16.msra.mxu0 0
      %1168 = vmatprep.subr.bf16.mxu0 0
      %1169 = vmatpush1.bf16.msra.mxu0 0
      %1170 = vmatprep.subr.bf16.mxu0 0
      %1171 = vmatpush1.bf16.msra.mxu0 0
      %1172 = vmatprep.subr.bf16.mxu0 0
      %1173 = vmatpush1.bf16.msra.mxu0 0
      %1174 = vmatprep.subr.bf16.mxu0 0
      %1175 = vmatpush1.bf16.msra.mxu0 0
      %1176 = vmatprep.subr.bf16.mxu0 0
      %1177 = vmatpush1.bf16.msra.mxu0 0
      %1178 = vmatprep.subr.bf16.mxu0 0
      %1179 = vmatpush1.bf16.msra.mxu0 0
      %1180 = vmatprep.subr.bf16.mxu0 0
      %1181 = vmatpush1.bf16.msra.mxu0 0
      %1182 = vmatprep.mubr.bf16.mxu0 0
      %1183 = vmatmul.mubr.bf16.gmra.mrb[0].mxu0 %v1145
      %v1184 = vpop.f32.mrb[0].mxu0
      %v1185 = vadd.f32 0.0, %v1184
      %v1186 = vpop.f32.mrb[0].mxu0
      %v1187 = vpop.f32.mrb[0].mxu0
      %v1188 = vadd.f32 0.0, %v1187
      %v1189 = vpop.f32.mrb[0].mxu0
      %1190 = vmatprep.mubr.bf16.mxu0 0
      %1191 = vmatmul.mubr.bf16.gmra.mrb[0].mxu0 %v1148
      %v1192 = vpop.f32.mrb[0].mxu0
      %v1193 = vadd.f32 0.0, %v1192
      %v1194 = vpop.f32.mrb[0].mxu0
      %v1195 = vpop.f32.mrb[0].mxu0
      %v1196 = vpop.f32.mrb[0].mxu0
      %1197 = vdwg.mxu0
      %v1198 = vadd.f32 %v1065, %v1185
      %v1199 = vadd.f32 %v1066, %v1188
      %v1200 = vadd.f32 %v1067, %v1193
      %s1201 = scalar_lea.vmem %s1, 112
      %v1202 = vld [vmem:[%s1201] sm:$0xf]
      %v1203 = vld [vmem:[%s1201 + $0x4] sm:$0xf]
      %v1204 = vld [vmem:[%s1201 + $0x8] sm:$0xf]
      %v1205 = vld [vmem:[%s1201 + $0xc] sm:$0xf]
      %v1210 = vunpack.c.l.b16 %v1202
      %v1211 = vunpack.c.l.b16 %v1203
      %v1212 = vunpack.c.l.b16 %v1204
      %v1213 = vunpack.c.l.b16 %v1205
      %v1214 = vpack.c.b16 %v1211, %v1210
      %v1215 = vpack.c.b16 %v1213, %v1212
      %1218 = vmatprep.subr.bf16.mxu0 0
      %1219 = vmatpush1.bf16.msra.mxu0 %v1214
      %1220 = vmatprep.subr.bf16.mxu0 0
      %1221 = vmatpush1.bf16.msra.mxu0 %v1215
      %1222 = vmatprep.subr.bf16.mxu0 0
      %1223 = vmatpush1.bf16.msra.mxu0 0
      %1224 = vmatprep.subr.bf16.mxu0 0
      %1225 = vmatpush1.bf16.msra.mxu0 0
      %1226 = vmatprep.subr.bf16.mxu0 0
      %1227 = vmatpush1.bf16.msra.mxu0 0
      %1228 = vmatprep.subr.bf16.mxu0 0
      %1229 = vmatpush1.bf16.msra.mxu0 0
      %1230 = vmatprep.subr.bf16.mxu0 0
      %1231 = vmatpush1.bf16.msra.mxu0 0
      %1232 = vmatprep.subr.bf16.mxu0 0
      %1233 = vmatpush1.bf16.msra.mxu0 0
      %1234 = vmatprep.subr.bf16.mxu0 0
      %1235 = vmatpush1.bf16.msra.mxu0 0
      %1236 = vmatprep.subr.bf16.mxu0 0
      %1237 = vmatpush1.bf16.msra.mxu0 0
      %1238 = vmatprep.subr.bf16.mxu0 0
      %1239 = vmatpush1.bf16.msra.mxu0 0
      %1240 = vmatprep.subr.bf16.mxu0 0
      %1241 = vmatpush1.bf16.msra.mxu0 0
      %1242 = vmatprep.subr.bf16.mxu0 0
      %1243 = vmatpush1.bf16.msra.mxu0 0
      %1244 = vmatprep.subr.bf16.mxu0 0
      %1245 = vmatpush1.bf16.msra.mxu0 0
      %1246 = vmatprep.subr.bf16.mxu0 0
      %1247 = vmatpush1.bf16.msra.mxu0 0
      %1248 = vmatprep.subr.bf16.mxu0 0
      %1249 = vmatpush1.bf16.msra.mxu0 0
      %1250 = vmatprep.mubr.bf16.mxu0 0
      %1251 = vmatmul.mubr.bf16.gmra.mrb[0].mxu0 %v884
      %v1252 = vpop.f32.mrb[0].mxu0
      %v1253 = vadd.f32 0.0, %v1252
      %v1254 = vpop.f32.mrb[0].mxu0
      %v1255 = vpop.f32.mrb[0].mxu0
      %v1256 = vadd.f32 0.0, %v1255
      %v1257 = vpop.f32.mrb[0].mxu0
      %1258 = vmatprep.mubr.bf16.mxu0 0
      %1259 = vmatmul.mubr.bf16.gmra.mrb[0].mxu0 %v887
      %v1260 = vpop.f32.mrb[0].mxu0
      %v1261 = vadd.f32 0.0, %v1260
      %v1262 = vpop.f32.mrb[0].mxu0
      %v1263 = vpop.f32.mrb[0].mxu0
      %v1264 = vpop.f32.mrb[0].mxu0
      %1265 = vdwg.mxu0
      %v1266 = vadd.f32 %v1133, %v1253
      %v1267 = vadd.f32 %v1134, %v1256
      %v1268 = vadd.f32 %v1135, %v1261
      %v1270 = vunpack.c.l.b16 %v225
      %v1271 = vpack.c.b16 %v1270, %v1141
      %v1272 = vshrl.u32 %v1142, 16
      %v1274 = vshll.u32 %v1142, 16
      %v1276 = vrot.slane %v1274, 1
      %v1277 = vor.u32 %v1272, %v1276
      %v1279 = vshll.u32 %v1271, 16
      %v1281 = vrot.slane %v1279, 1
      %v1282 = vsel %vm245, %v1277, %v1281
      %v1283 = vshrl.u32 %v1271, 16
      %v1285 = vor.u32 %v1283, %v1281
      %v1287 = vsel %vm273, %v1282, 0
      %v1290 = vsel %vm273, %v1285, 0
      %1292 = vmatprep.subr.bf16.mxu0 0
      %1293 = vmatpush1.bf16.msra.mxu0 %v1214
      %1294 = vmatprep.subr.bf16.mxu0 0
      %1295 = vmatpush1.bf16.msra.mxu0 %v1215
      %1296 = vmatprep.subr.bf16.mxu0 0
      %1297 = vmatpush1.bf16.msra.mxu0 0
      %1298 = vmatprep.subr.bf16.mxu0 0
      %1299 = vmatpush1.bf16.msra.mxu0 0
      %1300 = vmatprep.subr.bf16.mxu0 0
      %1301 = vmatpush1.bf16.msra.mxu0 0
      %1302 = vmatprep.subr.bf16.mxu0 0
      %1303 = vmatpush1.bf16.msra.mxu0 0
      %1304 = vmatprep.subr.bf16.mxu0 0
      %1305 = vmatpush1.bf16.msra.mxu0 0
      %1306 = vmatprep.subr.bf16.mxu0 0
      %1307 = vmatpush1.bf16.msra.mxu0 0
      %1308 = vmatprep.subr.bf16.mxu0 0
      %1309 = vmatpush1.bf16.msra.mxu0 0
      %1310 = vmatprep.subr.bf16.mxu0 0
      %1311 = vmatpush1.bf16.msra.mxu0 0
      %1312 = vmatprep.subr.bf16.mxu0 0
      %1313 = vmatpush1.bf16.msra.mxu0 0
      %1314 = vmatprep.subr.bf16.mxu0 0
      %1315 = vmatpush1.bf16.msra.mxu0 0
      %1316 = vmatprep.subr.bf16.mxu0 0
      %1317 = vmatpush1.bf16.msra.mxu0 0
      %1318 = vmatprep.subr.bf16.mxu0 0
      %1319 = vmatpush1.bf16.msra.mxu0 0
      %1320 = vmatprep.subr.bf16.mxu0 0
      %1321 = vmatpush1.bf16.msra.mxu0 0
      %1322 = vmatprep.subr.bf16.mxu0 0
      %1323 = vmatpush1.bf16.msra.mxu0 0
      %1324 = vmatprep.mubr.bf16.mxu0 0
      %1325 = vmatmul.mubr.bf16.gmra.mrb[0].mxu0 %v1287
      %v1326 = vpop.f32.mrb[0].mxu0
      %v1327 = vadd.f32 0.0, %v1326
      %v1328 = vpop.f32.mrb[0].mxu0
      %v1329 = vpop.f32.mrb[0].mxu0
      %v1330 = vadd.f32 0.0, %v1329
      %v1331 = vpop.f32.mrb[0].mxu0
      %1332 = vmatprep.mubr.bf16.mxu0 0
      %1333 = vmatmul.mubr.bf16.gmra.mrb[0].mxu0 %v1290
      %v1334 = vpop.f32.mrb[0].mxu0
      %v1335 = vadd.f32 0.0, %v1334
      %v1336 = vpop.f32.mrb[0].mxu0
      %v1337 = vpop.f32.mrb[0].mxu0
      %v1338 = vpop.f32.mrb[0].mxu0
      %1339 = vdwg.mxu0
      %v1340 = vadd.f32 %v1198, %v1327
      %v1341 = vadd.f32 %v1199, %v1330
      %v1342 = vadd.f32 %v1200, %v1335
      %s1343 = scalar_lea.vmem %s1, 128
      %v1344 = vld [vmem:[%s1343] sm:$0xf]
      %v1345 = vld [vmem:[%s1343 + $0x4] sm:$0xf]
      %v1346 = vld [vmem:[%s1343 + $0x8] sm:$0xf]
      %v1347 = vld [vmem:[%s1343 + $0xc] sm:$0xf]
      %v1352 = vunpack.c.l.b16 %v1344
      %v1353 = vunpack.c.l.b16 %v1345
      %v1354 = vunpack.c.l.b16 %v1346
      %v1355 = vunpack.c.l.b16 %v1347
      %v1356 = vpack.c.b16 %v1353, %v1352
      %v1357 = vpack.c.b16 %v1355, %v1354
      %1360 = vmatprep.subr.bf16.mxu0 0
      %1361 = vmatpush1.bf16.msra.mxu0 %v1356
      %1362 = vmatprep.subr.bf16.mxu0 0
      %1363 = vmatpush1.bf16.msra.mxu0 %v1357
      %1364 = vmatprep.subr.bf16.mxu0 0
      %1365 = vmatpush1.bf16.msra.mxu0 0
      %1366 = vmatprep.subr.bf16.mxu0 0
      %1367 = vmatpush1.bf16.msra.mxu0 0
      %1368 = vmatprep.subr.bf16.mxu0 0
      %1369 = vmatpush1.bf16.msra.mxu0 0
      %1370 = vmatprep.subr.bf16.mxu0 0
      %1371 = vmatpush1.bf16.msra.mxu0 0
      %1372 = vmatprep.subr.bf16.mxu0 0
      %1373 = vmatpush1.bf16.msra.mxu0 0
      %1374 = vmatprep.subr.bf16.mxu0 0
      %1375 = vmatpush1.bf16.msra.mxu0 0
      %1376 = vmatprep.subr.bf16.mxu0 0
      %1377 = vmatpush1.bf16.msra.mxu0 0
      %1378 = vmatprep.subr.bf16.mxu0 0
      %1379 = vmatpush1.bf16.msra.mxu0 0
      %1380 = vmatprep.subr.bf16.mxu0 0
      %1381 = vmatpush1.bf16.msra.mxu0 0
      %1382 = vmatprep.subr.bf16.mxu0 0
      %1383 = vmatpush1.bf16.msra.mxu0 0
      %1384 = vmatprep.subr.bf16.mxu0 0
      %1385 = vmatpush1.bf16.msra.mxu0 0
      %1386 = vmatprep.subr.bf16.mxu0 0
      %1387 = vmatpush1.bf16.msra.mxu0 0
      %1388 = vmatprep.subr.bf16.mxu0 0
      %1389 = vmatpush1.bf16.msra.mxu0 0
      %1390 = vmatprep.subr.bf16.mxu0 0
      %1391 = vmatpush1.bf16.msra.mxu0 0
      %1392 = vmatprep.mubr.bf16.mxu0 0
      %1393 = vmatmul.mubr.bf16.gmra.mrb[0].mxu0 %v1012
      %v1394 = vpop.f32.mrb[0].mxu0
      %v1395 = vadd.f32 0.0, %v1394
      %v1396 = vpop.f32.mrb[0].mxu0
      %v1397 = vpop.f32.mrb[0].mxu0
      %v1398 = vadd.f32 0.0, %v1397
      %v1399 = vpop.f32.mrb[0].mxu0
      %1400 = vmatprep.mubr.bf16.mxu0 0
      %1401 = vmatmul.mubr.bf16.gmra.mrb[0].mxu0 %v1015
      %v1402 = vpop.f32.mrb[0].mxu0
      %v1403 = vadd.f32 0.0, %v1402
      %v1404 = vpop.f32.mrb[0].mxu0
      %v1405 = vpop.f32.mrb[0].mxu0
      %v1406 = vpop.f32.mrb[0].mxu0
      %1407 = vdwg.mxu0
      %v1408 = vadd.f32 %v1266, %v1395
      %v1409 = vadd.f32 %v1267, %v1398
      %v1410 = vadd.f32 %v1268, %v1403
      %v1411 = vrot.slane %v1142, 1
      %v1412 = vrot.slane %v1271, 1
      %v1413 = vsel %vm532, %v1411, %v1412
      %v1415 = vsel %vm273, %v1413, 0
      %v1418 = vsel %vm273, %v1412, 0
      %1420 = vmatprep.subr.bf16.mxu0 0
      %1421 = vmatpush1.bf16.msra.mxu0 %v1356
      %1422 = vmatprep.subr.bf16.mxu0 0
      %1423 = vmatpush1.bf16.msra.mxu0 %v1357
      %1424 = vmatprep.subr.bf16.mxu0 0
      %1425 = vmatpush1.bf16.msra.mxu0 0
      %1426 = vmatprep.subr.bf16.mxu0 0
      %1427 = vmatpush1.bf16.msra.mxu0 0
      %1428 = vmatprep.subr.bf16.mxu0 0
      %1429 = vmatpush1.bf16.msra.mxu0 0
      %1430 = vmatprep.subr.bf16.mxu0 0
      %1431 = vmatpush1.bf16.msra.mxu0 0
      %1432 = vmatprep.subr.bf16.mxu0 0
      %1433 = vmatpush1.bf16.msra.mxu0 0
      %1434 = vmatprep.subr.bf16.mxu0 0
      %1435 = vmatpush1.bf16.msra.mxu0 0
      %1436 = vmatprep.subr.bf16.mxu0 0
      %1437 = vmatpush1.bf16.msra.mxu0 0
      %1438 = vmatprep.subr.bf16.mxu0 0
      %1439 = vmatpush1.bf16.msra.mxu0 0
      %1440 = vmatprep.subr.bf16.mxu0 0
      %1441 = vmatpush1.bf16.msra.mxu0 0
      %1442 = vmatprep.subr.bf16.mxu0 0
      %1443 = vmatpush1.bf16.msra.mxu0 0
      %1444 = vmatprep.subr.bf16.mxu0 0
      %1445 = vmatpush1.bf16.msra.mxu0 0
      %1446 = vmatprep.subr.bf16.mxu0 0
      %1447 = vmatpush1.bf16.msra.mxu0 0
      %1448 = vmatprep.subr.bf16.mxu0 0
      %1449 = vmatpush1.bf16.msra.mxu0 0
      %1450 = vmatprep.subr.bf16.mxu0 0
      %1451 = vmatpush1.bf16.msra.mxu0 0
      %1452 = vmatprep.mubr.bf16.mxu0 0
      %1453 = vmatmul.mubr.bf16.gmra.mrb[0].mxu0 %v1415
      %v1454 = vpop.f32.mrb[0].mxu0
      %v1455 = vadd.f32 0.0, %v1454
      %v1456 = vpop.f32.mrb[0].mxu0
      %v1457 = vpop.f32.mrb[0].mxu0
      %v1458 = vadd.f32 0.0, %v1457
      %v1459 = vpop.f32.mrb[0].mxu0
      %1460 = vmatprep.mubr.bf16.mxu0 0
      %1461 = vmatmul.mubr.bf16.gmra.mrb[0].mxu0 %v1418
      %v1462 = vpop.f32.mrb[0].mxu0
      %v1463 = vadd.f32 0.0, %v1462
      %v1464 = vpop.f32.mrb[0].mxu0
      %v1465 = vpop.f32.mrb[0].mxu0
      %v1466 = vpop.f32.mrb[0].mxu0
      %1467 = vdwg.mxu0
      %v1468 = vadd.f32 %v1340, %v1455
      %v1469 = vadd.f32 %v1341, %v1458
      %v1470 = vadd.f32 %v1342, %v1463
      %v1471 = vmax.f32 %v1408, %v1468
      %v1472 = vmax.f32 %v1409, %v1469
      %v1473 = vmax.f32 %v1410, %v1470
      %v1474 = vld [vmem:[%s2] sm:$0x1]
      %v1476 = vlaneseq
      %v1477 = vshrl.u32 %v1476, 7
      %v1478 = vsub.s32 0, %v1477
      %v1479 = vrot.slane %v1474, %v1478
      %v1481 = vadd.f32 %v1471, %v1479
      %v1482 = vadd.f32 %v1472, %v1479
      %v1483 = vadd.f32 %v1473, %v1479
      %v1484 = vmax.f32 %v1481, 0.0
      %v1485 = vmax.f32 %v1482, 0.0
      %v1486 = vmax.f32 %v1483, 0.0
      %vm1487 = vcmask 523264
      %1488 = vst.msk [vmem:[#allocation2] sm:$0xff] %vm1487, %v1484
      %1489 = vst.msk [vmem:[#allocation2 + $0x8] sm:$0xff] %vm1487, %v1485
      %1490 = vst.msk [vmem:[#allocation2 + $0x10] sm:$0xff] %vm1487, %v1486
      %v1491 = vld [vmem:[#allocation2] ss:$2 sm:$0xff]
      %s1492 = scalar_lea.vmem [#allocation2], 16
      %v1493 = vld [vmem:[%s1492] ss:$2 sm:$0xf]
      %s1494 = scalar_lea.vmem [#allocation2], 1
      %v1495 = vld [vmem:[%s1494] ss:$2 sm:$0xff]
      %s1496 = scalar_lea.vmem [#allocation2], 17
      %v1497 = vld [vmem:[%s1496] ss:$2 sm:$0xf]
      %v1498 = vmax.f32 %v1491, %v1495
      %v1499 = vmax.f32 %v1493, %v1497
      %v1500 = vpack.c.bf16 %v1499, %v1498
      %v1502 = vunpack.c.l.b16 %v1500
      %v1503 = vunpack.c.h.b16 %v1500
      %v1504 = vpack.c.b16 %v1502, %v1502
      %v1505 = vpack.c.b16 %v1503, %v1503
      %vm1508 = vcmask 519168
      %1509 = vst.msk [vmem:[%s192] sm:$0xf] %vm1508, %v1504
      %vm1510 = vcmask 517120
      %1511 = vst.msk [vmem:[%s192 + $0x4] sm:$0x3] %vm1510, %v1505
      %p1512 = scmp.lt.s32.totalorder %s18, 1
      %s1513 = scalar_select %p1512, %s18, 1
      %p1514 = scmp.lt.s32.totalorder %s19, 11
      %s1515 = scalar_select %p1514, %s19, 11
      %s1516 = smul.addr %s1515, 2
      %s1517 = smul.addr %s1513, 24
      %s1518 = sadd.s32 %s1516, %s1517
      %s1519 = smul.addr %s1518, 4
      %s1520 = scalar_lea.vmem %s3, %s1519
      // Predicated region
      $region33: #{net_forward.4} parent=31 // pred_check
        %p1521 = pneg %p114
      $region34: #{net_forward.4} parent=31 // pred_check_branch
        %1523 = sbr.rel (%p1521) target = $region36
      $region35: #{net_forward.4} parent=31 // pred_region
        _
      $region36: #{net_forward.4} parent=31 // pred_fallthru
        _
    $region32: #{net_forward.4} parent=5 // pred_fallthru
      _
    %p1524 = scmp.le.s32.totalorder 2, %s9
    // Predicated region
    $region37: #{net_forward.4} parent=5 // pred_check
      %p1525 = pneg %p1524
    $region38: #{net_forward.4} parent=5 // pred_check_branch
      %1527 = sbr.rel (%p1525) target = $region40
    $region39: #{net_forward.4} parent=5 // pred_region
      %s1528 = ssub.s32 %s9, 2
      // Predicated region
      $region41: #{net_forward.4} parent=39 // pred_check
        %p1529 = pneg %p120
      $region42: #{net_forward.4} parent=39 // pred_check_branch
        %1531 = sbr.rel (%p1529) target = $region44
      $region43: #{net_forward.4} parent=39 // pred_region
        %p1532 = scmp.lt.s32.totalorder %s20, 1
        %s1533 = scalar_select %p1532, %s20, 1
        %p1534 = scmp.lt.s32.totalorder %s21, 11
        %s1535 = scalar_select %p1534, %s21, 11
        %s1536 = smul.addr %s1535, 2
        %s1537 = smul.addr %s1533, 24
        %s1538 = sadd.s32 %s1536, %s1537
        %s1539 = smul.addr %s1538, 4
        %s1540 = scalar_lea.vmem %s3, %s1539
      $region44: #{net_forward.4} parent=39 // pred_fallthru
        _
    $region40: #{net_forward.4} parent=5 // pred_fallthru
      _
  $region6: #{net_forward.4} parent=0 // loop_footer
    %s13 = sadd.s32 1, %s9
  $region7: #{net_forward.4} parent=0 // loop_footer_branch
    %8 = sbr.rel target = $region3
  $region8: #{net_forward.4} parent=0 // loop_exit
    _

// kernel: net_forward.5
$region0: #{net_forward.5}
  #allocation0 [shape = 'u32[]', space=smem, size = 0x4, offset = 0x4, fixed_abs, tag = 'smem constant byte address 0x4 - core index']
  #allocation1 [shape = 'u32[144,128]{1,0:T(1,128)}', space=vmem, size = 0x12000, scoped, tag = 'internal scratch']
  #allocation2 [shape = 'f32[2,128]{1,0:T(2,128)}', space=vmem, size = 0x400, scoped, tag = 'scratch operand']
  %s0 = inlined_call_operand.vmem [shape: bf16[2,9216], index: 0, kind: input, shape index: {}]
  %s1 = inlined_call_operand.vmem [shape: bf16[9216,128], index: 1, kind: input, shape index: {}]
  %s2 = inlined_call_operand.vmem [shape: f32[1,128], index: 2, kind: input, shape index: {}]
  %s3 = inlined_call_operand.vmem [shape: bf16[128,10], index: 3, kind: input, shape index: {}]
  %s4 = inlined_call_operand.vmem [shape: f32[1,10], index: 4, kind: input, shape index: {}]
  %s5 = inlined_call_operand.hbm [shape: f32[2,10], index: 5, kind: output, shape index: {}]
  %s6 = sld [smem:[#allocation0]]
  $region61: #{net_forward.5} parent=0
    _
  %s8 = ssub.s32 1, %s6
  %s9 = scalar_select 0, %s8, %s6
  $region1: #{net_forward.5} parent=0
    #allocation3 [shape = 'u8[1024]{0}', space=vmem, size = 0x400, scoped, tag = 'output window, operand 0, single buffered']
    #allocation4 [shape = 's32[2]{0}', space=sflag, size = 0x8, scoped, tag = 'scoped memory for net_forward.5']
    %10 = vsyncpa [#allocation4], 0
    loop: start=0, step=1, limit=6
    $region2: #{net_forward.5} parent=1 // loop_pre_header
      _
    $region3: #{net_forward.5} parent=1 // loop_header
      %s12 = sphi 0, %s16
      %p13 = scmp.ge.s32.totalorder %s12, 6
      %s22 = sphi 0, %s24
      %s25 = sphi 0, %s22
      %s26 = sphi 0, %s25
      %s42 = sphi 0, %s26
      %s48 = sphi 0, %s50
      %s51 = sphi 0, %s48
      %s52 = sphi 0, %s51
      %s68 = sphi 0, %s52
      %s72 = sphi 0, %s72
      %s74 = sphi 0, %s72
      %s75 = sphi 0, %s74
      %s89 = sphi 0, %s75
      %s93 = sphi 0, %s93
      %s95 = sphi 0, %s93
      %s96 = sphi 0, %s95
      %s110 = sphi 0, %s96
      %s114 = sphi 0, %s114
      %s116 = sphi 0, %s114
      %s117 = sphi 0, %s116
      %s131 = sphi 0, %s117
      %s135 = sphi 0, %s135
      %s137 = sphi 0, %s135
      %s138 = sphi 0, %s137
      %s152 = sphi 0, %s138
    $region4: #{net_forward.5} parent=1 // loop_header_branch
      %15 = sbr.rel (%p13) target = $region8
    $region5: #{net_forward.5} parent=1 // loop_body
      %s17 = ssub.s32 %s12, 1
      %s18 = ssub.s32 %s12, 2
      %s19 = sadd.s32 %s12, 1
      %s20 = ssub.s32 %s12, %s19
      %p21 = scmp.eq.s32.totalorder %s20, 0
      %s23 = sadd.s32 %s22, 1
      %s24 = scalar_select %p21, %s22, %s23
      %p27 = pneg %p21
      %p28 = scmp.eq.s32.totalorder %s12, 3
      %p29 = por %p27, %p28
      %p30 = scmp.ne.s32.totalorder %s22, %s25
      %p31 = scmp.eq.s32.totalorder %s12, 0
      %p32 = por %p30, %p31
      %p33 = scmp.ne.s32.totalorder %s22, %s25
      %p34 = scmp.eq.s32.totalorder %s17, 3
      %p35 = por %p33, %p34
      %p36 = scmp.ne.s32.totalorder %s25, %s26
      %p37 = scmp.eq.s32.totalorder %s17, 0
      %p38 = por %p36, %p37
      %p39 = scmp.ne.s32.totalorder %s25, %s26
      %p40 = scmp.eq.s32.totalorder %s18, 3
      %p41 = por %p39, %p40
      %p43 = scmp.ne.s32.totalorder %s26, %s42
      %p44 = scmp.eq.s32.totalorder %s18, 0
      %p45 = por %p43, %p44
      %s46 = ssub.s32 %s12, %s19
      %p47 = scmp.eq.s32.totalorder %s46, 0
      %s49 = sadd.s32 %s48, 1
      %s50 = scalar_select %p47, %s48, %s49
      %p53 = pneg %p47
      %p54 = scmp.eq.s32.totalorder %s12, 3
      %p55 = por %p53, %p54
      %p56 = scmp.ne.s32.totalorder %s48, %s51
      %p57 = scmp.eq.s32.totalorder %s12, 0
      %p58 = por %p56, %p57
      %p59 = scmp.ne.s32.totalorder %s48, %s51
      %p60 = scmp.eq.s32.totalorder %s17, 3
      %p61 = por %p59, %p60
      %p62 = scmp.ne.s32.totalorder %s51, %s52
      %p63 = scmp.eq.s32.totalorder %s17, 0
      %p64 = por %p62, %p63
      %p65 = scmp.ne.s32.totalorder %s51, %s52
      %p66 = scmp.eq.s32.totalorder %s18, 3
      %p67 = por %p65, %p66
      %p69 = scmp.ne.s32.totalorder %s52, %s68
      %p70 = scmp.eq.s32.totalorder %s18, 0
      %p71 = por %p69, %p70
      %s73 = sadd.s32 %s72, 1
      %p76 = scmp.eq.s32.totalorder %s12, 3
      %p77 = scmp.ne.s32.totalorder %s72, %s74
      %p78 = scmp.eq.s32.totalorder %s12, 0
      %p79 = por %p77, %p78
      %p80 = scmp.ne.s32.totalorder %s72, %s74
      %p81 = scmp.eq.s32.totalorder %s17, 3
      %p82 = por %p80, %p81
      %p83 = scmp.ne.s32.totalorder %s74, %s75
      %p84 = scmp.eq.s32.totalorder %s17, 0
      %p85 = por %p83, %p84
      %p86 = scmp.ne.s32.totalorder %s74, %s75
      %p87 = scmp.eq.s32.totalorder %s18, 3
      %p88 = por %p86, %p87
      %p90 = scmp.ne.s32.totalorder %s75, %s89
      %p91 = scmp.eq.s32.totalorder %s18, 0
      %p92 = por %p90, %p91
      %s94 = sadd.s32 %s93, 1
      %p97 = scmp.eq.s32.totalorder %s12, 3
      %p98 = scmp.ne.s32.totalorder %s93, %s95
      %p99 = scmp.eq.s32.totalorder %s12, 0
      %p100 = por %p98, %p99
      %p101 = scmp.ne.s32.totalorder %s93, %s95
      %p102 = scmp.eq.s32.totalorder %s17, 3
      %p103 = por %p101, %p102
      %p104 = scmp.ne.s32.totalorder %s95, %s96
      %p105 = scmp.eq.s32.totalorder %s17, 0
      %p106 = por %p104, %p105
      %p107 = scmp.ne.s32.totalorder %s95, %s96
      %p108 = scmp.eq.s32.totalorder %s18, 3
      %p109 = por %p107, %p108
      %p111 = scmp.ne.s32.totalorder %s96, %s110
      %p112 = scmp.eq.s32.totalorder %s18, 0
      %p113 = por %p111, %p112
      %s115 = sadd.s32 %s114, 1
      %p118 = scmp.eq.s32.totalorder %s12, 3
      %p119 = scmp.ne.s32.totalorder %s114, %s116
      %p120 = scmp.eq.s32.totalorder %s12, 0
      %p121 = por %p119, %p120
      %p122 = scmp.ne.s32.totalorder %s114, %s116
      %p123 = scmp.eq.s32.totalorder %s17, 3
      %p124 = por %p122, %p123
      %p125 = scmp.ne.s32.totalorder %s116, %s117
      %p126 = scmp.eq.s32.totalorder %s17, 0
      %p127 = por %p125, %p126
      %p128 = scmp.ne.s32.totalorder %s116, %s117
      %p129 = scmp.eq.s32.totalorder %s18, 3
      %p130 = por %p128, %p129
      %p132 = scmp.ne.s32.totalorder %s117, %s131
      %p133 = scmp.eq.s32.totalorder %s18, 0
      %p134 = por %p132, %p133
      %s136 = sadd.s32 %s135, 1
      %p139 = scmp.eq.s32.totalorder %s12, 3
      %p140 = scmp.ne.s32.totalorder %s135, %s137
      %p141 = scmp.eq.s32.totalorder %s12, 0
      %p142 = por %p140, %p141
      %p143 = scmp.ne.s32.totalorder %s135, %s137
      %p144 = scmp.eq.s32.totalorder %s17, 3
      %p145 = por %p143, %p144
      %p146 = scmp.ne.s32.totalorder %s137, %s138
      %p147 = scmp.eq.s32.totalorder %s17, 0
      %p148 = por %p146, %p147
      %p149 = scmp.ne.s32.totalorder %s137, %s138
      %p150 = scmp.eq.s32.totalorder %s18, 3
      %p151 = por %p149, %p150
      %p153 = scmp.ne.s32.totalorder %s138, %s152
      %p154 = scmp.eq.s32.totalorder %s18, 0
      %p155 = por %p153, %p154
      %p156 = scmp.le.s32.totalorder 1, %s12
      %p157 = scmp.lt.s32.totalorder %s12, 5
      %p158 = pnand %p156, %p157
      %p159 = pneg %p158
      // Predicated region
      $region9: #{net_forward.5} parent=5 // pred_check
        _
      $region10: #{net_forward.5} parent=5 // pred_check_branch
        %161 = sbr.rel (%p158) target = $region12
      $region11: #{net_forward.5} parent=5 // pred_region
        %s162 = ssub.s32 %s12, 1
        // Predicated region
        $region13: #{net_forward.5} parent=11 // pred_check
          %p163 = pneg %p85
        $region14: #{net_forward.5} parent=11 // pred_check_branch
          %165 = sbr.rel (%p163) target = $region16
        $region15: #{net_forward.5} parent=11 // pred_region
          _
        $region16: #{net_forward.5} parent=11 // pred_fallthru
          _
        // Predicated region
        $region17: #{net_forward.5} parent=11 // pred_check
          %p166 = pneg %p106
        $region18: #{net_forward.5} parent=11 // pred_check_branch
          %168 = sbr.rel (%p166) target = $region20
        $region19: #{net_forward.5} parent=11 // pred_region
          _
        $region20: #{net_forward.5} parent=11 // pred_fallthru
          _
        // Predicated region
        $region21: #{net_forward.5} parent=11 // pred_check
          %p169 = pneg %p127
        $region22: #{net_forward.5} parent=11 // pred_check_branch
          %171 = sbr.rel (%p169) target = $region24
        $region23: #{net_forward.5} parent=11 // pred_region
          _
        $region24: #{net_forward.5} parent=11 // pred_fallthru
          _
      $region12: #{net_forward.5} parent=5 // pred_fallthru
        _
      %p172 = scmp.lt.s32.totalorder %s12, 4
      // Predicated region
      $region25: #{net_forward.5} parent=5 // pred_check
        %p173 = pneg %p172
      $region26: #{net_forward.5} parent=5 // pred_check_branch
        %175 = sbr.rel (%p173) target = $region28
      $region27: #{net_forward.5} parent=5 // pred_region
        // Predicated region
        $region29: #{net_forward.5} parent=27 // pred_check
          %p176 = pneg %p32
        $region30: #{net_forward.5} parent=27 // pred_check_branch
          %178 = sbr.rel (%p176) target = $region32
        $region31: #{net_forward.5} parent=27 // pred_region
          %s179 = smul.u32 18, %s12
          %p180 = scmp.lt.s32.totalorder %s179, 71
          %s181 = scalar_select %p180, %s179, 71
          %s182 = scalar_lea.vmem %s0, %s181
          %s183 = smul.u32 18, %s12
        $region32: #{net_forward.5} parent=27 // pred_fallthru
          _
        // Predicated region
        $region33: #{net_forward.5} parent=27 // pred_check
          %p184 = pneg %p58
        $region34: #{net_forward.5} parent=27 // pred_check_branch
          %186 = sbr.rel (%p184) target = $region36
        $region35: #{net_forward.5} parent=27 // pred_region
          %s187 = smul.u32 288, %s12
          %p188 = scmp.lt.s32.totalorder %s187, 1151
          %s189 = scalar_select %p188, %s187, 1151
          %s190 = smul.addr %s189, 4
          %s191 = scalar_lea.vmem %s1, %s190
          %s192 = smul.u32 288, %s12
        $region36: #{net_forward.5} parent=27 // pred_fallthru
          _
      $region28: #{net_forward.5} parent=5 // pred_fallthru
        _
      %p193 = scmp.le.s32.totalorder 1, %s12
      %p194 = scmp.lt.s32.totalorder %s12, 5
      %p195 = pnand %p193, %p194
      %p196 = pneg %p195
      // Predicated region
      $region37: #{net_forward.5} parent=5 // pred_check
        _
      $region38: #{net_forward.5} parent=5 // pred_check_branch
        %198 = sbr.rel (%p195) target = $region40
      $region39: #{net_forward.5} parent=5 // pred_region
        %s199 = ssub.s32 %s12, 1
        %s200 = smul.u32 18, %s17
        %p201 = scmp.lt.s32.totalorder %s200, 71
        %s202 = scalar_select %p201, %s200, 71
        %s203 = scalar_lea.vmem %s0, %s202
        %p204 = pneg %p38
        %p205 = pneg %p35
        %s206 = smul.u32 288, %s17
        %p207 = scmp.lt.s32.totalorder %s206, 1151
        %s208 = scalar_select %p207, %s206, 1151
        %s209 = smul.addr %s208, 4
        %s210 = scalar_lea.vmem %s1, %s209
        %p211 = pneg %p64
        %p212 = pneg %p61
        %p213 = pneg %p85
        %p214 = pneg %p82
        %p215 = pneg %p106
        %p216 = pneg %p103
        %p217 = pneg %p127
        %p218 = pneg %p124
        %p219 = pneg %p148
        %p220 = pneg %p145
        %s221 = smul.u32 18, %s17
        %p222 = scmp.lt.s32.totalorder %s221, 71
        %s223 = scalar_select %p222, %s221, 71
        %s224 = scalar_lea.vmem %s0, %s223
        %s225 = smul.u32 18, %s17
        %s226 = smul.u32 288, %s17
        %p227 = scmp.lt.s32.totalorder %s226, 1151
        %s228 = scalar_select %p227, %s226, 1151
        %s229 = smul.addr %s228, 4
        %s230 = scalar_lea.vmem %s1, %s229
        %s231 = smul.u32 288, %s17
        %p233 = scmp.eq.s32.totalorder %s17, 0
        // Predicated region
        $region41: #{net_forward.5} parent=39 // pred_check
          %p234 = pneg %p233
        $region42: #{net_forward.5} parent=39 // pred_check_branch
          %236 = sbr.rel (%p234) target = $region44
        $region43: #{net_forward.5} parent=39 // pred_region
          %237 = vst [vmem:[#allocation2] sm:$0x3] 0.0
        $region44: #{net_forward.5} parent=39 // pred_fallthru
          _
        %v238 = vld [vmem:[#allocation2] sm:$0x3]
        %v239 = vld [vmem:[%s224] sm:$0xff]
        %v240 = vld [vmem:[%s224 + $0x8] sm:$0xff]
        %v241 = vld [vmem:[%s224 + $0x10] sm:$0x3]
        %v242 = vld [vmem:[%s230] sm:$0xf]
        %v243 = vld [vmem:[%s230 + $0x4] sm:$0xf]
        %v244 = vld [vmem:[%s230 + $0x8] sm:$0xf]
        %v245 = vld [vmem:[%s230 + $0xc] sm:$0xf]
        %v246 = vld [vmem:[%s230 + $0x10] sm:$0xf]
        %v247 = vld [vmem:[%s230 + $0x14] sm:$0xf]
        %v248 = vld [vmem:[%s230 + $0x18] sm:$0xf]
        %v249 = vld [vmem:[%s230 + $0x1c] sm:$0xf]
        %v250 = vld [vmem:[%s230 + $0x20] sm:$0xf]
        %v251 = vld [vmem:[%s230 + $0x24] sm:$0xf]
        %v252 = vld [vmem:[%s230 + $0x28] sm:$0xf]
        %v253 = vld [vmem:[%s230 + $0x2c] sm:$0xf]
        %v254 = vld [vmem:[%s230 + $0x30] sm:$0xf]
        %v255 = vld [vmem:[%s230 + $0x34] sm:$0xf]
        %v256 = vld [vmem:[%s230 + $0x38] sm:$0xf]
        %v257 = vld [vmem:[%s230 + $0x3c] sm:$0xf]
        %v258 = vld [vmem:[%s230 + $0x40] sm:$0xf]
        %v259 = vld [vmem:[%s230 + $0x44] sm:$0xf]
        %v260 = vld [vmem:[%s230 + $0x48] sm:$0xf]
        %v261 = vld [vmem:[%s230 + $0x4c] sm:$0xf]
        %v262 = vld [vmem:[%s230 + $0x50] sm:$0xf]
        %v263 = vld [vmem:[%s230 + $0x54] sm:$0xf]
        %v264 = vld [vmem:[%s230 + $0x58] sm:$0xf]
        %v265 = vld [vmem:[%s230 + $0x5c] sm:$0xf]
        %v266 = vld [vmem:[%s230 + $0x60] sm:$0xf]
        %v267 = vld [vmem:[%s230 + $0x64] sm:$0xf]
        %v268 = vld [vmem:[%s230 + $0x68] sm:$0xf]
        %v269 = vld [vmem:[%s230 + $0x6c] sm:$0xf]
        %v270 = vld [vmem:[%s230 + $0x70] sm:$0xf]
        %v271 = vld [vmem:[%s230 + $0x74] sm:$0xf]
        %v272 = vld [vmem:[%s230 + $0x78] sm:$0xf]
        %v273 = vld [vmem:[%s230 + $0x7c] sm:$0xf]
        %v274 = vld [vmem:[%s230 + $0x80] sm:$0xf]
        %v275 = vld [vmem:[%s230 + $0x84] sm:$0xf]
        %v276 = vld [vmem:[%s230 + $0x88] sm:$0xf]
        %v277 = vld [vmem:[%s230 + $0x8c] sm:$0xf]
        %v278 = vld [vmem:[%s230 + $0x90] sm:$0xf]
        %v279 = vld [vmem:[%s230 + $0x94] sm:$0xf]
        %v280 = vld [vmem:[%s230 + $0x98] sm:$0xf]
        %v281 = vld [vmem:[%s230 + $0x9c] sm:$0xf]
        %v282 = vld [vmem:[%s230 + $0xa0] sm:$0xf]
        %v283 = vld [vmem:[%s230 + $0xa4] sm:$0xf]
        %v284 = vld [vmem:[%s230 + $0xa8] sm:$0xf]
        %v285 = vld [vmem:[%s230 + $0xac] sm:$0xf]
        %v286 = vld [vmem:[%s230 + $0xb0] sm:$0xf]
        %v287 = vld [vmem:[%s230 + $0xb4] sm:$0xf]
        %v288 = vld [vmem:[%s230 + $0xb8] sm:$0xf]
        %v289 = vld [vmem:[%s230 + $0xbc] sm:$0xf]
        %v290 = vld [vmem:[%s230 + $0xc0] sm:$0xf]
        %v291 = vld [vmem:[%s230 + $0xc4] sm:$0xf]
        %v292 = vld [vmem:[%s230 + $0xc8] sm:$0xf]
        %v293 = vld [vmem:[%s230 + $0xcc] sm:$0xf]
        %v294 = vld [vmem:[%s230 + $0xd0] sm:$0xf]
        %v295 = vld [vmem:[%s230 + $0xd4] sm:$0xf]
        %v296 = vld [vmem:[%s230 + $0xd8] sm:$0xf]
        %v297 = vld [vmem:[%s230 + $0xdc] sm:$0xf]
        %v298 = vld [vmem:[%s230 + $0xe0] sm:$0xf]
        %v299 = vld [vmem:[%s230 + $0xe4] sm:$0xf]
        %v300 = vld [vmem:[%s230 + $0xe8] sm:$0xf]
        %v301 = vld [vmem:[%s230 + $0xec] sm:$0xf]
        %v302 = vld [vmem:[%s230 + $0xf0] sm:$0xf]
        %v303 = vld [vmem:[%s230 + $0xf4] sm:$0xf]
        %v304 = vld [vmem:[%s230 + $0xf8] sm:$0xf]
        %v305 = vld [vmem:[%s230 + $0xfc] sm:$0xf]
        %v306 = vld [vmem:[%s230 + $0x100] sm:$0xf]
        %v307 = vld [vmem:[%s230 + $0x104] sm:$0xf]
        %v308 = vld [vmem:[%s230 + $0x108] sm:$0xf]
        %v309 = vld [vmem:[%s230 + $0x10c] sm:$0xf]
        %v310 = vld [vmem:[%s230 + $0x110] sm:$0xf]
        %v311 = vld [vmem:[%s230 + $0x114] sm:$0xf]
        %v312 = vld [vmem:[%s230 + $0x118] sm:$0xf]
        %v313 = vld [vmem:[%s230 + $0x11c] sm:$0xf]
        %v314 = vld [vmem:[%s230 + $0x120] sm:$0xf]
        %v315 = vld [vmem:[%s230 + $0x124] sm:$0xf]
        %v316 = vld [vmem:[%s230 + $0x128] sm:$0xf]
        %v317 = vld [vmem:[%s230 + $0x12c] sm:$0xf]
        %v318 = vld [vmem:[%s230 + $0x130] sm:$0xf]
        %v319 = vld [vmem:[%s230 + $0x134] sm:$0xf]
        %v320 = vld [vmem:[%s230 + $0x138] sm:$0xf]
        %v321 = vld [vmem:[%s230 + $0x13c] sm:$0xf]
        %v322 = vld [vmem:[%s230 + $0x140] sm:$0xf]
        %v323 = vld [vmem:[%s230 + $0x144] sm:$0xf]
        %v324 = vld [vmem:[%s230 + $0x148] sm:$0xf]
        %v325 = vld [vmem:[%s230 + $0x14c] sm:$0xf]
        %v326 = vld [vmem:[%s230 + $0x150] sm:$0xf]
        %v327 = vld [vmem:[%s230 + $0x154] sm:$0xf]
        %v328 = vld [vmem:[%s230 + $0x158] sm:$0xf]
        %v329 = vld [vmem:[%s230 + $0x15c] sm:$0xf]
        %v330 = vld [vmem:[%s230 + $0x160] sm:$0xf]
        %v331 = vld [vmem:[%s230 + $0x164] sm:$0xf]
        %v332 = vld [vmem:[%s230 + $0x168] sm:$0xf]
        %v333 = vld [vmem:[%s230 + $0x16c] sm:$0xf]
        %v334 = vld [vmem:[%s230 + $0x170] sm:$0xf]
        %v335 = vld [vmem:[%s230 + $0x174] sm:$0xf]
        %v336 = vld [vmem:[%s230 + $0x178] sm:$0xf]
        %v337 = vld [vmem:[%s230 + $0x17c] sm:$0xf]
        %v338 = vld [vmem:[%s230 + $0x180] sm:$0xf]
        %v339 = vld [vmem:[%s230 + $0x184] sm:$0xf]
        %v340 = vld [vmem:[%s230 + $0x188] sm:$0xf]
        %v341 = vld [vmem:[%s230 + $0x18c] sm:$0xf]
        %v342 = vld [vmem:[%s230 + $0x190] sm:$0xf]
        %v343 = vld [vmem:[%s230 + $0x194] sm:$0xf]
        %v344 = vld [vmem:[%s230 + $0x198] sm:$0xf]
        %v345 = vld [vmem:[%s230 + $0x19c] sm:$0xf]
        %v346 = vld [vmem:[%s230 + $0x1a0] sm:$0xf]
        %v347 = vld [vmem:[%s230 + $0x1a4] sm:$0xf]
        %v348 = vld [vmem:[%s230 + $0x1a8] sm:$0xf]
        %v349 = vld [vmem:[%s230 + $0x1ac] sm:$0xf]
        %v350 = vld [vmem:[%s230 + $0x1b0] sm:$0xf]
        %v351 = vld [vmem:[%s230 + $0x1b4] sm:$0xf]
        %v352 = vld [vmem:[%s230 + $0x1b8] sm:$0xf]
        %v353 = vld [vmem:[%s230 + $0x1bc] sm:$0xf]
        %v354 = vld [vmem:[%s230 + $0x1c0] sm:$0xf]
        %v355 = vld [vmem:[%s230 + $0x1c4] sm:$0xf]
        %v356 = vld [vmem:[%s230 + $0x1c8] sm:$0xf]
        %v357 = vld [vmem:[%s230 + $0x1cc] sm:$0xf]
        %v358 = vld [vmem:[%s230 + $0x1d0] sm:$0xf]
        %v359 = vld [vmem:[%s230 + $0x1d4] sm:$0xf]
        %v360 = vld [vmem:[%s230 + $0x1d8] sm:$0xf]
        %v361 = vld [vmem:[%s230 + $0x1dc] sm:$0xf]
        %v362 = vld [vmem:[%s230 + $0x1e0] sm:$0xf]
        %v363 = vld [vmem:[%s230 + $0x1e4] sm:$0xf]
        %v364 = vld [vmem:[%s230 + $0x1e8] sm:$0xf]
        %v365 = vld [vmem:[%s230 + $0x1ec] sm:$0xf]
        %v366 = vld [vmem:[%s230 + $0x1f0] sm:$0xf]
        %v367 = vld [vmem:[%s230 + $0x1f4] sm:$0xf]
        %v368 = vld [vmem:[%s230 + $0x1f8] sm:$0xf]
        %v369 = vld [vmem:[%s230 + $0x1fc] sm:$0xf]
        %v370 = vld [vmem:[%s230 + $0x200] sm:$0xf]
        %v371 = vld [vmem:[%s230 + $0x204] sm:$0xf]
        %v372 = vld [vmem:[%s230 + $0x208] sm:$0xf]
        %v373 = vld [vmem:[%s230 + $0x20c] sm:$0xf]
        %v374 = vld [vmem:[%s230 + $0x210] sm:$0xf]
        %v375 = vld [vmem:[%s230 + $0x214] sm:$0xf]
        %v376 = vld [vmem:[%s230 + $0x218] sm:$0xf]
        %v377 = vld [vmem:[%s230 + $0x21c] sm:$0xf]
        %v378 = vld [vmem:[%s230 + $0x220] sm:$0xf]
        %v379 = vld [vmem:[%s230 + $0x224] sm:$0xf]
        %v380 = vld [vmem:[%s230 + $0x228] sm:$0xf]
        %v381 = vld [vmem:[%s230 + $0x22c] sm:$0xf]
        %v382 = vld [vmem:[%s230 + $0x230] sm:$0xf]
        %v383 = vld [vmem:[%s230 + $0x234] sm:$0xf]
        %v384 = vld [vmem:[%s230 + $0x238] sm:$0xf]
        %v385 = vld [vmem:[%s230 + $0x23c] sm:$0xf]
        %v386 = vld [vmem:[%s230 + $0x240] sm:$0xf]
        %v387 = vld [vmem:[%s230 + $0x244] sm:$0xf]
        %v388 = vld [vmem:[%s230 + $0x248] sm:$0xf]
        %v389 = vld [vmem:[%s230 + $0x24c] sm:$0xf]
        %v390 = vld [vmem:[%s230 + $0x250] sm:$0xf]
        %v391 = vld [vmem:[%s230 + $0x254] sm:$0xf]
        %v392 = vld [vmem:[%s230 + $0x258] sm:$0xf]
        %v393 = vld [vmem:[%s230 + $0x25c] sm:$0xf]
        %v394 = vld [vmem:[%s230 + $0x260] sm:$0xf]
        %v395 = vld [vmem:[%s230 + $0x264] sm:$0xf]
        %v396 = vld [vmem:[%s230 + $0x268] sm:$0xf]
        %v397 = vld [vmem:[%s230 + $0x26c] sm:$0xf]
        %v398 = vld [vmem:[%s230 + $0x270] sm:$0xf]
        %v399 = vld [vmem:[%s230 + $0x274] sm:$0xf]
        %v400 = vld [vmem:[%s230 + $0x278] sm:$0xf]
        %v401 = vld [vmem:[%s230 + $0x27c] sm:$0xf]
        %v402 = vld [vmem:[%s230 + $0x280] sm:$0xf]
        %v403 = vld [vmem:[%s230 + $0x284] sm:$0xf]
        %v404 = vld [vmem:[%s230 + $0x288] sm:$0xf]
        %v405 = vld [vmem:[%s230 + $0x28c] sm:$0xf]
        %v406 = vld [vmem:[%s230 + $0x290] sm:$0xf]
        %v407 = vld [vmem:[%s230 + $0x294] sm:$0xf]
        %v408 = vld [vmem:[%s230 + $0x298] sm:$0xf]
        %v409 = vld [vmem:[%s230 + $0x29c] sm:$0xf]
        %v410 = vld [vmem:[%s230 + $0x2a0] sm:$0xf]
        %v411 = vld [vmem:[%s230 + $0x2a4] sm:$0xf]
        %v412 = vld [vmem:[%s230 + $0x2a8] sm:$0xf]
        %v413 = vld [vmem:[%s230 + $0x2ac] sm:$0xf]
        %v414 = vld [vmem:[%s230 + $0x2b0] sm:$0xf]
        %v415 = vld [vmem:[%s230 + $0x2b4] sm:$0xf]
        %v416 = vld [vmem:[%s230 + $0x2b8] sm:$0xf]
        %v417 = vld [vmem:[%s230 + $0x2bc] sm:$0xf]
        %v418 = vld [vmem:[%s230 + $0x2c0] sm:$0xf]
        %v419 = vld [vmem:[%s230 + $0x2c4] sm:$0xf]
        %v420 = vld [vmem:[%s230 + $0x2c8] sm:$0xf]
        %v421 = vld [vmem:[%s230 + $0x2cc] sm:$0xf]
        %v422 = vld [vmem:[%s230 + $0x2d0] sm:$0xf]
        %v423 = vld [vmem:[%s230 + $0x2d4] sm:$0xf]
        %v424 = vld [vmem:[%s230 + $0x2d8] sm:$0xf]
        %v425 = vld [vmem:[%s230 + $0x2dc] sm:$0xf]
        %v426 = vld [vmem:[%s230 + $0x2e0] sm:$0xf]
        %v427 = vld [vmem:[%s230 + $0x2e4] sm:$0xf]
        %v428 = vld [vmem:[%s230 + $0x2e8] sm:$0xf]
        %v429 = vld [vmem:[%s230 + $0x2ec] sm:$0xf]
        %v430 = vld [vmem:[%s230 + $0x2f0] sm:$0xf]
        %v431 = vld [vmem:[%s230 + $0x2f4] sm:$0xf]
        %v432 = vld [vmem:[%s230 + $0x2f8] sm:$0xf]
        %v433 = vld [vmem:[%s230 + $0x2fc] sm:$0xf]
        %v434 = vld [vmem:[%s230 + $0x300] sm:$0xf]
        %v435 = vld [vmem:[%s230 + $0x304] sm:$0xf]
        %v436 = vld [vmem:[%s230 + $0x308] sm:$0xf]
        %v437 = vld [vmem:[%s230 + $0x30c] sm:$0xf]
        %v438 = vld [vmem:[%s230 + $0x310] sm:$0xf]
        %v439 = vld [vmem:[%s230 + $0x314] sm:$0xf]
        %v440 = vld [vmem:[%s230 + $0x318] sm:$0xf]
        %v441 = vld [vmem:[%s230 + $0x31c] sm:$0xf]
        %v442 = vld [vmem:[%s230 + $0x320] sm:$0xf]
        %v443 = vld [vmem:[%s230 + $0x324] sm:$0xf]
        %v444 = vld [vmem:[%s230 + $0x328] sm:$0xf]
        %v445 = vld [vmem:[%s230 + $0x32c] sm:$0xf]
        %v446 = vld [vmem:[%s230 + $0x330] sm:$0xf]
        %v447 = vld [vmem:[%s230 + $0x334] sm:$0xf]
        %v448 = vld [vmem:[%s230 + $0x338] sm:$0xf]
        %v449 = vld [vmem:[%s230 + $0x33c] sm:$0xf]
        %v450 = vld [vmem:[%s230 + $0x340] sm:$0xf]
        %v451 = vld [vmem:[%s230 + $0x344] sm:$0xf]
        %v452 = vld [vmem:[%s230 + $0x348] sm:$0xf]
        %v453 = vld [vmem:[%s230 + $0x34c] sm:$0xf]
        %v454 = vld [vmem:[%s230 + $0x350] sm:$0xf]
        %v455 = vld [vmem:[%s230 + $0x354] sm:$0xf]
        %v456 = vld [vmem:[%s230 + $0x358] sm:$0xf]
        %v457 = vld [vmem:[%s230 + $0x35c] sm:$0xf]
        %v458 = vld [vmem:[%s230 + $0x360] sm:$0xf]
        %v459 = vld [vmem:[%s230 + $0x364] sm:$0xf]
        %v460 = vld [vmem:[%s230 + $0x368] sm:$0xf]
        %v461 = vld [vmem:[%s230 + $0x36c] sm:$0xf]
        %v462 = vld [vmem:[%s230 + $0x370] sm:$0xf]
        %v463 = vld [vmem:[%s230 + $0x374] sm:$0xf]
        %v464 = vld [vmem:[%s230 + $0x378] sm:$0xf]
        %v465 = vld [vmem:[%s230 + $0x37c] sm:$0xf]
        %v466 = vld [vmem:[%s230 + $0x380] sm:$0xf]
        %v467 = vld [vmem:[%s230 + $0x384] sm:$0xf]
        %v468 = vld [vmem:[%s230 + $0x388] sm:$0xf]
        %v469 = vld [vmem:[%s230 + $0x38c] sm:$0xf]
        %v470 = vld [vmem:[%s230 + $0x390] sm:$0xf]
        %v471 = vld [vmem:[%s230 + $0x394] sm:$0xf]
        %v472 = vld [vmem:[%s230 + $0x398] sm:$0xf]
        %v473 = vld [vmem:[%s230 + $0x39c] sm:$0xf]
        %v474 = vld [vmem:[%s230 + $0x3a0] sm:$0xf]
        %v475 = vld [vmem:[%s230 + $0x3a4] sm:$0xf]
        %v476 = vld [vmem:[%s230 + $0x3a8] sm:$0xf]
        %v477 = vld [vmem:[%s230 + $0x3ac] sm:$0xf]
        %v478 = vld [vmem:[%s230 + $0x3b0] sm:$0xf]
        %v479 = vld [vmem:[%s230 + $0x3b4] sm:$0xf]
        %v480 = vld [vmem:[%s230 + $0x3b8] sm:$0xf]
        %v481 = vld [vmem:[%s230 + $0x3bc] sm:$0xf]
        %v482 = vld [vmem:[%s230 + $0x3c0] sm:$0xf]
        %v483 = vld [vmem:[%s230 + $0x3c4] sm:$0xf]
        %v484 = vld [vmem:[%s230 + $0x3c8] sm:$0xf]
        %v485 = vld [vmem:[%s230 + $0x3cc] sm:$0xf]
        %v486 = vld [vmem:[%s230 + $0x3d0] sm:$0xf]
        %v487 = vld [vmem:[%s230 + $0x3d4] sm:$0xf]
        %v488 = vld [vmem:[%s230 + $0x3d8] sm:$0xf]
        %v489 = vld [vmem:[%s230 + $0x3dc] sm:$0xf]
        %v490 = vld [vmem:[%s230 + $0x3e0] sm:$0xf]
        %v491 = vld [vmem:[%s230 + $0x3e4] sm:$0xf]
        %v492 = vld [vmem:[%s230 + $0x3e8] sm:$0xf]
        %v493 = vld [vmem:[%s230 + $0x3ec] sm:$0xf]
        %v494 = vld [vmem:[%s230 + $0x3f0] sm:$0xf]
        %v495 = vld [vmem:[%s230 + $0x3f4] sm:$0xf]
        %v496 = vld [vmem:[%s230 + $0x3f8] sm:$0xf]
        %v497 = vld [vmem:[%s230 + $0x3fc] sm:$0xf]
        %v498 = vld [vmem:[%s230 + $0x400] sm:$0xf]
        %v499 = vld [vmem:[%s230 + $0x404] sm:$0xf]
        %v500 = vld [vmem:[%s230 + $0x408] sm:$0xf]
        %v501 = vld [vmem:[%s230 + $0x40c] sm:$0xf]
        %v502 = vld [vmem:[%s230 + $0x410] sm:$0xf]
        %v503 = vld [vmem:[%s230 + $0x414] sm:$0xf]
        %v504 = vld [vmem:[%s230 + $0x418] sm:$0xf]
        %v505 = vld [vmem:[%s230 + $0x41c] sm:$0xf]
        %v506 = vld [vmem:[%s230 + $0x420] sm:$0xf]
        %v507 = vld [vmem:[%s230 + $0x424] sm:$0xf]
        %v508 = vld [vmem:[%s230 + $0x428] sm:$0xf]
        %v509 = vld [vmem:[%s230 + $0x42c] sm:$0xf]
        %v510 = vld [vmem:[%s230 + $0x430] sm:$0xf]
        %v511 = vld [vmem:[%s230 + $0x434] sm:$0xf]
        %v512 = vld [vmem:[%s230 + $0x438] sm:$0xf]
        %v513 = vld [vmem:[%s230 + $0x43c] sm:$0xf]
        %v514 = vld [vmem:[%s230 + $0x440] sm:$0xf]
        %v515 = vld [vmem:[%s230 + $0x444] sm:$0xf]
        %v516 = vld [vmem:[%s230 + $0x448] sm:$0xf]
        %v517 = vld [vmem:[%s230 + $0x44c] sm:$0xf]
        %v518 = vld [vmem:[%s230 + $0x450] sm:$0xf]
        %v519 = vld [vmem:[%s230 + $0x454] sm:$0xf]
        %v520 = vld [vmem:[%s230 + $0x458] sm:$0xf]
        %v521 = vld [vmem:[%s230 + $0x45c] sm:$0xf]
        %v522 = vld [vmem:[%s230 + $0x460] sm:$0xf]
        %v523 = vld [vmem:[%s230 + $0x464] sm:$0xf]
        %v524 = vld [vmem:[%s230 + $0x468] sm:$0xf]
        %v525 = vld [vmem:[%s230 + $0x46c] sm:$0xf]
        %v526 = vld [vmem:[%s230 + $0x470] sm:$0xf]
        %v527 = vld [vmem:[%s230 + $0x474] sm:$0xf]
        %v528 = vld [vmem:[%s230 + $0x478] sm:$0xf]
        %v529 = vld [vmem:[%s230 + $0x47c] sm:$0xf]
        %v533 = vcombine.high %v239, %v239
        %v535 = vunpack.c.l.s4 1966171168
        %v536 = vunpack.c.0.s8 %v535
        %v537 = vlaneseq
        %v538 = vshrl.u32 %v537, 7
        %v539 = vsub.s32 %v536, %v538
        %v540 = vrot.slane %v239, %v539
        %v542 = vunpack.c.l.s4 1966171168
        %v543 = vunpack.c.0.s8 %v542
        %v544 = vlaneseq
        %v545 = vshrl.u32 %v544, 7
        %v546 = vsub.s32 %v543, %v545
        %v547 = vrot.slane %v533, %v546
        %v548 = vcombine.high %v540, %v540
        %v549 = vcombine.high %v547, %v547
        %v551 = vunpack.c.l.s4 1966171168
        %v552 = vunpack.c.0.s8 %v551
        %v553 = vlaneseq
        %v554 = vshrl.u32 %v553, 7
        %v555 = vsub.s32 %v552, %v554
        %v556 = vrot.slane %v540, %v555
        %v558 = vunpack.c.l.s4 1966171168
        %v559 = vunpack.c.0.s8 %v558
        %v560 = vlaneseq
        %v561 = vshrl.u32 %v560, 7
        %v562 = vsub.s32 %v559, %v561
        %v563 = vrot.slane %v547, %v562
        %v565 = vunpack.c.l.s4 1966171168
        %v566 = vunpack.c.0.s8 %v565
        %v567 = vlaneseq
        %v568 = vshrl.u32 %v567, 7
        %v569 = vsub.s32 %v566, %v568
        %v570 = vrot.slane %v548, %v569
        %v572 = vunpack.c.l.s4 1966171168
        %v573 = vunpack.c.0.s8 %v572
        %v574 = vlaneseq
        %v575 = vshrl.u32 %v574, 7
        %v576 = vsub.s32 %v573, %v575
        %v577 = vrot.slane %v549, %v576
        %v578 = vcombine.high %v556, %v556
        %v579 = vcombine.high %v563, %v563
        %v580 = vcombine.high %v570, %v570
        %v581 = vcombine.high %v577, %v577
        %v582 = vcombine.high %v240, %v240
        %v584 = vunpack.c.l.s4 1966171168
        %v585 = vunpack.c.0.s8 %v584
        %v586 = vlaneseq
        %v587 = vshrl.u32 %v586, 7
        %v588 = vsub.s32 %v585, %v587
        %v589 = vrot.slane %v240, %v588
        %v591 = vunpack.c.l.s4 1966171168
        %v592 = vunpack.c.0.s8 %v591
        %v593 = vlaneseq
        %v594 = vshrl.u32 %v593, 7
        %v595 = vsub.s32 %v592, %v594
        %v596 = vrot.slane %v582, %v595
        %v597 = vcombine.high %v589, %v589
        %v598 = vcombine.high %v596, %v596
        %v600 = vunpack.c.l.s4 1966171168
        %v601 = vunpack.c.0.s8 %v600
        %v602 = vlaneseq
        %v603 = vshrl.u32 %v602, 7
        %v604 = vsub.s32 %v601, %v603
        %v605 = vrot.slane %v589, %v604
        %v607 = vunpack.c.l.s4 1966171168
        %v608 = vunpack.c.0.s8 %v607
        %v609 = vlaneseq
        %v610 = vshrl.u32 %v609, 7
        %v611 = vsub.s32 %v608, %v610
        %v612 = vrot.slane %v596, %v611
        %v614 = vunpack.c.l.s4 1966171168
        %v615 = vunpack.c.0.s8 %v614
        %v616 = vlaneseq
        %v617 = vshrl.u32 %v616, 7
        %v618 = vsub.s32 %v615, %v617
        %v619 = vrot.slane %v597, %v618
        %v621 = vunpack.c.l.s4 1966171168
        %v622 = vunpack.c.0.s8 %v621
        %v623 = vlaneseq
        %v624 = vshrl.u32 %v623, 7
        %v625 = vsub.s32 %v622, %v624
        %v626 = vrot.slane %v598, %v625
        %v627 = vcombine.high %v605, %v605
        %v628 = vcombine.high %v612, %v612
        %v629 = vcombine.high %v619, %v619
        %v630 = vcombine.high %v626, %v626
        %v632 = vunpack.c.l.s4 1966171168
        %v633 = vunpack.c.0.s8 %v632
        %v634 = vlaneseq
        %v635 = vshrl.u32 %v634, 7
        %v636 = vsub.s32 %v633, %v635
        %v637 = vrot.slane %v241, %v636
        %v638 = vcombine.high %v637, %v637
        %v640 = vunpack.c.l.s4 1966171168
        %v641 = vunpack.c.0.s8 %v640
        %v642 = vlaneseq
        %v643 = vshrl.u32 %v642, 7
        %v644 = vsub.s32 %v641, %v643
        %v645 = vrot.slane %v637, %v644
        %v647 = vunpack.c.l.s4 1966171168
        %v648 = vunpack.c.0.s8 %v647
        %v649 = vlaneseq
        %v650 = vshrl.u32 %v649, 7
        %v651 = vsub.s32 %v648, %v650
        %v652 = vrot.slane %v638, %v651
        %v959 = vunpack.c.l.b16 %v242
        %v960 = vunpack.c.l.b16 %v243
        %v961 = vunpack.c.l.b16 %v244
        %v962 = vunpack.c.l.b16 %v245
        %v963 = vunpack.c.l.b16 %v246
        %v964 = vunpack.c.l.b16 %v247
        %v965 = vunpack.c.l.b16 %v248
        %v966 = vunpack.c.l.b16 %v249
        %v967 = vunpack.c.l.b16 %v250
        %v968 = vunpack.c.l.b16 %v251
        %v969 = vunpack.c.l.b16 %v252
        %v970 = vunpack.c.l.b16 %v253
        %v971 = vunpack.c.l.b16 %v254
        %v972 = vunpack.c.l.b16 %v255
        %v973 = vunpack.c.l.b16 %v256
        %v974 = vunpack.c.l.b16 %v257
        %v975 = vunpack.c.l.b16 %v258
        %v976 = vunpack.c.l.b16 %v259
        %v977 = vunpack.c.l.b16 %v260
        %v978 = vunpack.c.l.b16 %v261
        %v979 = vunpack.c.l.b16 %v262
        %v980 = vunpack.c.l.b16 %v263
        %v981 = vunpack.c.l.b16 %v264
        %v982 = vunpack.c.l.b16 %v265
        %v983 = vunpack.c.l.b16 %v266
        %v984 = vunpack.c.l.b16 %v267
        %v985 = vunpack.c.l.b16 %v268
        %v986 = vunpack.c.l.b16 %v269
        %v987 = vunpack.c.l.b16 %v270
        %v988 = vunpack.c.l.b16 %v271
        %v989 = vunpack.c.l.b16 %v272
        %v990 = vunpack.c.l.b16 %v273
        %v991 = vunpack.c.l.b16 %v274
        %v992 = vunpack.c.l.b16 %v275
        %v993 = vunpack.c.l.b16 %v276
        %v994 = vunpack.c.l.b16 %v277
        %v995 = vunpack.c.l.b16 %v278
        %v996 = vunpack.c.l.b16 %v279
        %v997 = vunpack.c.l.b16 %v280
        %v998 = vunpack.c.l.b16 %v281
        %v999 = vunpack.c.l.b16 %v282
        %v1000 = vunpack.c.l.b16 %v283
        %v1001 = vunpack.c.l.b16 %v284
        %v1002 = vunpack.c.l.b16 %v285
        %v1003 = vunpack.c.l.b16 %v286
        %v1004 = vunpack.c.l.b16 %v287
        %v1005 = vunpack.c.l.b16 %v288
        %v1006 = vunpack.c.l.b16 %v289
        %v1007 = vunpack.c.l.b16 %v290
        %v1008 = vunpack.c.l.b16 %v291
        %v1009 = vunpack.c.l.b16 %v292
        %v1010 = vunpack.c.l.b16 %v293
        %v1011 = vunpack.c.l.b16 %v294
        %v1012 = vunpack.c.l.b16 %v295
        %v1013 = vunpack.c.l.b16 %v296
        %v1014 = vunpack.c.l.b16 %v297
        %v1015 = vunpack.c.l.b16 %v298
        %v1016 = vunpack.c.l.b16 %v299
        %v1017 = vunpack.c.l.b16 %v300
        %v1018 = vunpack.c.l.b16 %v301
        %v1019 = vunpack.c.l.b16 %v302
        %v1020 = vunpack.c.l.b16 %v303
        %v1021 = vunpack.c.l.b16 %v304
        %v1022 = vunpack.c.l.b16 %v305
        %v1023 = vunpack.c.l.b16 %v306
        %v1024 = vunpack.c.l.b16 %v307
        %v1025 = vunpack.c.l.b16 %v308
        %v1026 = vunpack.c.l.b16 %v309
        %v1027 = vunpack.c.l.b16 %v310
        %v1028 = vunpack.c.l.b16 %v311
        %v1029 = vunpack.c.l.b16 %v312
        %v1030 = vunpack.c.l.b16 %v313
        %v1031 = vunpack.c.l.b16 %v314
        %v1032 = vunpack.c.l.b16 %v315
        %v1033 = vunpack.c.l.b16 %v316
        %v1034 = vunpack.c.l.b16 %v317
        %v1035 = vunpack.c.l.b16 %v318
        %v1036 = vunpack.c.l.b16 %v319
        %v1037 = vunpack.c.l.b16 %v320
        %v1038 = vunpack.c.l.b16 %v321
        %v1039 = vunpack.c.l.b16 %v322
        %v1040 = vunpack.c.l.b16 %v323
        %v1041 = vunpack.c.l.b16 %v324
        %v1042 = vunpack.c.l.b16 %v325
        %v1043 = vunpack.c.l.b16 %v326
        %v1044 = vunpack.c.l.b16 %v327
        %v1045 = vunpack.c.l.b16 %v328
        %v1046 = vunpack.c.l.b16 %v329
        %v1047 = vunpack.c.l.b16 %v330
        %v1048 = vunpack.c.l.b16 %v331
        %v1049 = vunpack.c.l.b16 %v332
        %v1050 = vunpack.c.l.b16 %v333
        %v1051 = vunpack.c.l.b16 %v334
        %v1052 = vunpack.c.l.b16 %v335
        %v1053 = vunpack.c.l.b16 %v336
        %v1054 = vunpack.c.l.b16 %v337
        %v1055 = vunpack.c.l.b16 %v338
        %v1056 = vunpack.c.l.b16 %v339
        %v1057 = vunpack.c.l.b16 %v340
        %v1058 = vunpack.c.l.b16 %v341
        %v1059 = vunpack.c.l.b16 %v342
        %v1060 = vunpack.c.l.b16 %v343
        %v1061 = vunpack.c.l.b16 %v344
        %v1062 = vunpack.c.l.b16 %v345
        %v1063 = vunpack.c.l.b16 %v346
        %v1064 = vunpack.c.l.b16 %v347
        %v1065 = vunpack.c.l.b16 %v348
        %v1066 = vunpack.c.l.b16 %v349
        %v1067 = vunpack.c.l.b16 %v350
        %v1068 = vunpack.c.l.b16 %v351
        %v1069 = vunpack.c.l.b16 %v352
        %v1070 = vunpack.c.l.b16 %v353
        %v1071 = vunpack.c.l.b16 %v354
        %v1072 = vunpack.c.l.b16 %v355
        %v1073 = vunpack.c.l.b16 %v356
        %v1074 = vunpack.c.l.b16 %v357
        %v1075 = vunpack.c.l.b16 %v358
        %v1076 = vunpack.c.l.b16 %v359
        %v1077 = vunpack.c.l.b16 %v360
        %v1078 = vunpack.c.l.b16 %v361
        %v1079 = vunpack.c.l.b16 %v362
        %v1080 = vunpack.c.l.b16 %v363
        %v1081 = vunpack.c.l.b16 %v364
        %v1082 = vunpack.c.l.b16 %v365
        %v1083 = vunpack.c.l.b16 %v366
        %v1084 = vunpack.c.l.b16 %v367
        %v1085 = vunpack.c.l.b16 %v368
        %v1086 = vunpack.c.l.b16 %v369
        %v1087 = vunpack.c.l.b16 %v370
        %v1088 = vunpack.c.l.b16 %v371
        %v1089 = vunpack.c.l.b16 %v372
        %v1090 = vunpack.c.l.b16 %v373
        %v1091 = vunpack.c.l.b16 %v374
        %v1092 = vunpack.c.l.b16 %v375
        %v1093 = vunpack.c.l.b16 %v376
        %v1094 = vunpack.c.l.b16 %v377
        %v1095 = vunpack.c.l.b16 %v378
        %v1096 = vunpack.c.l.b16 %v379
        %v1097 = vunpack.c.l.b16 %v380
        %v1098 = vunpack.c.l.b16 %v381
        %v1099 = vunpack.c.l.b16 %v382
        %v1100 = vunpack.c.l.b16 %v383
        %v1101 = vunpack.c.l.b16 %v384
        %v1102 = vunpack.c.l.b16 %v385
        %v1103 = vunpack.c.l.b16 %v386
        %v1104 = vunpack.c.l.b16 %v387
        %v1105 = vunpack.c.l.b16 %v388
        %v1106 = vunpack.c.l.b16 %v389
        %v1107 = vunpack.c.l.b16 %v390
        %v1108 = vunpack.c.l.b16 %v391
        %v1109 = vunpack.c.l.b16 %v392
        %v1110 = vunpack.c.l.b16 %v393
        %v1111 = vunpack.c.l.b16 %v394
        %v1112 = vunpack.c.l.b16 %v395
        %v1113 = vunpack.c.l.b16 %v396
        %v1114 = vunpack.c.l.b16 %v397
        %v1115 = vunpack.c.l.b16 %v398
        %v1116 = vunpack.c.l.b16 %v399
        %v1117 = vunpack.c.l.b16 %v400
        %v1118 = vunpack.c.l.b16 %v401
        %v1119 = vunpack.c.l.b16 %v402
        %v1120 = vunpack.c.l.b16 %v403
        %v1121 = vunpack.c.l.b16 %v404
        %v1122 = vunpack.c.l.b16 %v405
        %v1123 = vunpack.c.l.b16 %v406
        %v1124 = vunpack.c.l.b16 %v407
        %v1125 = vunpack.c.l.b16 %v408
        %v1126 = vunpack.c.l.b16 %v409
        %v1127 = vunpack.c.l.b16 %v410
        %v1128 = vunpack.c.l.b16 %v411
        %v1129 = vunpack.c.l.b16 %v412
        %v1130 = vunpack.c.l.b16 %v413
        %v1131 = vunpack.c.l.b16 %v414
        %v1132 = vunpack.c.l.b16 %v415
        %v1133 = vunpack.c.l.b16 %v416
        %v1134 = vunpack.c.l.b16 %v417
        %v1135 = vunpack.c.l.b16 %v418
        %v1136 = vunpack.c.l.b16 %v419
        %v1137 = vunpack.c.l.b16 %v420
        %v1138 = vunpack.c.l.b16 %v421
        %v1139 = vunpack.c.l.b16 %v422
        %v1140 = vunpack.c.l.b16 %v423
        %v1141 = vunpack.c.l.b16 %v424
        %v1142 = vunpack.c.l.b16 %v425
        %v1143 = vunpack.c.l.b16 %v426
        %v1144 = vunpack.c.l.b16 %v427
        %v1145 = vunpack.c.l.b16 %v428
        %v1146 = vunpack.c.l.b16 %v429
        %v1147 = vunpack.c.l.b16 %v430
        %v1148 = vunpack.c.l.b16 %v431
        %v1149 = vunpack.c.l.b16 %v432
        %v1150 = vunpack.c.l.b16 %v433
        %v1151 = vunpack.c.l.b16 %v434
        %v1152 = vunpack.c.l.b16 %v435
        %v1153 = vunpack.c.l.b16 %v436
        %v1154 = vunpack.c.l.b16 %v437
        %v1155 = vunpack.c.l.b16 %v438
        %v1156 = vunpack.c.l.b16 %v439
        %v1157 = vunpack.c.l.b16 %v440
        %v1158 = vunpack.c.l.b16 %v441
        %v1159 = vunpack.c.l.b16 %v442
        %v1160 = vunpack.c.l.b16 %v443
        %v1161 = vunpack.c.l.b16 %v444
        %v1162 = vunpack.c.l.b16 %v445
        %v1163 = vunpack.c.l.b16 %v446
        %v1164 = vunpack.c.l.b16 %v447
        %v1165 = vunpack.c.l.b16 %v448
        %v1166 = vunpack.c.l.b16 %v449
        %v1167 = vunpack.c.l.b16 %v450
        %v1168 = vunpack.c.l.b16 %v451
        %v1169 = vunpack.c.l.b16 %v452
        %v1170 = vunpack.c.l.b16 %v453
        %v1171 = vunpack.c.l.b16 %v454
        %v1172 = vunpack.c.l.b16 %v455
        %v1173 = vunpack.c.l.b16 %v456
        %v1174 = vunpack.c.l.b16 %v457
        %v1175 = vunpack.c.l.b16 %v458
        %v1176 = vunpack.c.l.b16 %v459
        %v1177 = vunpack.c.l.b16 %v460
        %v1178 = vunpack.c.l.b16 %v461
        %v1179 = vunpack.c.l.b16 %v462
        %v1180 = vunpack.c.l.b16 %v463
        %v1181 = vunpack.c.l.b16 %v464
        %v1182 = vunpack.c.l.b16 %v465
        %v1183 = vunpack.c.l.b16 %v466
        %v1184 = vunpack.c.l.b16 %v467
        %v1185 = vunpack.c.l.b16 %v468
        %v1186 = vunpack.c.l.b16 %v469
        %v1187 = vunpack.c.l.b16 %v470
        %v1188 = vunpack.c.l.b16 %v471
        %v1189 = vunpack.c.l.b16 %v472
        %v1190 = vunpack.c.l.b16 %v473
        %v1191 = vunpack.c.l.b16 %v474
        %v1192 = vunpack.c.l.b16 %v475
        %v1193 = vunpack.c.l.b16 %v476
        %v1194 = vunpack.c.l.b16 %v477
        %v1195 = vunpack.c.l.b16 %v478
        %v1196 = vunpack.c.l.b16 %v479
        %v1197 = vunpack.c.l.b16 %v480
        %v1198 = vunpack.c.l.b16 %v481
        %v1199 = vunpack.c.l.b16 %v482
        %v1200 = vunpack.c.l.b16 %v483
        %v1201 = vunpack.c.l.b16 %v484
        %v1202 = vunpack.c.l.b16 %v485
        %v1203 = vunpack.c.l.b16 %v486
        %v1204 = vunpack.c.l.b16 %v487
        %v1205 = vunpack.c.l.b16 %v488
        %v1206 = vunpack.c.l.b16 %v489
        %v1207 = vunpack.c.l.b16 %v490
        %v1208 = vunpack.c.l.b16 %v491
        %v1209 = vunpack.c.l.b16 %v492
        %v1210 = vunpack.c.l.b16 %v493
        %v1211 = vunpack.c.l.b16 %v494
        %v1212 = vunpack.c.l.b16 %v495
        %v1213 = vunpack.c.l.b16 %v496
        %v1214 = vunpack.c.l.b16 %v497
        %v1215 = vunpack.c.l.b16 %v498
        %v1216 = vunpack.c.l.b16 %v499
        %v1217 = vunpack.c.l.b16 %v500
        %v1218 = vunpack.c.l.b16 %v501
        %v1219 = vunpack.c.l.b16 %v502
        %v1220 = vunpack.c.l.b16 %v503
        %v1221 = vunpack.c.l.b16 %v504
        %v1222 = vunpack.c.l.b16 %v505
        %v1223 = vunpack.c.l.b16 %v506
        %v1224 = vunpack.c.l.b16 %v507
        %v1225 = vunpack.c.l.b16 %v508
        %v1226 = vunpack.c.l.b16 %v509
        %v1227 = vunpack.c.l.b16 %v510
        %v1228 = vunpack.c.l.b16 %v511
        %v1229 = vunpack.c.l.b16 %v512
        %v1230 = vunpack.c.l.b16 %v513
        %v1231 = vunpack.c.l.b16 %v514
        %v1232 = vunpack.c.l.b16 %v515
        %v1233 = vunpack.c.l.b16 %v516
        %v1234 = vunpack.c.l.b16 %v517
        %v1235 = vunpack.c.l.b16 %v518
        %v1236 = vunpack.c.l.b16 %v519
        %v1237 = vunpack.c.l.b16 %v520
        %v1238 = vunpack.c.l.b16 %v521
        %v1239 = vunpack.c.l.b16 %v522
        %v1240 = vunpack.c.l.b16 %v523
        %v1241 = vunpack.c.l.b16 %v524
        %v1242 = vunpack.c.l.b16 %v525
        %v1243 = vunpack.c.l.b16 %v526
        %v1244 = vunpack.c.l.b16 %v527
        %v1245 = vunpack.c.l.b16 %v528
        %v1246 = vunpack.c.l.b16 %v529
        %v1247 = vpack.c.b16 %v960, %v959
        %v1248 = vpack.c.b16 %v962, %v961
        %v1249 = vpack.c.b16 %v964, %v963
        %v1250 = vpack.c.b16 %v966, %v965
        %v1251 = vpack.c.b16 %v968, %v967
        %v1252 = vpack.c.b16 %v970, %v969
        %v1253 = vpack.c.b16 %v972, %v971
        %v1254 = vpack.c.b16 %v974, %v973
        %v1255 = vpack.c.b16 %v976, %v975
        %v1256 = vpack.c.b16 %v978, %v977
        %v1257 = vpack.c.b16 %v980, %v979
        %v1258 = vpack.c.b16 %v982, %v981
        %v1259 = vpack.c.b16 %v984, %v983
        %v1260 = vpack.c.b16 %v986, %v985
        %v1261 = vpack.c.b16 %v988, %v987
        %v1262 = vpack.c.b16 %v990, %v989
        %v1263 = vpack.c.b16 %v992, %v991
        %v1264 = vpack.c.b16 %v994, %v993
        %v1265 = vpack.c.b16 %v996, %v995
        %v1266 = vpack.c.b16 %v998, %v997
        %v1267 = vpack.c.b16 %v1000, %v999
        %v1268 = vpack.c.b16 %v1002, %v1001
        %v1269 = vpack.c.b16 %v1004, %v1003
        %v1270 = vpack.c.b16 %v1006, %v1005
        %v1271 = vpack.c.b16 %v1008, %v1007
        %v1272 = vpack.c.b16 %v1010, %v1009
        %v1273 = vpack.c.b16 %v1012, %v1011
        %v1274 = vpack.c.b16 %v1014, %v1013
        %v1275 = vpack.c.b16 %v1016, %v1015
        %v1276 = vpack.c.b16 %v1018, %v1017
        %v1277 = vpack.c.b16 %v1020, %v1019
        %v1278 = vpack.c.b16 %v1022, %v1021
        %v1279 = vpack.c.b16 %v1024, %v1023
        %v1280 = vpack.c.b16 %v1026, %v1025
        %v1281 = vpack.c.b16 %v1028, %v1027
        %v1282 = vpack.c.b16 %v1030, %v1029
        %v1283 = vpack.c.b16 %v1032, %v1031
        %v1284 = vpack.c.b16 %v1034, %v1033
        %v1285 = vpack.c.b16 %v1036, %v1035
        %v1286 = vpack.c.b16 %v1038, %v1037
        %v1287 = vpack.c.b16 %v1040, %v1039
        %v1288 = vpack.c.b16 %v1042, %v1041
        %v1289 = vpack.c.b16 %v1044, %v1043
        %v1290 = vpack.c.b16 %v1046, %v1045
        %v1291 = vpack.c.b16 %v1048, %v1047
        %v1292 = vpack.c.b16 %v1050, %v1049
        %v1293 = vpack.c.b16 %v1052, %v1051
        %v1294 = vpack.c.b16 %v1054, %v1053
        %v1295 = vpack.c.b16 %v1056, %v1055
        %v1296 = vpack.c.b16 %v1058, %v1057
        %v1297 = vpack.c.b16 %v1060, %v1059
        %v1298 = vpack.c.b16 %v1062, %v1061
        %v1299 = vpack.c.b16 %v1064, %v1063
        %v1300 = vpack.c.b16 %v1066, %v1065
        %v1301 = vpack.c.b16 %v1068, %v1067
        %v1302 = vpack.c.b16 %v1070, %v1069
        %v1303 = vpack.c.b16 %v1072, %v1071
        %v1304 = vpack.c.b16 %v1074, %v1073
        %v1305 = vpack.c.b16 %v1076, %v1075
        %v1306 = vpack.c.b16 %v1078, %v1077
        %v1307 = vpack.c.b16 %v1080, %v1079
        %v1308 = vpack.c.b16 %v1082, %v1081
        %v1309 = vpack.c.b16 %v1084, %v1083
        %v1310 = vpack.c.b16 %v1086, %v1085
        %v1311 = vpack.c.b16 %v1088, %v1087
        %v1312 = vpack.c.b16 %v1090, %v1089
        %v1313 = vpack.c.b16 %v1092, %v1091
        %v1314 = vpack.c.b16 %v1094, %v1093
        %v1315 = vpack.c.b16 %v1096, %v1095
        %v1316 = vpack.c.b16 %v1098, %v1097
        %v1317 = vpack.c.b16 %v1100, %v1099
        %v1318 = vpack.c.b16 %v1102, %v1101
        %v1319 = vpack.c.b16 %v1104, %v1103
        %v1320 = vpack.c.b16 %v1106, %v1105
        %v1321 = vpack.c.b16 %v1108, %v1107
        %v1322 = vpack.c.b16 %v1110, %v1109
        %v1323 = vpack.c.b16 %v1112, %v1111
        %v1324 = vpack.c.b16 %v1114, %v1113
        %v1325 = vpack.c.b16 %v1116, %v1115
        %v1326 = vpack.c.b16 %v1118, %v1117
        %v1327 = vpack.c.b16 %v1120, %v1119
        %v1328 = vpack.c.b16 %v1122, %v1121
        %v1329 = vpack.c.b16 %v1124, %v1123
        %v1330 = vpack.c.b16 %v1126, %v1125
        %v1331 = vpack.c.b16 %v1128, %v1127
        %v1332 = vpack.c.b16 %v1130, %v1129
        %v1333 = vpack.c.b16 %v1132, %v1131
        %v1334 = vpack.c.b16 %v1134, %v1133
        %v1335 = vpack.c.b16 %v1136, %v1135
        %v1336 = vpack.c.b16 %v1138, %v1137
        %v1337 = vpack.c.b16 %v1140, %v1139
        %v1338 = vpack.c.b16 %v1142, %v1141
        %v1339 = vpack.c.b16 %v1144, %v1143
        %v1340 = vpack.c.b16 %v1146, %v1145
        %v1341 = vpack.c.b16 %v1148, %v1147
        %v1342 = vpack.c.b16 %v1150, %v1149
        %v1343 = vpack.c.b16 %v1152, %v1151
        %v1344 = vpack.c.b16 %v1154, %v1153
        %v1345 = vpack.c.b16 %v1156, %v1155
        %v1346 = vpack.c.b16 %v1158, %v1157
        %v1347 = vpack.c.b16 %v1160, %v1159
        %v1348 = vpack.c.b16 %v1162, %v1161
        %v1349 = vpack.c.b16 %v1164, %v1163
        %v1350 = vpack.c.b16 %v1166, %v1165
        %v1351 = vpack.c.b16 %v1168, %v1167
        %v1352 = vpack.c.b16 %v1170, %v1169
        %v1353 = vpack.c.b16 %v1172, %v1171
        %v1354 = vpack.c.b16 %v1174, %v1173
        %v1355 = vpack.c.b16 %v1176, %v1175
        %v1356 = vpack.c.b16 %v1178, %v1177
        %v1357 = vpack.c.b16 %v1180, %v1179
        %v1358 = vpack.c.b16 %v1182, %v1181
        %v1359 = vpack.c.b16 %v1184, %v1183
        %v1360 = vpack.c.b16 %v1186, %v1185
        %v1361 = vpack.c.b16 %v1188, %v1187
        %v1362 = vpack.c.b16 %v1190, %v1189
        %v1363 = vpack.c.b16 %v1192, %v1191
        %v1364 = vpack.c.b16 %v1194, %v1193
        %v1365 = vpack.c.b16 %v1196, %v1195
        %v1366 = vpack.c.b16 %v1198, %v1197
        %v1367 = vpack.c.b16 %v1200, %v1199
        %v1368 = vpack.c.b16 %v1202, %v1201
        %v1369 = vpack.c.b16 %v1204, %v1203
        %v1370 = vpack.c.b16 %v1206, %v1205
        %v1371 = vpack.c.b16 %v1208, %v1207
        %v1372 = vpack.c.b16 %v1210, %v1209
        %v1373 = vpack.c.b16 %v1212, %v1211
        %v1374 = vpack.c.b16 %v1214, %v1213
        %v1375 = vpack.c.b16 %v1216, %v1215
        %v1376 = vpack.c.b16 %v1218, %v1217
        %v1377 = vpack.c.b16 %v1220, %v1219
        %v1378 = vpack.c.b16 %v1222, %v1221
        %v1379 = vpack.c.b16 %v1224, %v1223
        %v1380 = vpack.c.b16 %v1226, %v1225
        %v1381 = vpack.c.b16 %v1228, %v1227
        %v1382 = vpack.c.b16 %v1230, %v1229
        %v1383 = vpack.c.b16 %v1232, %v1231
        %v1384 = vpack.c.b16 %v1234, %v1233
        %v1385 = vpack.c.b16 %v1236, %v1235
        %v1386 = vpack.c.b16 %v1238, %v1237
        %v1387 = vpack.c.b16 %v1240, %v1239
        %v1388 = vpack.c.b16 %v1242, %v1241
        %v1389 = vpack.c.b16 %v1244, %v1243
        %v1390 = vpack.c.b16 %v1246, %v1245
        %1535 = vmatprep.subr.bf16.mxu0 0
        %1536 = vmatpush1.bf16.msra.mxu0 %v1247
        %1537 = vmatprep.subr.bf16.mxu0 0
        %1538 = vmatpush1.bf16.msra.mxu0 %v1248
        %1539 = vmatprep.subr.bf16.mxu0 0
        %1540 = vmatpush1.bf16.msra.mxu0 %v1249
        %1541 = vmatprep.subr.bf16.mxu0 0
        %1542 = vmatpush1.bf16.msra.mxu0 %v1250
        %1543 = vmatprep.subr.bf16.mxu0 0
        %1544 = vmatpush1.bf16.msra.mxu0 %v1251
        %1545 = vmatprep.subr.bf16.mxu0 0
        %1546 = vmatpush1.bf16.msra.mxu0 %v1252
        %1547 = vmatprep.subr.bf16.mxu0 0
        %1548 = vmatpush1.bf16.msra.mxu0 %v1253
        %1549 = vmatprep.subr.bf16.mxu0 0
        %1550 = vmatpush1.bf16.msra.mxu0 %v1254
        %1551 = vmatprep.subr.bf16.mxu0 0
        %1552 = vmatpush1.bf16.msra.mxu0 %v1255
        %1553 = vmatprep.subr.bf16.mxu0 0
        %1554 = vmatpush1.bf16.msra.mxu0 %v1256
        %1555 = vmatprep.subr.bf16.mxu0 0
        %1556 = vmatpush1.bf16.msra.mxu0 %v1257
        %1557 = vmatprep.subr.bf16.mxu0 0
        %1558 = vmatpush1.bf16.msra.mxu0 %v1258
        %1559 = vmatprep.subr.bf16.mxu0 0
        %1560 = vmatpush1.bf16.msra.mxu0 %v1259
        %1561 = vmatprep.subr.bf16.mxu0 0
        %1562 = vmatpush1.bf16.msra.mxu0 %v1260
        %1563 = vmatprep.subr.bf16.mxu0 0
        %1564 = vmatpush1.bf16.msra.mxu0 %v1261
        %1565 = vmatprep.subr.bf16.mxu0 0
        %1566 = vmatpush1.bf16.msra.mxu0 %v1262
        %1567 = vmatprep.mubr.bf16.mxu0 %v570
        %1568 = vmatmul.mubr.bf16.gmra.mrb[0].mxu0 %v556
        %v1569 = vpop.f32.mrb[0].mxu0
        %v1570 = vadd.f32 0.0, %v1569
        %v1571 = vpop.f32.mrb[0].mxu0
        %v1572 = vpop.f32.mrb[0].mxu0
        %v1573 = vpop.f32.mrb[0].mxu0
        %1574 = vdwg.mxu0
        %1575 = vmatprep.subr.bf16.mxu0 0
        %1576 = vmatpush1.bf16.msra.mxu0 %v1263
        %1577 = vmatprep.subr.bf16.mxu0 0
        %1578 = vmatpush1.bf16.msra.mxu0 %v1264
        %1579 = vmatprep.subr.bf16.mxu0 0
        %1580 = vmatpush1.bf16.msra.mxu0 %v1265
        %1581 = vmatprep.subr.bf16.mxu0 0
        %1582 = vmatpush1.bf16.msra.mxu0 %v1266
        %1583 = vmatprep.subr.bf16.mxu0 0
        %1584 = vmatpush1.bf16.msra.mxu0 %v1267
        %1585 = vmatprep.subr.bf16.mxu0 0
        %1586 = vmatpush1.bf16.msra.mxu0 %v1268
        %1587 = vmatprep.subr.bf16.mxu0 0
        %1588 = vmatpush1.bf16.msra.mxu0 %v1269
        %1589 = vmatprep.subr.bf16.mxu0 0
        %1590 = vmatpush1.bf16.msra.mxu0 %v1270
        %1591 = vmatprep.subr.bf16.mxu0 0
        %1592 = vmatpush1.bf16.msra.mxu0 %v1271
        %1593 = vmatprep.subr.bf16.mxu0 0
        %1594 = vmatpush1.bf16.msra.mxu0 %v1272
        %1595 = vmatprep.subr.bf16.mxu0 0
        %1596 = vmatpush1.bf16.msra.mxu0 %v1273
        %1597 = vmatprep.subr.bf16.mxu0 0
        %1598 = vmatpush1.bf16.msra.mxu0 %v1274
        %1599 = vmatprep.subr.bf16.mxu0 0
        %1600 = vmatpush1.bf16.msra.mxu0 %v1275
        %1601 = vmatprep.subr.bf16.mxu0 0
        %1602 = vmatpush1.bf16.msra.mxu0 %v1276
        %1603 = vmatprep.subr.bf16.mxu0 0
        %1604 = vmatpush1.bf16.msra.mxu0 %v1277
        %1605 = vmatprep.subr.bf16.mxu0 0
        %1606 = vmatpush1.bf16.msra.mxu0 %v1278
        %1607 = vmatprep.mubr.bf16.mxu0 %v580
        %1608 = vmatmul.mubr.bf16.gmra.mrb[0].mxu0 %v578
        %v1609 = vpop.f32.mrb[0].mxu0
        %v1610 = vadd.f32 %v1570, %v1609
        %v1611 = vpop.f32.mrb[0].mxu0
        %v1612 = vpop.f32.mrb[0].mxu0
        %v1613 = vpop.f32.mrb[0].mxu0
        %1614 = vdwg.mxu0
        %1615 = vmatprep.subr.bf16.mxu0 0
        %1616 = vmatpush1.bf16.msra.mxu0 %v1279
        %1617 = vmatprep.subr.bf16.mxu0 0
        %1618 = vmatpush1.bf16.msra.mxu0 %v1280
        %1619 = vmatprep.subr.bf16.mxu0 0
        %1620 = vmatpush1.bf16.msra.mxu0 %v1281
        %1621 = vmatprep.subr.bf16.mxu0 0
        %1622 = vmatpush1.bf16.msra.mxu0 %v1282
        %1623 = vmatprep.subr.bf16.mxu0 0
        %1624 = vmatpush1.bf16.msra.mxu0 %v1283
        %1625 = vmatprep.subr.bf16.mxu0 0
        %1626 = vmatpush1.bf16.msra.mxu0 %v1284
        %1627 = vmatprep.subr.bf16.mxu0 0
        %1628 = vmatpush1.bf16.msra.mxu0 %v1285
        %1629 = vmatprep.subr.bf16.mxu0 0
        %1630 = vmatpush1.bf16.msra.mxu0 %v1286
        %1631 = vmatprep.subr.bf16.mxu0 0
        %1632 = vmatpush1.bf16.msra.mxu0 %v1287
        %1633 = vmatprep.subr.bf16.mxu0 0
        %1634 = vmatpush1.bf16.msra.mxu0 %v1288
        %1635 = vmatprep.subr.bf16.mxu0 0
        %1636 = vmatpush1.bf16.msra.mxu0 %v1289
        %1637 = vmatprep.subr.bf16.mxu0 0
        %1638 = vmatpush1.bf16.msra.mxu0 %v1290
        %1639 = vmatprep.subr.bf16.mxu0 0
        %1640 = vmatpush1.bf16.msra.mxu0 %v1291
        %1641 = vmatprep.subr.bf16.mxu0 0
        %1642 = vmatpush1.bf16.msra.mxu0 %v1292
        %1643 = vmatprep.subr.bf16.mxu0 0
        %1644 = vmatpush1.bf16.msra.mxu0 %v1293
        %1645 = vmatprep.subr.bf16.mxu0 0
        %1646 = vmatpush1.bf16.msra.mxu0 %v1294
        %1647 = vmatprep.mubr.bf16.mxu0 %v577
        %1648 = vmatmul.mubr.bf16.gmra.mrb[0].mxu0 %v563
        %v1649 = vpop.f32.mrb[0].mxu0
        %v1650 = vadd.f32 %v1610, %v1649
        %v1651 = vpop.f32.mrb[0].mxu0
        %v1652 = vpop.f32.mrb[0].mxu0
        %v1653 = vpop.f32.mrb[0].mxu0
        %1654 = vdwg.mxu0
        %1655 = vmatprep.subr.bf16.mxu0 0
        %1656 = vmatpush1.bf16.msra.mxu0 %v1295
        %1657 = vmatprep.subr.bf16.mxu0 0
        %1658 = vmatpush1.bf16.msra.mxu0 %v1296
        %1659 = vmatprep.subr.bf16.mxu0 0
        %1660 = vmatpush1.bf16.msra.mxu0 %v1297
        %1661 = vmatprep.subr.bf16.mxu0 0
        %1662 = vmatpush1.bf16.msra.mxu0 %v1298
        %1663 = vmatprep.subr.bf16.mxu0 0
        %1664 = vmatpush1.bf16.msra.mxu0 %v1299
        %1665 = vmatprep.subr.bf16.mxu0 0
        %1666 = vmatpush1.bf16.msra.mxu0 %v1300
        %1667 = vmatprep.subr.bf16.mxu0 0
        %1668 = vmatpush1.bf16.msra.mxu0 %v1301
        %1669 = vmatprep.subr.bf16.mxu0 0
        %1670 = vmatpush1.bf16.msra.mxu0 %v1302
        %1671 = vmatprep.subr.bf16.mxu0 0
        %1672 = vmatpush1.bf16.msra.mxu0 %v1303
        %1673 = vmatprep.subr.bf16.mxu0 0
        %1674 = vmatpush1.bf16.msra.mxu0 %v1304
        %1675 = vmatprep.subr.bf16.mxu0 0
        %1676 = vmatpush1.bf16.msra.mxu0 %v1305
        %1677 = vmatprep.subr.bf16.mxu0 0
        %1678 = vmatpush1.bf16.msra.mxu0 %v1306
        %1679 = vmatprep.subr.bf16.mxu0 0
        %1680 = vmatpush1.bf16.msra.mxu0 %v1307
        %1681 = vmatprep.subr.bf16.mxu0 0
        %1682 = vmatpush1.bf16.msra.mxu0 %v1308
        %1683 = vmatprep.subr.bf16.mxu0 0
        %1684 = vmatpush1.bf16.msra.mxu0 %v1309
        %1685 = vmatprep.subr.bf16.mxu0 0
        %1686 = vmatpush1.bf16.msra.mxu0 %v1310
        %1687 = vmatprep.mubr.bf16.mxu0 %v581
        %1688 = vmatmul.mubr.bf16.gmra.mrb[0].mxu0 %v579
        %v1689 = vpop.f32.mrb[0].mxu0
        %v1690 = vadd.f32 %v1650, %v1689
        %v1691 = vpop.f32.mrb[0].mxu0
        %v1692 = vpop.f32.mrb[0].mxu0
        %v1693 = vpop.f32.mrb[0].mxu0
        %1694 = vdwg.mxu0
        %1695 = vmatprep.subr.bf16.mxu0 0
        %1696 = vmatpush1.bf16.msra.mxu0 %v1311
        %1697 = vmatprep.subr.bf16.mxu0 0
        %1698 = vmatpush1.bf16.msra.mxu0 %v1312
        %1699 = vmatprep.subr.bf16.mxu0 0
        %1700 = vmatpush1.bf16.msra.mxu0 %v1313
        %1701 = vmatprep.subr.bf16.mxu0 0
        %1702 = vmatpush1.bf16.msra.mxu0 %v1314
        %1703 = vmatprep.subr.bf16.mxu0 0
        %1704 = vmatpush1.bf16.msra.mxu0 %v1315
        %1705 = vmatprep.subr.bf16.mxu0 0
        %1706 = vmatpush1.bf16.msra.mxu0 %v1316
        %1707 = vmatprep.subr.bf16.mxu0 0
        %1708 = vmatpush1.bf16.msra.mxu0 %v1317
        %1709 = vmatprep.subr.bf16.mxu0 0
        %1710 = vmatpush1.bf16.msra.mxu0 %v1318
        %1711 = vmatprep.subr.bf16.mxu0 0
        %1712 = vmatpush1.bf16.msra.mxu0 %v1319
        %1713 = vmatprep.subr.bf16.mxu0 0
        %1714 = vmatpush1.bf16.msra.mxu0 %v1320
        %1715 = vmatprep.subr.bf16.mxu0 0
        %1716 = vmatpush1.bf16.msra.mxu0 %v1321
        %1717 = vmatprep.subr.bf16.mxu0 0
        %1718 = vmatpush1.bf16.msra.mxu0 %v1322
        %1719 = vmatprep.subr.bf16.mxu0 0
        %1720 = vmatpush1.bf16.msra.mxu0 %v1323
        %1721 = vmatprep.subr.bf16.mxu0 0
        %1722 = vmatpush1.bf16.msra.mxu0 %v1324
        %1723 = vmatprep.subr.bf16.mxu0 0
        %1724 = vmatpush1.bf16.msra.mxu0 %v1325
        %1725 = vmatprep.subr.bf16.mxu0 0
        %1726 = vmatpush1.bf16.msra.mxu0 %v1326
        %1727 = vmatprep.mubr.bf16.mxu0 %v619
        %1728 = vmatmul.mubr.bf16.gmra.mrb[0].mxu0 %v605
        %v1729 = vpop.f32.mrb[0].mxu0
        %v1730 = vadd.f32 %v1690, %v1729
        %v1731 = vpop.f32.mrb[0].mxu0
        %v1732 = vpop.f32.mrb[0].mxu0
        %v1733 = vpop.f32.mrb[0].mxu0
        %1734 = vdwg.mxu0
        %1735 = vmatprep.subr.bf16.mxu0 0
        %1736 = vmatpush1.bf16.msra.mxu0 %v1327
        %1737 = vmatprep.subr.bf16.mxu0 0
        %1738 = vmatpush1.bf16.msra.mxu0 %v1328
        %1739 = vmatprep.subr.bf16.mxu0 0
        %1740 = vmatpush1.bf16.msra.mxu0 %v1329
        %1741 = vmatprep.subr.bf16.mxu0 0
        %1742 = vmatpush1.bf16.msra.mxu0 %v1330
        %1743 = vmatprep.subr.bf16.mxu0 0
        %1744 = vmatpush1.bf16.msra.mxu0 %v1331
        %1745 = vmatprep.subr.bf16.mxu0 0
        %1746 = vmatpush1.bf16.msra.mxu0 %v1332
        %1747 = vmatprep.subr.bf16.mxu0 0
        %1748 = vmatpush1.bf16.msra.mxu0 %v1333
        %1749 = vmatprep.subr.bf16.mxu0 0
        %1750 = vmatpush1.bf16.msra.mxu0 %v1334
        %1751 = vmatprep.subr.bf16.mxu0 0
        %1752 = vmatpush1.bf16.msra.mxu0 %v1335
        %1753 = vmatprep.subr.bf16.mxu0 0
        %1754 = vmatpush1.bf16.msra.mxu0 %v1336
        %1755 = vmatprep.subr.bf16.mxu0 0
        %1756 = vmatpush1.bf16.msra.mxu0 %v1337
        %1757 = vmatprep.subr.bf16.mxu0 0
        %1758 = vmatpush1.bf16.msra.mxu0 %v1338
        %1759 = vmatprep.subr.bf16.mxu0 0
        %1760 = vmatpush1.bf16.msra.mxu0 %v1339
        %1761 = vmatprep.subr.bf16.mxu0 0
        %1762 = vmatpush1.bf16.msra.mxu0 %v1340
        %1763 = vmatprep.subr.bf16.mxu0 0
        %1764 = vmatpush1.bf16.msra.mxu0 %v1341
        %1765 = vmatprep.subr.bf16.mxu0 0
        %1766 = vmatpush1.bf16.msra.mxu0 %v1342
        %1767 = vmatprep.mubr.bf16.mxu0 %v629
        %1768 = vmatmul.mubr.bf16.gmra.mrb[0].mxu0 %v627
        %v1769 = vpop.f32.mrb[0].mxu0
        %v1770 = vadd.f32 %v1730, %v1769
        %v1771 = vpop.f32.mrb[0].mxu0
        %v1772 = vpop.f32.mrb[0].mxu0
        %v1773 = vpop.f32.mrb[0].mxu0
        %1774 = vdwg.mxu0
        %1775 = vmatprep.subr.bf16.mxu0 0
        %1776 = vmatpush1.bf16.msra.mxu0 %v1343
        %1777 = vmatprep.subr.bf16.mxu0 0
        %1778 = vmatpush1.bf16.msra.mxu0 %v1344
        %1779 = vmatprep.subr.bf16.mxu0 0
        %1780 = vmatpush1.bf16.msra.mxu0 %v1345
        %1781 = vmatprep.subr.bf16.mxu0 0
        %1782 = vmatpush1.bf16.msra.mxu0 %v1346
        %1783 = vmatprep.subr.bf16.mxu0 0
        %1784 = vmatpush1.bf16.msra.mxu0 %v1347
        %1785 = vmatprep.subr.bf16.mxu0 0
        %1786 = vmatpush1.bf16.msra.mxu0 %v1348
        %1787 = vmatprep.subr.bf16.mxu0 0
        %1788 = vmatpush1.bf16.msra.mxu0 %v1349
        %1789 = vmatprep.subr.bf16.mxu0 0
        %1790 = vmatpush1.bf16.msra.mxu0 %v1350
        %1791 = vmatprep.subr.bf16.mxu0 0
        %1792 = vmatpush1.bf16.msra.mxu0 %v1351
        %1793 = vmatprep.subr.bf16.mxu0 0
        %1794 = vmatpush1.bf16.msra.mxu0 %v1352
        %1795 = vmatprep.subr.bf16.mxu0 0
        %1796 = vmatpush1.bf16.msra.mxu0 %v1353
        %1797 = vmatprep.subr.bf16.mxu0 0
        %1798 = vmatpush1.bf16.msra.mxu0 %v1354
        %1799 = vmatprep.subr.bf16.mxu0 0
        %1800 = vmatpush1.bf16.msra.mxu0 %v1355
        %1801 = vmatprep.subr.bf16.mxu0 0
        %1802 = vmatpush1.bf16.msra.mxu0 %v1356
        %1803 = vmatprep.subr.bf16.mxu0 0
        %1804 = vmatpush1.bf16.msra.mxu0 %v1357
        %1805 = vmatprep.subr.bf16.mxu0 0
        %1806 = vmatpush1.bf16.msra.mxu0 %v1358
        %1807 = vmatprep.mubr.bf16.mxu0 %v626
        %1808 = vmatmul.mubr.bf16.gmra.mrb[0].mxu0 %v612
        %v1809 = vpop.f32.mrb[0].mxu0
        %v1810 = vadd.f32 %v1770, %v1809
        %v1811 = vpop.f32.mrb[0].mxu0
        %v1812 = vpop.f32.mrb[0].mxu0
        %v1813 = vpop.f32.mrb[0].mxu0
        %1814 = vdwg.mxu0
        %1815 = vmatprep.subr.bf16.mxu0 0
        %1816 = vmatpush1.bf16.msra.mxu0 %v1359
        %1817 = vmatprep.subr.bf16.mxu0 0
        %1818 = vmatpush1.bf16.msra.mxu0 %v1360
        %1819 = vmatprep.subr.bf16.mxu0 0
        %1820 = vmatpush1.bf16.msra.mxu0 %v1361
        %1821 = vmatprep.subr.bf16.mxu0 0
        %1822 = vmatpush1.bf16.msra.mxu0 %v1362
        %1823 = vmatprep.subr.bf16.mxu0 0
        %1824 = vmatpush1.bf16.msra.mxu0 %v1363
        %1825 = vmatprep.subr.bf16.mxu0 0
        %1826 = vmatpush1.bf16.msra.mxu0 %v1364
        %1827 = vmatprep.subr.bf16.mxu0 0
        %1828 = vmatpush1.bf16.msra.mxu0 %v1365
        %1829 = vmatprep.subr.bf16.mxu0 0
        %1830 = vmatpush1.bf16.msra.mxu0 %v1366
        %1831 = vmatprep.subr.bf16.mxu0 0
        %1832 = vmatpush1.bf16.msra.mxu0 %v1367
        %1833 = vmatprep.subr.bf16.mxu0 0
        %1834 = vmatpush1.bf16.msra.mxu0 %v1368
        %1835 = vmatprep.subr.bf16.mxu0 0
        %1836 = vmatpush1.bf16.msra.mxu0 %v1369
        %1837 = vmatprep.subr.bf16.mxu0 0
        %1838 = vmatpush1.bf16.msra.mxu0 %v1370
        %1839 = vmatprep.subr.bf16.mxu0 0
        %1840 = vmatpush1.bf16.msra.mxu0 %v1371
        %1841 = vmatprep.subr.bf16.mxu0 0
        %1842 = vmatpush1.bf16.msra.mxu0 %v1372
        %1843 = vmatprep.subr.bf16.mxu0 0
        %1844 = vmatpush1.bf16.msra.mxu0 %v1373
        %1845 = vmatprep.subr.bf16.mxu0 0
        %1846 = vmatpush1.bf16.msra.mxu0 %v1374
        %1847 = vmatprep.mubr.bf16.mxu0 %v630
        %1848 = vmatmul.mubr.bf16.gmra.mrb[0].mxu0 %v628
        %v1849 = vpop.f32.mrb[0].mxu0
        %v1850 = vadd.f32 %v1810, %v1849
        %v1851 = vpop.f32.mrb[0].mxu0
        %v1852 = vpop.f32.mrb[0].mxu0
        %v1853 = vpop.f32.mrb[0].mxu0
        %1854 = vdwg.mxu0
        %1855 = vmatprep.subr.bf16.mxu0 0
        %1856 = vmatpush1.bf16.msra.mxu0 %v1375
        %1857 = vmatprep.subr.bf16.mxu0 0
        %1858 = vmatpush1.bf16.msra.mxu0 %v1376
        %1859 = vmatprep.subr.bf16.mxu0 0
        %1860 = vmatpush1.bf16.msra.mxu0 %v1377
        %1861 = vmatprep.subr.bf16.mxu0 0
        %1862 = vmatpush1.bf16.msra.mxu0 %v1378
        %1863 = vmatprep.subr.bf16.mxu0 0
        %1864 = vmatpush1.bf16.msra.mxu0 %v1379
        %1865 = vmatprep.subr.bf16.mxu0 0
        %1866 = vmatpush1.bf16.msra.mxu0 %v1380
        %1867 = vmatprep.subr.bf16.mxu0 0
        %1868 = vmatpush1.bf16.msra.mxu0 %v1381
        %1869 = vmatprep.subr.bf16.mxu0 0
        %1870 = vmatpush1.bf16.msra.mxu0 %v1382
        %1871 = vmatprep.subr.bf16.mxu0 0
        %1872 = vmatpush1.bf16.msra.mxu0 %v1383
        %1873 = vmatprep.subr.bf16.mxu0 0
        %1874 = vmatpush1.bf16.msra.mxu0 %v1384
        %1875 = vmatprep.subr.bf16.mxu0 0
        %1876 = vmatpush1.bf16.msra.mxu0 %v1385
        %1877 = vmatprep.subr.bf16.mxu0 0
        %1878 = vmatpush1.bf16.msra.mxu0 %v1386
        %1879 = vmatprep.subr.bf16.mxu0 0
        %1880 = vmatpush1.bf16.msra.mxu0 %v1387
        %1881 = vmatprep.subr.bf16.mxu0 0
        %1882 = vmatpush1.bf16.msra.mxu0 %v1388
        %1883 = vmatprep.subr.bf16.mxu0 0
        %1884 = vmatpush1.bf16.msra.mxu0 %v1389
        %1885 = vmatprep.subr.bf16.mxu0 0
        %1886 = vmatpush1.bf16.msra.mxu0 %v1390
        %1887 = vmatprep.mubr.bf16.mxu0 %v652
        %1888 = vmatmul.mubr.bf16.gmra.mrb[0].mxu0 %v645
        %v1889 = vpop.f32.mrb[0].mxu0
        %v1890 = vadd.f32 %v1850, %v1889
        %v1891 = vpop.f32.mrb[0].mxu0
        %v1892 = vpop.f32.mrb[0].mxu0
        %v1893 = vpop.f32.mrb[0].mxu0
        %1894 = vdwg.mxu0
        %v1895 = vadd.f32 %v238, %v1890
        %1896 = vst [vmem:[#allocation2] sm:$0x3] %v1895
        %p1897 = scmp.eq.s32.totalorder %s17, 3
        // Predicated region
        $region45: #{net_forward.5} parent=39 // pred_check
          %p1898 = pneg %p1897
        $region46: #{net_forward.5} parent=39 // pred_check_branch
          %1900 = sbr.rel (%p1898) target = $region48
        $region47: #{net_forward.5} parent=39 // pred_region
          %v1901 = vld [vmem:[#allocation2] sm:$0x3]
          %v1902 = vld [vmem:[%s2] sm:$0x1]
          %v1904 = vlaneseq
          %v1905 = vshrl.u32 %v1904, 7
          %v1906 = vsub.s32 0, %v1905
          %v1907 = vrot.slane %v1902, %v1906
          %v1909 = vadd.f32 %v1901, %v1907
          %v1910 = vmax.f32 %v1909, 0.0
          %v1911 = vpack.c.bf16 %v1910, %v1910
          %v1912 = vld [vmem:[%s3] sm:$0xf]
          %v1913 = vld [vmem:[%s3 + $0x4] sm:$0xf]
          %v1914 = vld [vmem:[%s3 + $0x8] sm:$0xf]
          %v1915 = vld [vmem:[%s3 + $0xc] sm:$0xf]
          %v1916 = vld [vmem:[%s3 + $0x10] sm:$0xf]
          %v1917 = vld [vmem:[%s3 + $0x14] sm:$0xf]
          %v1918 = vld [vmem:[%s3 + $0x18] sm:$0xf]
          %v1919 = vld [vmem:[%s3 + $0x1c] sm:$0xf]
          %v1920 = vld [vmem:[%s3 + $0x20] sm:$0xf]
          %v1921 = vld [vmem:[%s3 + $0x24] sm:$0xf]
          %v1922 = vld [vmem:[%s3 + $0x28] sm:$0xf]
          %v1923 = vld [vmem:[%s3 + $0x2c] sm:$0xf]
          %v1924 = vld [vmem:[%s3 + $0x30] sm:$0xf]
          %v1925 = vld [vmem:[%s3 + $0x34] sm:$0xf]
          %v1926 = vld [vmem:[%s3 + $0x38] sm:$0xf]
          %v1927 = vld [vmem:[%s3 + $0x3c] sm:$0xf]
          %v1928 = vld [vmem:[%s4] sm:$0x1]
          %v1930 = vlaneseq
          %v1931 = vshrl.u32 %v1930, 7
          %v1932 = vsub.s32 0, %v1931
          %v1933 = vrot.slane %v1928, %v1932
          %v1951 = vunpack.c.l.b16 %v1912
          %v1952 = vunpack.c.l.b16 %v1913
          %v1953 = vunpack.c.l.b16 %v1914
          %v1954 = vunpack.c.l.b16 %v1915
          %v1955 = vunpack.c.l.b16 %v1916
          %v1956 = vunpack.c.l.b16 %v1917
          %v1957 = vunpack.c.l.b16 %v1918
          %v1958 = vunpack.c.l.b16 %v1919
          %v1959 = vunpack.c.l.b16 %v1920
          %v1960 = vunpack.c.l.b16 %v1921
          %v1961 = vunpack.c.l.b16 %v1922
          %v1962 = vunpack.c.l.b16 %v1923
          %v1963 = vunpack.c.l.b16 %v1924
          %v1964 = vunpack.c.l.b16 %v1925
          %v1965 = vunpack.c.l.b16 %v1926
          %v1966 = vunpack.c.l.b16 %v1927
          %v1967 = vpack.c.b16 %v1952, %v1951
          %v1968 = vpack.c.b16 %v1954, %v1953
          %v1969 = vpack.c.b16 %v1956, %v1955
          %v1970 = vpack.c.b16 %v1958, %v1957
          %v1971 = vpack.c.b16 %v1960, %v1959
          %v1972 = vpack.c.b16 %v1962, %v1961
          %v1973 = vpack.c.b16 %v1964, %v1963
          %v1974 = vpack.c.b16 %v1966, %v1965
          %1983 = vmatprep.subr.bf16.mxu0 0
          %1984 = vmatpush1.bf16.msra.mxu0 %v1967
          %1985 = vmatprep.subr.bf16.mxu0 0
          %1986 = vmatpush1.bf16.msra.mxu0 %v1968
          %1987 = vmatprep.subr.bf16.mxu0 0
          %1988 = vmatpush1.bf16.msra.mxu0 %v1969
          %1989 = vmatprep.subr.bf16.mxu0 0
          %1990 = vmatpush1.bf16.msra.mxu0 %v1970
          %1991 = vmatprep.subr.bf16.mxu0 0
          %1992 = vmatpush1.bf16.msra.mxu0 %v1971
          %1993 = vmatprep.subr.bf16.mxu0 0
          %1994 = vmatpush1.bf16.msra.mxu0 %v1972
          %1995 = vmatprep.subr.bf16.mxu0 0
          %1996 = vmatpush1.bf16.msra.mxu0 %v1973
          %1997 = vmatprep.subr.bf16.mxu0 0
          %1998 = vmatpush1.bf16.msra.mxu0 %v1974
          %1999 = vmatprep.subr.bf16.mxu0 0
          %2000 = vmatpush1.bf16.msra.mxu0 0
          %2001 = vmatprep.subr.bf16.mxu0 0
          %2002 = vmatpush1.bf16.msra.mxu0 0
          %2003 = vmatprep.subr.bf16.mxu0 0
          %2004 = vmatpush1.bf16.msra.mxu0 0
          %2005 = vmatprep.subr.bf16.mxu0 0
          %2006 = vmatpush1.bf16.msra.mxu0 0
          %2007 = vmatprep.subr.bf16.mxu0 0
          %2008 = vmatpush1.bf16.msra.mxu0 0
          %2009 = vmatprep.subr.bf16.mxu0 0
          %2010 = vmatpush1.bf16.msra.mxu0 0
          %2011 = vmatprep.subr.bf16.mxu0 0
          %2012 = vmatpush1.bf16.msra.mxu0 0
          %2013 = vmatprep.subr.bf16.mxu0 0
          %2014 = vmatpush1.bf16.msra.mxu0 0
          %2015 = vmatprep.mubr.bf16.mxu0 0
          %2016 = vmatmul.mubr.bf16.gmra.mrb[0].mxu0 %v1911
          %v2017 = vpop.f32.mrb[0].mxu0
          %v2018 = vadd.f32 %v1933, %v2017
          %v2019 = vpop.f32.mrb[0].mxu0
          %v2020 = vpop.f32.mrb[0].mxu0
          %v2021 = vpop.f32.mrb[0].mxu0
          %2022 = vdwg.mxu0
          %vm2023 = vcmask 74752
          %v2024 = vsel %vm2023, %v2018, -inf
          %2025 = vmax.xlane.f32.xlu0 %v2024
          %v2026 = vpop.xlane.xlu0 %2025
          %v2027 = vsub.f32 %v2018, %v2026
          %v2028 = vmul.f32 %v2027, 1.442695
          %v2029 = vpow.pop %v2028
          %v2030 = vsel %vm2023, %v2029, 0.0
          %2031 = vadd.xlane.f32.xlu0 %v2030
          %v2032 = vpop.xlane.xlu0 %2031
          %v2033 = vlog2.pop %v2032
          %v2034 = vmul.f32 %v2033, 0.6931472
          %v2035 = vsub.f32 %v2027, %v2034
          %2036 = vst.msk [vmem:[#allocation3] sm:$0x3] %vm2023, %v2035
        $region48: #{net_forward.5} parent=39 // pred_fallthru
          _
        // Predicated region
        $region49: #{net_forward.5} parent=39 // pred_check
          %p2037 = pneg %p145
        $region50: #{net_forward.5} parent=39 // pred_check_branch
          %2039 = sbr.rel (%p2037) target = $region52
        $region51: #{net_forward.5} parent=39 // pred_region
          %s2041 = ssub.s32 32, 32
          %2042 = vsyncadd [#allocation4], %s2041
          %s2044 = sshll.u32 [#allocation3], 4
          %s2045 = int_to_ptr.vmem [resolvable:$true] %s2044
          %2047 = dma.vmem_to_hbm [thread:$0]  %s2045, 32, %s5, [#allocation4]
        $region52: #{net_forward.5} parent=39 // pred_fallthru
          _
        // Predicated region
        $region53: #{net_forward.5} parent=39 // pred_check
          %p2048 = pneg %p145
        $region54: #{net_forward.5} parent=39 // pred_check_branch
          %2050 = sbr.rel (%p2048) target = $region56
        $region55: #{net_forward.5} parent=39 // pred_region
          %2051 = dma.done [#allocation4], 32
        $region56: #{net_forward.5} parent=39 // pred_fallthru
          _
      $region40: #{net_forward.5} parent=5 // pred_fallthru
        _
      %p2052 = scmp.le.s32.totalorder 2, %s12
      // Predicated region
      $region57: #{net_forward.5} parent=5 // pred_check
        %p2053 = pneg %p2052
      $region58: #{net_forward.5} parent=5 // pred_check_branch
        %2055 = sbr.rel (%p2053) target = $region60
      $region59: #{net_forward.5} parent=5 // pred_region
        %s2056 = ssub.s32 %s12, 2
      $region60: #{net_forward.5} parent=5 // pred_fallthru
        _
    $region6: #{net_forward.5} parent=1 // loop_footer
      %s16 = sadd.s32 1, %s12
    $region7: #{net_forward.5} parent=1 // loop_footer_branch
      %11 = sbr.rel target = $region3
    $region8: #{net_forward.5} parent=1 // loop_exit
      _
    %2057 = vsyncpa [#allocation4], 1
    %s2058 = scalar_lea.sflag [#allocation4], 1
    %2059 = vsyncpa %s2058, 1

</llo_original>
